<compile_context>
chip_gen: v6e
topology: v6e:2x2x1
jax: 0.10.0
libtpu: 0.0.40
codegen_flags: <defaults>
</compile_context>

<pallas_src>
import math

import jax
import jax.numpy as jnp
from jax.experimental import pallas as pl
from jax.experimental.pallas import tpu as pltpu

# ---------------- small synthetic BERT config ----------------
HIDDEN = 128          # bert hidden size (small synthetic, lane-aligned)
SEQ = 16              # max_len
BATCH = 2
NUM_LAYERS = 2
NUM_HEADS = 4
HEAD_DIM = HIDDEN // NUM_HEADS
INTERMEDIATE = 256
VOCAB = 64
MAX_POS = 32
LN_EPS = 1e-12
NUM_CLASSES = 13 * 4 + 2   # 14 heads concatenated -> 54 logits
HEADS_PAD = 128            # pad heads output to a full lane width


# ---------------- in-kernel helpers ----------------
def _layernorm(x, gamma, beta):
    mean = jnp.mean(x, axis=-1, keepdims=True)
    var = jnp.mean((x - mean) ** 2, axis=-1, keepdims=True)
    return (x - mean) * jax.lax.rsqrt(var + LN_EPS) * gamma + beta


# ---------------- fused forward kernel ----------------
def fused_bert_kernel(emb_ref, mask_ref, embg_ref, embb_ref,
                      wqkv_ref, bqkv_ref, wo_ref, bo_ref, ln1g_ref, ln1b_ref,
                      wff1_ref, bff1_ref, wff2_ref, bff2_ref, ln2g_ref, ln2b_ref,
                      hw_ref, hb_ref, o_ref):
    B, S, H, D, NH = BATCH, SEQ, HIDDEN, HEAD_DIM, NUM_HEADS
    scale = 1.0 / math.sqrt(D)

    # --- embedding LayerNorm (was a standalone pallas_call) ---
    x = _layernorm(emb_ref[...], embg_ref[...], embb_ref[...])     # (B*S, H) f32
    mask_big = mask_ref[...]                                       # (NH*B, 1, S) additive

    # --- transformer layers, statically unrolled; weights stacked on axis 0 ---
    for l in range(NUM_LAYERS):
        # fused QKV projection on the full (B*S, H) slab (bf16 MXU, f32 accum)
        qkv = jnp.dot(x.astype(jnp.bfloat16), wqkv_ref[l],
                      preferred_element_type=jnp.float32) + bqkv_ref[l]   # (B*S, 3H)
        qkv3 = qkv.reshape(B, S, 3 * H)

        # batched heads: stack (batch, head) on the leading axis -> index h*B + b
        q = jnp.concatenate(
            [qkv3[:, :, h * D:(h + 1) * D] for h in range(NH)], axis=0)            # (NH*B, S, D)
        k = jnp.concatenate(
            [qkv3[:, :, H + h * D:H + (h + 1) * D] for h in range(NH)], axis=0)
        v = jnp.concatenate(
            [qkv3[:, :, 2 * H + h * D:2 * H + (h + 1) * D] for h in range(NH)], axis=0)

        s = jnp.einsum('bqd,bkd->bqk',
                       q.astype(jnp.bfloat16), k.astype(jnp.bfloat16),
                       preferred_element_type=jnp.float32) * scale + mask_big      # (NH*B, S, S)
        s = s - jnp.max(s, axis=-1, keepdims=True)
        p = jnp.exp(s)
        p = p * pl.reciprocal(jnp.sum(p, axis=-1, keepdims=True), approx=True)
        ctx = jnp.einsum('bqk,bkd->bqd',
                         p.astype(jnp.bfloat16), v.astype(jnp.bfloat16),
                         preferred_element_type=jnp.float32)                       # (NH*B, S, D)

        # undo the (head, batch) stacking: heads go back onto the lane axis
        ctx = jnp.concatenate([ctx[h * B:(h + 1) * B] for h in range(NH)], axis=-1)  # (B, S, H)
        ctx = ctx.reshape(B * S, H)

        attn_out = jnp.dot(ctx.astype(jnp.bfloat16), wo_ref[l],
                           preferred_element_type=jnp.float32) + bo_ref[l]
        y = _layernorm(x + attn_out, ln1g_ref[l], ln1b_ref[l])

        # TODO(synk): HF BERT uses exact erf-GELU; tanh-approximate GELU used here.
        hidden = jnp.dot(y.astype(jnp.bfloat16), wff1_ref[l],
                         preferred_element_type=jnp.float32) + bff1_ref[l]
        hidden = jax.nn.gelu(hidden, approximate=True)
        ff_out = jnp.dot(hidden.astype(jnp.bfloat16), wff2_ref[l],
                         preferred_element_type=jnp.float32) + bff2_ref[l]
        x = _layernorm(y + ff_out, ln2g_ref[l], ln2b_ref[l])

    # --- classification heads (14 heads concatenated + zero-padded to 128 lanes) ---
    # Computed on the full (B*S, H) slab so the store is lane- and sublane-dense;
    # the wrapper selects the CLS rows and the first NUM_CLASSES columns.
    # nn.Dropout(p=0.1) on cls_hidden is identity at inference time.
    o_ref[...] = jnp.dot(x.astype(jnp.bfloat16), hw_ref[...],
                         preferred_element_type=jnp.float32) + hb_ref[...]


def fused_forward(emb2d, mask_big, p):
    BS, H = emb2d.shape
    BH, _, S = mask_big.shape
    L, I, CP = NUM_LAYERS, INTERMEDIATE, HEADS_PAD

    def full(shape):
        return pl.BlockSpec(shape, lambda i, n=len(shape): (0,) * n)

    return pl.pallas_call(
        fused_bert_kernel,
        out_shape=jax.ShapeDtypeStruct((BS, CP), jnp.float32),
        grid_spec=pltpu.PrefetchScalarGridSpec(
            num_scalar_prefetch=0,
            grid=(1,),
            in_specs=[
                full((BS, H)),                               # embeddings (pre-LN)
                full((BH, 1, S)),                            # additive attention mask
                full((1, H)), full((1, H)),                  # embedding LN
                full((L, H, 3 * H)), full((L, 1, 3 * H)),    # fused QKV
                full((L, H, H)), full((L, 1, H)),            # attn out proj
                full((L, 1, H)), full((L, 1, H)),            # ln1
                full((L, H, I)), full((L, 1, I)),            # ffn in
                full((L, I, H)), full((L, 1, H)),            # ffn out
                full((L, 1, H)), full((L, 1, H)),            # ln2
                full((H, CP)), full((1, CP)),                # classification heads (padded)
            ],
            out_specs=full((BS, CP))),
        compiler_params=pltpu.CompilerParams(
            dimension_semantics=("arbitrary",),
            vmem_limit_bytes=32 * 1024 * 1024),
    )(emb2d, mask_big,
      p["emb_ln_g"], p["emb_ln_b"],
      p["wqkv"], p["bqkv"], p["wo"], p["bo"], p["ln1_g"], p["ln1_b"],
      p["wff1"], p["bff1"], p["wff2"], p["bff2"], p["ln2_g"], p["ln2_b"],
      p["heads_w"], p["heads_b"])


# ---------------- parameters (deterministic synthetic init) ----------------
def init_params(key):
    def nrm(k, shape, scale=0.02):
        return scale * jax.random.normal(k, shape, jnp.float32)

    keys = iter(jax.random.split(key, 8))
    L, H, I = NUM_LAYERS, HIDDEN, INTERMEDIATE

    params = {
        "word_emb": nrm(next(keys), (VOCAB, H)),
        "pos_emb": nrm(next(keys), (MAX_POS, H)),
        "type_emb": nrm(next(keys), (2, H)),
        "emb_ln_g": jnp.ones((1, H), jnp.float32),
        "emb_ln_b": jnp.zeros((1, H), jnp.float32),
        # per-layer weights stacked on the leading axis; MXU weights in bf16
        "wqkv": nrm(next(keys), (L, H, 3 * H)).astype(jnp.bfloat16),
        "bqkv": jnp.zeros((L, 1, 3 * H), jnp.float32),
        "wo": nrm(next(keys), (L, H, H)).astype(jnp.bfloat16),
        "bo": jnp.zeros((L, 1, H), jnp.float32),
        "ln1_g": jnp.ones((L, 1, H), jnp.float32),
        "ln1_b": jnp.zeros((L, 1, H), jnp.float32),
        "wff1": nrm(next(keys), (L, H, I)).astype(jnp.bfloat16),
        "bff1": jnp.zeros((L, 1, I), jnp.float32),
        "wff2": nrm(next(keys), (L, I, H)).astype(jnp.bfloat16),
        "bff2": jnp.zeros((L, 1, H), jnp.float32),
        "ln2_g": jnp.ones((L, 1, H), jnp.float32),
        "ln2_b": jnp.zeros((L, 1, H), jnp.float32),
    }
    # 14 linear heads (13 x 4-way + 1 x 2-way) concatenated column-wise,
    # zero-padded to 128 output lanes (padding columns are sliced off in the wrapper).
    hw = nrm(next(keys), (H, NUM_CLASSES))
    params["heads_w"] = jnp.pad(
        hw, ((0, 0), (0, HEADS_PAD - NUM_CLASSES))).astype(jnp.bfloat16)
    params["heads_b"] = jnp.zeros((1, HEADS_PAD), jnp.float32)
    return params


# ---------------- full forward (== bert_labeler.forward) ----------------
def bert_labeler_forward(params, source_padded, attention_mask):
    B, S = source_padded.shape

    # BERT embeddings (gathers are plain-JAX glue; LayerNorm runs in the kernel).
    tok = jnp.take(params["word_emb"], source_padded, axis=0)        # (B, S, H)
    pos = params["pos_emb"][:S][None, :, :]                          # (1, S, H)
    typ = params["type_emb"][0][None, None, :]                       # token_type_ids = 0
    emb = (tok + pos + typ).astype(jnp.float32).reshape(B * S, HIDDEN)

    # additive attention mask, HF convention: (1 - mask) * -10000,
    # pre-broadcast to the (head*batch, 1, seq) layout used inside the kernel.
    add_mask = (1.0 - attention_mask.astype(jnp.float32)) * -10000.0   # (B, S)
    mask_big = jnp.tile(add_mask[:, None, :], (NUM_HEADS, 1, 1))       # (NH*B, 1, S)

    logits_full = fused_forward(emb, mask_big, params)                 # (B*S, 128)
    # CLS token rows + drop the zero padding columns.
    logits = logits_full.reshape(B, S, HEADS_PAD)[:, 0, :NUM_CLASSES]  # (B, 54)

    out = [logits[:, i * 4:(i + 1) * 4] for i in range(13)]
    out.append(logits[:, 52:54])
    return out


if __name__ == "__main__":
    key = jax.random.PRNGKey(0)
    pkey, ikey = jax.random.split(key)
    params = init_params(pkey)

    source_padded = jax.random.randint(ikey, (BATCH, SEQ), 0, VOCAB, dtype=jnp.int32)
    attention_mask = jnp.ones((BATCH, SEQ), jnp.int32).at[1, SEQ - 4:].set(0)

    fwd = jax.jit(bert_labeler_forward)
    outs = fwd(params, source_padded, attention_mask)
    outs = jax.block_until_ready(outs)

    assert len(outs) == 14
    assert all(o.shape == (BATCH, 4) for o in outs[:13])
    assert outs[13].shape == (BATCH, 2)
    assert all(bool(jnp.all(jnp.isfinite(o))) for o in outs)
    print("KERNEL_OK")
</pallas_src>

<mosaic_0001>
module attributes {stable_mosaic.version = 11 : i64} {
  func.func @fused_bert_kernel(%arg0: i32, %arg1: memref<32x128xf32, #tpu.memory_space<vmem>>, %arg2: memref<8x1x16xf32, #tpu.memory_space<vmem>>, %arg3: memref<1x128xf32, #tpu.memory_space<vmem>>, %arg4: memref<1x128xf32, #tpu.memory_space<vmem>>, %arg5: memref<2x128x384xbf16, #tpu.memory_space<vmem>>, %arg6: memref<2x1x384xf32, #tpu.memory_space<vmem>>, %arg7: memref<2x128x128xbf16, #tpu.memory_space<vmem>>, %arg8: memref<2x1x128xf32, #tpu.memory_space<vmem>>, %arg9: memref<2x1x128xf32, #tpu.memory_space<vmem>>, %arg10: memref<2x1x128xf32, #tpu.memory_space<vmem>>, %arg11: memref<2x128x256xbf16, #tpu.memory_space<vmem>>, %arg12: memref<2x1x256xf32, #tpu.memory_space<vmem>>, %arg13: memref<2x256x128xbf16, #tpu.memory_space<vmem>>, %arg14: memref<2x1x128xf32, #tpu.memory_space<vmem>>, %arg15: memref<2x1x128xf32, #tpu.memory_space<vmem>>, %arg16: memref<2x1x128xf32, #tpu.memory_space<vmem>>, %arg17: memref<128x128xbf16, #tpu.memory_space<vmem>>, %arg18: memref<1x128xf32, #tpu.memory_space<vmem>>, %arg19: memref<32x128xf32, #tpu.memory_space<vmem>>) attributes {dimension_semantics = [#tpu.dimension_semantics<arbitrary>], iteration_bounds = array<i64: 1>, scalar_prefetch = 0 : i64, scratch_operands = 0 : i64, tpu.core_type = #tpu.core_type<tc>, window_params = [{pipeline_mode = #tpu.pipeline_mode<synchronous>, transform_indices = @transform_0, window_bounds = array<i64: 32, 128>}, {pipeline_mode = #tpu.pipeline_mode<synchronous>, transform_indices = @transform_1, window_bounds = array<i64: 8, 1, 16>}, {pipeline_mode = #tpu.pipeline_mode<synchronous>, transform_indices = @transform_2, window_bounds = array<i64: 1, 128>}, {pipeline_mode = #tpu.pipeline_mode<synchronous>, transform_indices = @transform_3, window_bounds = array<i64: 1, 128>}, {pipeline_mode = #tpu.pipeline_mode<synchronous>, transform_indices = @transform_4, window_bounds = array<i64: 2, 128, 384>}, {pipeline_mode = #tpu.pipeline_mode<synchronous>, transform_indices = @transform_5, window_bounds = array<i64: 2, 1, 384>}, {pipeline_mode = #tpu.pipeline_mode<synchronous>, transform_indices = @transform_6, window_bounds = array<i64: 2, 128, 128>}, {pipeline_mode = #tpu.pipeline_mode<synchronous>, transform_indices = @transform_7, window_bounds = array<i64: 2, 1, 128>}, {pipeline_mode = #tpu.pipeline_mode<synchronous>, transform_indices = @transform_8, window_bounds = array<i64: 2, 1, 128>}, {pipeline_mode = #tpu.pipeline_mode<synchronous>, transform_indices = @transform_9, window_bounds = array<i64: 2, 1, 128>}, {pipeline_mode = #tpu.pipeline_mode<synchronous>, transform_indices = @transform_10, window_bounds = array<i64: 2, 128, 256>}, {pipeline_mode = #tpu.pipeline_mode<synchronous>, transform_indices = @transform_11, window_bounds = array<i64: 2, 1, 256>}, {pipeline_mode = #tpu.pipeline_mode<synchronous>, transform_indices = @transform_12, window_bounds = array<i64: 2, 256, 128>}, {pipeline_mode = #tpu.pipeline_mode<synchronous>, transform_indices = @transform_13, window_bounds = array<i64: 2, 1, 128>}, {pipeline_mode = #tpu.pipeline_mode<synchronous>, transform_indices = @transform_14, window_bounds = array<i64: 2, 1, 128>}, {pipeline_mode = #tpu.pipeline_mode<synchronous>, transform_indices = @transform_15, window_bounds = array<i64: 2, 1, 128>}, {pipeline_mode = #tpu.pipeline_mode<synchronous>, transform_indices = @transform_16, window_bounds = array<i64: 128, 128>}, {pipeline_mode = #tpu.pipeline_mode<synchronous>, transform_indices = @transform_17, window_bounds = array<i64: 1, 128>}, {pipeline_mode = #tpu.pipeline_mode<synchronous>, transform_indices = @transform_18, window_bounds = array<i64: 32, 128>}]} {
    %c0 = arith.constant 0 : index
    %c0_0 = arith.constant 0 : index
    %0 = vector.load %arg1[%c0, %c0_0] : memref<32x128xf32, #tpu.memory_space<vmem>>, vector<32x128xf32>
    %c0_1 = arith.constant 0 : index
    %c0_2 = arith.constant 0 : index
    %1 = vector.load %arg3[%c0_1, %c0_2] : memref<1x128xf32, #tpu.memory_space<vmem>>, vector<1x128xf32>
    %c0_3 = arith.constant 0 : index
    %c0_4 = arith.constant 0 : index
    %2 = vector.load %arg4[%c0_3, %c0_4] : memref<1x128xf32, #tpu.memory_space<vmem>>, vector<1x128xf32>
    %cst = arith.constant dense<0.000000e+00> : vector<32xf32>
    %3 = vector.multi_reduction <add>, %0, %cst [1] : vector<32x128xf32> to vector<32xf32>
    %4 = vector.shape_cast %3 : vector<32xf32> to vector<32x1xf32>
    %cst_5 = arith.constant 1.280000e+02 : f32
    %5 = vector.broadcast %cst_5 : f32 to vector<32x1xf32>
    %6 = arith.divf %4, %5 : vector<32x1xf32>
    %7 = vector.broadcast %6 : vector<32x1xf32> to vector<32x128xf32>
    %8 = arith.subf %0, %7 : vector<32x128xf32>
    %9 = arith.mulf %8, %8 : vector<32x128xf32>
    %cst_6 = arith.constant dense<0.000000e+00> : vector<32xf32>
    %10 = vector.multi_reduction <add>, %9, %cst_6 [1] : vector<32x128xf32> to vector<32xf32>
    %11 = vector.shape_cast %10 : vector<32xf32> to vector<32x1xf32>
    %cst_7 = arith.constant 1.280000e+02 : f32
    %12 = vector.broadcast %cst_7 : f32 to vector<32x1xf32>
    %13 = arith.divf %11, %12 : vector<32x1xf32>
    %14 = vector.broadcast %6 : vector<32x1xf32> to vector<32x128xf32>
    %15 = arith.subf %0, %14 : vector<32x128xf32>
    %cst_8 = arith.constant 9.99999996E-13 : f32
    %16 = vector.broadcast %cst_8 : f32 to vector<32x1xf32>
    %17 = arith.addf %13, %16 : vector<32x1xf32>
    %18 = math.rsqrt %17 : vector<32x1xf32>
    %19 = vector.broadcast %18 : vector<32x1xf32> to vector<32x128xf32>
    %20 = arith.mulf %15, %19 : vector<32x128xf32>
    %21 = vector.broadcast %1 : vector<1x128xf32> to vector<32x128xf32>
    %22 = arith.mulf %20, %21 : vector<32x128xf32>
    %23 = vector.broadcast %2 : vector<1x128xf32> to vector<32x128xf32>
    %24 = arith.addf %22, %23 : vector<32x128xf32>
    %c0_9 = arith.constant 0 : index
    %c0_10 = arith.constant 0 : index
    %c0_11 = arith.constant 0 : index
    %25 = vector.load %arg2[%c0_9, %c0_10, %c0_11] : memref<8x1x16xf32, #tpu.memory_space<vmem>>, vector<8x1x16xf32>
    %26 = arith.truncf %24 : vector<32x128xf32> to vector<32x128xbf16>
    %c0_12 = arith.constant 0 : index
    %c0_13 = arith.constant 0 : index
    %c0_14 = arith.constant 0 : index
    %27 = vector.load %arg5[%c0_12, %c0_13, %c0_14] : memref<2x128x384xbf16, #tpu.memory_space<vmem>>, vector<1x128x384xbf16>
    %28 = vector.shape_cast %27 : vector<1x128x384xbf16> to vector<128x384xbf16>
    %cst_15 = arith.constant dense<0.000000e+00> : vector<32x384xf32>
    %29 = tpu.matmul %26, %28, %cst_15 {dimension_numbers = #tpu.dot_dimension_numbers<[1], [0], [0], [1], [0, 0, 1, 1], [], []>} : vector<32x128xbf16>, vector<128x384xbf16>, vector<32x384xf32> -> vector<32x384xf32>
    %c0_16 = arith.constant 0 : index
    %c0_17 = arith.constant 0 : index
    %c0_18 = arith.constant 0 : index
    %30 = vector.load %arg6[%c0_16, %c0_17, %c0_18] : memref<2x1x384xf32, #tpu.memory_space<vmem>>, vector<1x1x384xf32>
    %31 = vector.shape_cast %30 : vector<1x1x384xf32> to vector<1x384xf32>
    %32 = vector.broadcast %31 : vector<1x384xf32> to vector<32x384xf32>
    %33 = arith.addf %29, %32 : vector<32x384xf32>
    %34 = vector.shape_cast %33 : vector<32x384xf32> to vector<2x16x384xf32>
    %35 = vector.extract_strided_slice %34 {offsets = [0, 0, 0], sizes = [2, 16, 32], strides = [1, 1, 1]} : vector<2x16x384xf32> to vector<2x16x32xf32>
    %36 = vector.extract_strided_slice %34 {offsets = [0, 0, 32], sizes = [2, 16, 32], strides = [1, 1, 1]} : vector<2x16x384xf32> to vector<2x16x32xf32>
    %37 = vector.extract_strided_slice %34 {offsets = [0, 0, 64], sizes = [2, 16, 32], strides = [1, 1, 1]} : vector<2x16x384xf32> to vector<2x16x32xf32>
    %38 = vector.extract_strided_slice %34 {offsets = [0, 0, 96], sizes = [2, 16, 32], strides = [1, 1, 1]} : vector<2x16x384xf32> to vector<2x16x32xf32>
    %39 = tpu.concatenate %35, %36, %37, %38 in 0 : vector<2x16x32xf32>, vector<2x16x32xf32>, vector<2x16x32xf32>, vector<2x16x32xf32> -> vector<8x16x32xf32>
    %40 = vector.extract_strided_slice %34 {offsets = [0, 0, 128], sizes = [2, 16, 32], strides = [1, 1, 1]} : vector<2x16x384xf32> to vector<2x16x32xf32>
    %41 = vector.extract_strided_slice %34 {offsets = [0, 0, 160], sizes = [2, 16, 32], strides = [1, 1, 1]} : vector<2x16x384xf32> to vector<2x16x32xf32>
    %42 = vector.extract_strided_slice %34 {offsets = [0, 0, 192], sizes = [2, 16, 32], strides = [1, 1, 1]} : vector<2x16x384xf32> to vector<2x16x32xf32>
    %43 = vector.extract_strided_slice %34 {offsets = [0, 0, 224], sizes = [2, 16, 32], strides = [1, 1, 1]} : vector<2x16x384xf32> to vector<2x16x32xf32>
    %44 = tpu.concatenate %40, %41, %42, %43 in 0 : vector<2x16x32xf32>, vector<2x16x32xf32>, vector<2x16x32xf32>, vector<2x16x32xf32> -> vector<8x16x32xf32>
    %45 = vector.extract_strided_slice %34 {offsets = [0, 0, 256], sizes = [2, 16, 32], strides = [1, 1, 1]} : vector<2x16x384xf32> to vector<2x16x32xf32>
    %46 = vector.extract_strided_slice %34 {offsets = [0, 0, 288], sizes = [2, 16, 32], strides = [1, 1, 1]} : vector<2x16x384xf32> to vector<2x16x32xf32>
    %47 = vector.extract_strided_slice %34 {offsets = [0, 0, 320], sizes = [2, 16, 32], strides = [1, 1, 1]} : vector<2x16x384xf32> to vector<2x16x32xf32>
    %48 = vector.extract_strided_slice %34 {offsets = [0, 0, 352], sizes = [2, 16, 32], strides = [1, 1, 1]} : vector<2x16x384xf32> to vector<2x16x32xf32>
    %49 = tpu.concatenate %45, %46, %47, %48 in 0 : vector<2x16x32xf32>, vector<2x16x32xf32>, vector<2x16x32xf32>, vector<2x16x32xf32> -> vector<8x16x32xf32>
    %50 = arith.truncf %39 : vector<8x16x32xf32> to vector<8x16x32xbf16>
    %51 = arith.truncf %44 : vector<8x16x32xf32> to vector<8x16x32xbf16>
    "tpu.trace_start"() <{level = 10 : i32, message = "bqd,bkd->bqk"}> : () -> ()
    %cst_19 = arith.constant dense<0.000000e+00> : vector<8x16x16xf32>
    %52 = tpu.matmul %50, %51, %cst_19 {dimension_numbers = #tpu.dot_dimension_numbers<[2], [2], [1], [1], [0, 0, 0, 1, 1, 1], [0], [0]>} : vector<8x16x32xbf16>, vector<8x16x32xbf16>, vector<8x16x16xf32> -> vector<8x16x16xf32>
    "tpu.trace_stop"() : () -> ()
    %cst_20 = arith.constant 0.176776692 : f32
    %53 = vector.broadcast %cst_20 : f32 to vector<8x16x16xf32>
    %54 = arith.mulf %52, %53 : vector<8x16x16xf32>
    %55 = vector.broadcast %25 : vector<8x1x16xf32> to vector<8x16x16xf32>
    %56 = arith.addf %54, %55 : vector<8x16x16xf32>
    %cst_21 = arith.constant dense<0xFF800000> : vector<8x16xf32>
    %57 = vector.multi_reduction <maximumf>, %56, %cst_21 [2] : vector<8x16x16xf32> to vector<8x16xf32>
    %58 = vector.shape_cast %57 : vector<8x16xf32> to vector<8x16x1xf32>
    %59 = vector.broadcast %58 : vector<8x16x1xf32> to vector<8x16x16xf32>
    %60 = arith.subf %56, %59 : vector<8x16x16xf32>
    %61 = math.exp %60 : vector<8x16x16xf32>
    %cst_22 = arith.constant dense<0.000000e+00> : vector<8x16xf32>
    %62 = vector.multi_reduction <add>, %61, %cst_22 [2] : vector<8x16x16xf32> to vector<8x16xf32>
    %63 = vector.shape_cast %62 : vector<8x16xf32> to vector<8x16x1xf32>
    %64 = tpu.reciprocal %63 {approx = true} : vector<8x16x1xf32> -> vector<8x16x1xf32>
    %65 = vector.broadcast %64 : vector<8x16x1xf32> to vector<8x16x16xf32>
    %66 = arith.mulf %61, %65 : vector<8x16x16xf32>
    %67 = arith.truncf %66 : vector<8x16x16xf32> to vector<8x16x16xbf16>
    %68 = arith.truncf %49 : vector<8x16x32xf32> to vector<8x16x32xbf16>
    "tpu.trace_start"() <{level = 10 : i32, message = "bqk,bkd->bqd"}> : () -> ()
    %cst_23 = arith.constant dense<0.000000e+00> : vector<8x16x32xf32>
    %69 = tpu.matmul %67, %68, %cst_23 {dimension_numbers = #tpu.dot_dimension_numbers<[2], [1], [1], [2], [0, 0, 0, 1, 1, 2], [0], [0]>} : vector<8x16x16xbf16>, vector<8x16x32xbf16>, vector<8x16x32xf32> -> vector<8x16x32xf32>
    "tpu.trace_stop"() : () -> ()
    %70 = vector.extract_strided_slice %69 {offsets = [0, 0, 0], sizes = [2, 16, 32], strides = [1, 1, 1]} : vector<8x16x32xf32> to vector<2x16x32xf32>
    %71 = vector.extract_strided_slice %69 {offsets = [2, 0, 0], sizes = [2, 16, 32], strides = [1, 1, 1]} : vector<8x16x32xf32> to vector<2x16x32xf32>
    %72 = vector.extract_strided_slice %69 {offsets = [4, 0, 0], sizes = [2, 16, 32], strides = [1, 1, 1]} : vector<8x16x32xf32> to vector<2x16x32xf32>
    %73 = vector.extract_strided_slice %69 {offsets = [6, 0, 0], sizes = [2, 16, 32], strides = [1, 1, 1]} : vector<8x16x32xf32> to vector<2x16x32xf32>
    %74 = tpu.concatenate %70, %71, %72, %73 in 2 : vector<2x16x32xf32>, vector<2x16x32xf32>, vector<2x16x32xf32>, vector<2x16x32xf32> -> vector<2x16x128xf32>
    %75 = vector.shape_cast %74 : vector<2x16x128xf32> to vector<32x128xf32>
    %76 = arith.truncf %75 : vector<32x128xf32> to vector<32x128xbf16>
    %c0_24 = arith.constant 0 : index
    %c0_25 = arith.constant 0 : index
    %c0_26 = arith.constant 0 : index
    %77 = vector.load %arg7[%c0_24, %c0_25, %c0_26] : memref<2x128x128xbf16, #tpu.memory_space<vmem>>, vector<1x128x128xbf16>
    %78 = vector.shape_cast %77 : vector<1x128x128xbf16> to vector<128x128xbf16>
    %cst_27 = arith.constant dense<0.000000e+00> : vector<32x128xf32>
    %79 = tpu.matmul %76, %78, %cst_27 {dimension_numbers = #tpu.dot_dimension_numbers<[1], [0], [0], [1], [0, 0, 1, 1], [], []>} : vector<32x128xbf16>, vector<128x128xbf16>, vector<32x128xf32> -> vector<32x128xf32>
    %c0_28 = arith.constant 0 : index
    %c0_29 = arith.constant 0 : index
    %c0_30 = arith.constant 0 : index
    %80 = vector.load %arg8[%c0_28, %c0_29, %c0_30] : memref<2x1x128xf32, #tpu.memory_space<vmem>>, vector<1x1x128xf32>
    %81 = vector.shape_cast %80 : vector<1x1x128xf32> to vector<1x128xf32>
    %82 = vector.broadcast %81 : vector<1x128xf32> to vector<32x128xf32>
    %83 = arith.addf %79, %82 : vector<32x128xf32>
    %84 = arith.addf %24, %83 : vector<32x128xf32>
    %c0_31 = arith.constant 0 : index
    %c0_32 = arith.constant 0 : index
    %c0_33 = arith.constant 0 : index
    %85 = vector.load %arg9[%c0_31, %c0_32, %c0_33] : memref<2x1x128xf32, #tpu.memory_space<vmem>>, vector<1x1x128xf32>
    %86 = vector.shape_cast %85 : vector<1x1x128xf32> to vector<1x128xf32>
    %c0_34 = arith.constant 0 : index
    %c0_35 = arith.constant 0 : index
    %c0_36 = arith.constant 0 : index
    %87 = vector.load %arg10[%c0_34, %c0_35, %c0_36] : memref<2x1x128xf32, #tpu.memory_space<vmem>>, vector<1x1x128xf32>
    %88 = vector.shape_cast %87 : vector<1x1x128xf32> to vector<1x128xf32>
    %cst_37 = arith.constant dense<0.000000e+00> : vector<32xf32>
    %89 = vector.multi_reduction <add>, %84, %cst_37 [1] : vector<32x128xf32> to vector<32xf32>
    %90 = vector.shape_cast %89 : vector<32xf32> to vector<32x1xf32>
    %cst_38 = arith.constant 1.280000e+02 : f32
    %91 = vector.broadcast %cst_38 : f32 to vector<32x1xf32>
    %92 = arith.divf %90, %91 : vector<32x1xf32>
    %93 = vector.broadcast %92 : vector<32x1xf32> to vector<32x128xf32>
    %94 = arith.subf %84, %93 : vector<32x128xf32>
    %95 = arith.mulf %94, %94 : vector<32x128xf32>
    %cst_39 = arith.constant dense<0.000000e+00> : vector<32xf32>
    %96 = vector.multi_reduction <add>, %95, %cst_39 [1] : vector<32x128xf32> to vector<32xf32>
    %97 = vector.shape_cast %96 : vector<32xf32> to vector<32x1xf32>
    %cst_40 = arith.constant 1.280000e+02 : f32
    %98 = vector.broadcast %cst_40 : f32 to vector<32x1xf32>
    %99 = arith.divf %97, %98 : vector<32x1xf32>
    %100 = vector.broadcast %92 : vector<32x1xf32> to vector<32x128xf32>
    %101 = arith.subf %84, %100 : vector<32x128xf32>
    %cst_41 = arith.constant 9.99999996E-13 : f32
    %102 = vector.broadcast %cst_41 : f32 to vector<32x1xf32>
    %103 = arith.addf %99, %102 : vector<32x1xf32>
    %104 = math.rsqrt %103 : vector<32x1xf32>
    %105 = vector.broadcast %104 : vector<32x1xf32> to vector<32x128xf32>
    %106 = arith.mulf %101, %105 : vector<32x128xf32>
    %107 = vector.broadcast %86 : vector<1x128xf32> to vector<32x128xf32>
    %108 = arith.mulf %106, %107 : vector<32x128xf32>
    %109 = vector.broadcast %88 : vector<1x128xf32> to vector<32x128xf32>
    %110 = arith.addf %108, %109 : vector<32x128xf32>
    %111 = arith.truncf %110 : vector<32x128xf32> to vector<32x128xbf16>
    %c0_42 = arith.constant 0 : index
    %c0_43 = arith.constant 0 : index
    %c0_44 = arith.constant 0 : index
    %112 = vector.load %arg11[%c0_42, %c0_43, %c0_44] : memref<2x128x256xbf16, #tpu.memory_space<vmem>>, vector<1x128x256xbf16>
    %113 = vector.shape_cast %112 : vector<1x128x256xbf16> to vector<128x256xbf16>
    %cst_45 = arith.constant dense<0.000000e+00> : vector<32x256xf32>
    %114 = tpu.matmul %111, %113, %cst_45 {dimension_numbers = #tpu.dot_dimension_numbers<[1], [0], [0], [1], [0, 0, 1, 1], [], []>} : vector<32x128xbf16>, vector<128x256xbf16>, vector<32x256xf32> -> vector<32x256xf32>
    %c0_46 = arith.constant 0 : index
    %c0_47 = arith.constant 0 : index
    %c0_48 = arith.constant 0 : index
    %115 = vector.load %arg12[%c0_46, %c0_47, %c0_48] : memref<2x1x256xf32, #tpu.memory_space<vmem>>, vector<1x1x256xf32>
    %116 = vector.shape_cast %115 : vector<1x1x256xf32> to vector<1x256xf32>
    %117 = vector.broadcast %116 : vector<1x256xf32> to vector<32x256xf32>
    %118 = arith.addf %114, %117 : vector<32x256xf32>
    %119 = arith.mulf %118, %118 : vector<32x256xf32>
    %120 = arith.mulf %118, %119 : vector<32x256xf32>
    %cst_49 = arith.constant 4.471500e-02 : f32
    %121 = vector.broadcast %cst_49 : f32 to vector<32x256xf32>
    %122 = arith.mulf %121, %120 : vector<32x256xf32>
    %123 = arith.addf %118, %122 : vector<32x256xf32>
    %cst_50 = arith.constant 0.797884583 : f32
    %124 = vector.broadcast %cst_50 : f32 to vector<32x256xf32>
    %125 = arith.mulf %124, %123 : vector<32x256xf32>
    %126 = math.tanh %125 : vector<32x256xf32>
    %cst_51 = arith.constant 1.000000e+00 : f32
    %127 = vector.broadcast %cst_51 : f32 to vector<32x256xf32>
    %128 = arith.addf %127, %126 : vector<32x256xf32>
    %cst_52 = arith.constant 5.000000e-01 : f32
    %129 = vector.broadcast %cst_52 : f32 to vector<32x256xf32>
    %130 = arith.mulf %129, %128 : vector<32x256xf32>
    %131 = arith.mulf %118, %130 : vector<32x256xf32>
    %132 = arith.truncf %131 : vector<32x256xf32> to vector<32x256xbf16>
    %c0_53 = arith.constant 0 : index
    %c0_54 = arith.constant 0 : index
    %c0_55 = arith.constant 0 : index
    %133 = vector.load %arg13[%c0_53, %c0_54, %c0_55] : memref<2x256x128xbf16, #tpu.memory_space<vmem>>, vector<1x256x128xbf16>
    %134 = vector.shape_cast %133 : vector<1x256x128xbf16> to vector<256x128xbf16>
    %cst_56 = arith.constant dense<0.000000e+00> : vector<32x128xf32>
    %135 = tpu.matmul %132, %134, %cst_56 {dimension_numbers = #tpu.dot_dimension_numbers<[1], [0], [0], [1], [0, 0, 1, 1], [], []>} : vector<32x256xbf16>, vector<256x128xbf16>, vector<32x128xf32> -> vector<32x128xf32>
    %c0_57 = arith.constant 0 : index
    %c0_58 = arith.constant 0 : index
    %c0_59 = arith.constant 0 : index
    %136 = vector.load %arg14[%c0_57, %c0_58, %c0_59] : memref<2x1x128xf32, #tpu.memory_space<vmem>>, vector<1x1x128xf32>
    %137 = vector.shape_cast %136 : vector<1x1x128xf32> to vector<1x128xf32>
    %138 = vector.broadcast %137 : vector<1x128xf32> to vector<32x128xf32>
    %139 = arith.addf %135, %138 : vector<32x128xf32>
    %140 = arith.addf %110, %139 : vector<32x128xf32>
    %c0_60 = arith.constant 0 : index
    %c0_61 = arith.constant 0 : index
    %c0_62 = arith.constant 0 : index
    %141 = vector.load %arg15[%c0_60, %c0_61, %c0_62] : memref<2x1x128xf32, #tpu.memory_space<vmem>>, vector<1x1x128xf32>
    %142 = vector.shape_cast %141 : vector<1x1x128xf32> to vector<1x128xf32>
    %c0_63 = arith.constant 0 : index
    %c0_64 = arith.constant 0 : index
    %c0_65 = arith.constant 0 : index
    %143 = vector.load %arg16[%c0_63, %c0_64, %c0_65] : memref<2x1x128xf32, #tpu.memory_space<vmem>>, vector<1x1x128xf32>
    %144 = vector.shape_cast %143 : vector<1x1x128xf32> to vector<1x128xf32>
    %cst_66 = arith.constant dense<0.000000e+00> : vector<32xf32>
    %145 = vector.multi_reduction <add>, %140, %cst_66 [1] : vector<32x128xf32> to vector<32xf32>
    %146 = vector.shape_cast %145 : vector<32xf32> to vector<32x1xf32>
    %cst_67 = arith.constant 1.280000e+02 : f32
    %147 = vector.broadcast %cst_67 : f32 to vector<32x1xf32>
    %148 = arith.divf %146, %147 : vector<32x1xf32>
    %149 = vector.broadcast %148 : vector<32x1xf32> to vector<32x128xf32>
    %150 = arith.subf %140, %149 : vector<32x128xf32>
    %151 = arith.mulf %150, %150 : vector<32x128xf32>
    %cst_68 = arith.constant dense<0.000000e+00> : vector<32xf32>
    %152 = vector.multi_reduction <add>, %151, %cst_68 [1] : vector<32x128xf32> to vector<32xf32>
    %153 = vector.shape_cast %152 : vector<32xf32> to vector<32x1xf32>
    %cst_69 = arith.constant 1.280000e+02 : f32
    %154 = vector.broadcast %cst_69 : f32 to vector<32x1xf32>
    %155 = arith.divf %153, %154 : vector<32x1xf32>
    %156 = vector.broadcast %148 : vector<32x1xf32> to vector<32x128xf32>
    %157 = arith.subf %140, %156 : vector<32x128xf32>
    %cst_70 = arith.constant 9.99999996E-13 : f32
    %158 = vector.broadcast %cst_70 : f32 to vector<32x1xf32>
    %159 = arith.addf %155, %158 : vector<32x1xf32>
    %160 = math.rsqrt %159 : vector<32x1xf32>
    %161 = vector.broadcast %160 : vector<32x1xf32> to vector<32x128xf32>
    %162 = arith.mulf %157, %161 : vector<32x128xf32>
    %163 = vector.broadcast %142 : vector<1x128xf32> to vector<32x128xf32>
    %164 = arith.mulf %162, %163 : vector<32x128xf32>
    %165 = vector.broadcast %144 : vector<1x128xf32> to vector<32x128xf32>
    %166 = arith.addf %164, %165 : vector<32x128xf32>
    %167 = arith.truncf %166 : vector<32x128xf32> to vector<32x128xbf16>
    %c1 = arith.constant 1 : index
    %c0_71 = arith.constant 0 : index
    %c0_72 = arith.constant 0 : index
    %168 = vector.load %arg5[%c1, %c0_71, %c0_72] : memref<2x128x384xbf16, #tpu.memory_space<vmem>>, vector<1x128x384xbf16>
    %169 = vector.shape_cast %168 : vector<1x128x384xbf16> to vector<128x384xbf16>
    %cst_73 = arith.constant dense<0.000000e+00> : vector<32x384xf32>
    %170 = tpu.matmul %167, %169, %cst_73 {dimension_numbers = #tpu.dot_dimension_numbers<[1], [0], [0], [1], [0, 0, 1, 1], [], []>} : vector<32x128xbf16>, vector<128x384xbf16>, vector<32x384xf32> -> vector<32x384xf32>
    %c1_74 = arith.constant 1 : index
    %c0_75 = arith.constant 0 : index
    %c0_76 = arith.constant 0 : index
    %171 = vector.load %arg6[%c1_74, %c0_75, %c0_76] : memref<2x1x384xf32, #tpu.memory_space<vmem>>, vector<1x1x384xf32>
    %172 = vector.shape_cast %171 : vector<1x1x384xf32> to vector<1x384xf32>
    %173 = vector.broadcast %172 : vector<1x384xf32> to vector<32x384xf32>
    %174 = arith.addf %170, %173 : vector<32x384xf32>
    %175 = vector.shape_cast %174 : vector<32x384xf32> to vector<2x16x384xf32>
    %176 = vector.extract_strided_slice %175 {offsets = [0, 0, 0], sizes = [2, 16, 32], strides = [1, 1, 1]} : vector<2x16x384xf32> to vector<2x16x32xf32>
    %177 = vector.extract_strided_slice %175 {offsets = [0, 0, 32], sizes = [2, 16, 32], strides = [1, 1, 1]} : vector<2x16x384xf32> to vector<2x16x32xf32>
    %178 = vector.extract_strided_slice %175 {offsets = [0, 0, 64], sizes = [2, 16, 32], strides = [1, 1, 1]} : vector<2x16x384xf32> to vector<2x16x32xf32>
    %179 = vector.extract_strided_slice %175 {offsets = [0, 0, 96], sizes = [2, 16, 32], strides = [1, 1, 1]} : vector<2x16x384xf32> to vector<2x16x32xf32>
    %180 = tpu.concatenate %176, %177, %178, %179 in 0 : vector<2x16x32xf32>, vector<2x16x32xf32>, vector<2x16x32xf32>, vector<2x16x32xf32> -> vector<8x16x32xf32>
    %181 = vector.extract_strided_slice %175 {offsets = [0, 0, 128], sizes = [2, 16, 32], strides = [1, 1, 1]} : vector<2x16x384xf32> to vector<2x16x32xf32>
    %182 = vector.extract_strided_slice %175 {offsets = [0, 0, 160], sizes = [2, 16, 32], strides = [1, 1, 1]} : vector<2x16x384xf32> to vector<2x16x32xf32>
    %183 = vector.extract_strided_slice %175 {offsets = [0, 0, 192], sizes = [2, 16, 32], strides = [1, 1, 1]} : vector<2x16x384xf32> to vector<2x16x32xf32>
    %184 = vector.extract_strided_slice %175 {offsets = [0, 0, 224], sizes = [2, 16, 32], strides = [1, 1, 1]} : vector<2x16x384xf32> to vector<2x16x32xf32>
    %185 = tpu.concatenate %181, %182, %183, %184 in 0 : vector<2x16x32xf32>, vector<2x16x32xf32>, vector<2x16x32xf32>, vector<2x16x32xf32> -> vector<8x16x32xf32>
    %186 = vector.extract_strided_slice %175 {offsets = [0, 0, 256], sizes = [2, 16, 32], strides = [1, 1, 1]} : vector<2x16x384xf32> to vector<2x16x32xf32>
    %187 = vector.extract_strided_slice %175 {offsets = [0, 0, 288], sizes = [2, 16, 32], strides = [1, 1, 1]} : vector<2x16x384xf32> to vector<2x16x32xf32>
    %188 = vector.extract_strided_slice %175 {offsets = [0, 0, 320], sizes = [2, 16, 32], strides = [1, 1, 1]} : vector<2x16x384xf32> to vector<2x16x32xf32>
    %189 = vector.extract_strided_slice %175 {offsets = [0, 0, 352], sizes = [2, 16, 32], strides = [1, 1, 1]} : vector<2x16x384xf32> to vector<2x16x32xf32>
    %190 = tpu.concatenate %186, %187, %188, %189 in 0 : vector<2x16x32xf32>, vector<2x16x32xf32>, vector<2x16x32xf32>, vector<2x16x32xf32> -> vector<8x16x32xf32>
    %191 = arith.truncf %180 : vector<8x16x32xf32> to vector<8x16x32xbf16>
    %192 = arith.truncf %185 : vector<8x16x32xf32> to vector<8x16x32xbf16>
    "tpu.trace_start"() <{level = 10 : i32, message = "bqd,bkd->bqk"}> : () -> ()
    %cst_77 = arith.constant dense<0.000000e+00> : vector<8x16x16xf32>
    %193 = tpu.matmul %191, %192, %cst_77 {dimension_numbers = #tpu.dot_dimension_numbers<[2], [2], [1], [1], [0, 0, 0, 1, 1, 1], [0], [0]>} : vector<8x16x32xbf16>, vector<8x16x32xbf16>, vector<8x16x16xf32> -> vector<8x16x16xf32>
    "tpu.trace_stop"() : () -> ()
    %cst_78 = arith.constant 0.176776692 : f32
    %194 = vector.broadcast %cst_78 : f32 to vector<8x16x16xf32>
    %195 = arith.mulf %193, %194 : vector<8x16x16xf32>
    %196 = vector.broadcast %25 : vector<8x1x16xf32> to vector<8x16x16xf32>
    %197 = arith.addf %195, %196 : vector<8x16x16xf32>
    %cst_79 = arith.constant dense<0xFF800000> : vector<8x16xf32>
    %198 = vector.multi_reduction <maximumf>, %197, %cst_79 [2] : vector<8x16x16xf32> to vector<8x16xf32>
    %199 = vector.shape_cast %198 : vector<8x16xf32> to vector<8x16x1xf32>
    %200 = vector.broadcast %199 : vector<8x16x1xf32> to vector<8x16x16xf32>
    %201 = arith.subf %197, %200 : vector<8x16x16xf32>
    %202 = math.exp %201 : vector<8x16x16xf32>
    %cst_80 = arith.constant dense<0.000000e+00> : vector<8x16xf32>
    %203 = vector.multi_reduction <add>, %202, %cst_80 [2] : vector<8x16x16xf32> to vector<8x16xf32>
    %204 = vector.shape_cast %203 : vector<8x16xf32> to vector<8x16x1xf32>
    %205 = tpu.reciprocal %204 {approx = true} : vector<8x16x1xf32> -> vector<8x16x1xf32>
    %206 = vector.broadcast %205 : vector<8x16x1xf32> to vector<8x16x16xf32>
    %207 = arith.mulf %202, %206 : vector<8x16x16xf32>
    %208 = arith.truncf %207 : vector<8x16x16xf32> to vector<8x16x16xbf16>
    %209 = arith.truncf %190 : vector<8x16x32xf32> to vector<8x16x32xbf16>
    "tpu.trace_start"() <{level = 10 : i32, message = "bqk,bkd->bqd"}> : () -> ()
    %cst_81 = arith.constant dense<0.000000e+00> : vector<8x16x32xf32>
    %210 = tpu.matmul %208, %209, %cst_81 {dimension_numbers = #tpu.dot_dimension_numbers<[2], [1], [1], [2], [0, 0, 0, 1, 1, 2], [0], [0]>} : vector<8x16x16xbf16>, vector<8x16x32xbf16>, vector<8x16x32xf32> -> vector<8x16x32xf32>
    "tpu.trace_stop"() : () -> ()
    %211 = vector.extract_strided_slice %210 {offsets = [0, 0, 0], sizes = [2, 16, 32], strides = [1, 1, 1]} : vector<8x16x32xf32> to vector<2x16x32xf32>
    %212 = vector.extract_strided_slice %210 {offsets = [2, 0, 0], sizes = [2, 16, 32], strides = [1, 1, 1]} : vector<8x16x32xf32> to vector<2x16x32xf32>
    %213 = vector.extract_strided_slice %210 {offsets = [4, 0, 0], sizes = [2, 16, 32], strides = [1, 1, 1]} : vector<8x16x32xf32> to vector<2x16x32xf32>
    %214 = vector.extract_strided_slice %210 {offsets = [6, 0, 0], sizes = [2, 16, 32], strides = [1, 1, 1]} : vector<8x16x32xf32> to vector<2x16x32xf32>
    %215 = tpu.concatenate %211, %212, %213, %214 in 2 : vector<2x16x32xf32>, vector<2x16x32xf32>, vector<2x16x32xf32>, vector<2x16x32xf32> -> vector<2x16x128xf32>
    %216 = vector.shape_cast %215 : vector<2x16x128xf32> to vector<32x128xf32>
    %217 = arith.truncf %216 : vector<32x128xf32> to vector<32x128xbf16>
    %c1_82 = arith.constant 1 : index
    %c0_83 = arith.constant 0 : index
    %c0_84 = arith.constant 0 : index
    %218 = vector.load %arg7[%c1_82, %c0_83, %c0_84] : memref<2x128x128xbf16, #tpu.memory_space<vmem>>, vector<1x128x128xbf16>
    %219 = vector.shape_cast %218 : vector<1x128x128xbf16> to vector<128x128xbf16>
    %cst_85 = arith.constant dense<0.000000e+00> : vector<32x128xf32>
    %220 = tpu.matmul %217, %219, %cst_85 {dimension_numbers = #tpu.dot_dimension_numbers<[1], [0], [0], [1], [0, 0, 1, 1], [], []>} : vector<32x128xbf16>, vector<128x128xbf16>, vector<32x128xf32> -> vector<32x128xf32>
    %c1_86 = arith.constant 1 : index
    %c0_87 = arith.constant 0 : index
    %c0_88 = arith.constant 0 : index
    %221 = vector.load %arg8[%c1_86, %c0_87, %c0_88] : memref<2x1x128xf32, #tpu.memory_space<vmem>>, vector<1x1x128xf32>
    %222 = vector.shape_cast %221 : vector<1x1x128xf32> to vector<1x128xf32>
    %223 = vector.broadcast %222 : vector<1x128xf32> to vector<32x128xf32>
    %224 = arith.addf %220, %223 : vector<32x128xf32>
    %225 = arith.addf %166, %224 : vector<32x128xf32>
    %c1_89 = arith.constant 1 : index
    %c0_90 = arith.constant 0 : index
    %c0_91 = arith.constant 0 : index
    %226 = vector.load %arg9[%c1_89, %c0_90, %c0_91] : memref<2x1x128xf32, #tpu.memory_space<vmem>>, vector<1x1x128xf32>
    %227 = vector.shape_cast %226 : vector<1x1x128xf32> to vector<1x128xf32>
    %c1_92 = arith.constant 1 : index
    %c0_93 = arith.constant 0 : index
    %c0_94 = arith.constant 0 : index
    %228 = vector.load %arg10[%c1_92, %c0_93, %c0_94] : memref<2x1x128xf32, #tpu.memory_space<vmem>>, vector<1x1x128xf32>
    %229 = vector.shape_cast %228 : vector<1x1x128xf32> to vector<1x128xf32>
    %cst_95 = arith.constant dense<0.000000e+00> : vector<32xf32>
    %230 = vector.multi_reduction <add>, %225, %cst_95 [1] : vector<32x128xf32> to vector<32xf32>
    %231 = vector.shape_cast %230 : vector<32xf32> to vector<32x1xf32>
    %cst_96 = arith.constant 1.280000e+02 : f32
    %232 = vector.broadcast %cst_96 : f32 to vector<32x1xf32>
    %233 = arith.divf %231, %232 : vector<32x1xf32>
    %234 = vector.broadcast %233 : vector<32x1xf32> to vector<32x128xf32>
    %235 = arith.subf %225, %234 : vector<32x128xf32>
    %236 = arith.mulf %235, %235 : vector<32x128xf32>
    %cst_97 = arith.constant dense<0.000000e+00> : vector<32xf32>
    %237 = vector.multi_reduction <add>, %236, %cst_97 [1] : vector<32x128xf32> to vector<32xf32>
    %238 = vector.shape_cast %237 : vector<32xf32> to vector<32x1xf32>
    %cst_98 = arith.constant 1.280000e+02 : f32
    %239 = vector.broadcast %cst_98 : f32 to vector<32x1xf32>
    %240 = arith.divf %238, %239 : vector<32x1xf32>
    %241 = vector.broadcast %233 : vector<32x1xf32> to vector<32x128xf32>
    %242 = arith.subf %225, %241 : vector<32x128xf32>
    %cst_99 = arith.constant 9.99999996E-13 : f32
    %243 = vector.broadcast %cst_99 : f32 to vector<32x1xf32>
    %244 = arith.addf %240, %243 : vector<32x1xf32>
    %245 = math.rsqrt %244 : vector<32x1xf32>
    %246 = vector.broadcast %245 : vector<32x1xf32> to vector<32x128xf32>
    %247 = arith.mulf %242, %246 : vector<32x128xf32>
    %248 = vector.broadcast %227 : vector<1x128xf32> to vector<32x128xf32>
    %249 = arith.mulf %247, %248 : vector<32x128xf32>
    %250 = vector.broadcast %229 : vector<1x128xf32> to vector<32x128xf32>
    %251 = arith.addf %249, %250 : vector<32x128xf32>
    %252 = arith.truncf %251 : vector<32x128xf32> to vector<32x128xbf16>
    %c1_100 = arith.constant 1 : index
    %c0_101 = arith.constant 0 : index
    %c0_102 = arith.constant 0 : index
    %253 = vector.load %arg11[%c1_100, %c0_101, %c0_102] : memref<2x128x256xbf16, #tpu.memory_space<vmem>>, vector<1x128x256xbf16>
    %254 = vector.shape_cast %253 : vector<1x128x256xbf16> to vector<128x256xbf16>
    %cst_103 = arith.constant dense<0.000000e+00> : vector<32x256xf32>
    %255 = tpu.matmul %252, %254, %cst_103 {dimension_numbers = #tpu.dot_dimension_numbers<[1], [0], [0], [1], [0, 0, 1, 1], [], []>} : vector<32x128xbf16>, vector<128x256xbf16>, vector<32x256xf32> -> vector<32x256xf32>
    %c1_104 = arith.constant 1 : index
    %c0_105 = arith.constant 0 : index
    %c0_106 = arith.constant 0 : index
    %256 = vector.load %arg12[%c1_104, %c0_105, %c0_106] : memref<2x1x256xf32, #tpu.memory_space<vmem>>, vector<1x1x256xf32>
    %257 = vector.shape_cast %256 : vector<1x1x256xf32> to vector<1x256xf32>
    %258 = vector.broadcast %257 : vector<1x256xf32> to vector<32x256xf32>
    %259 = arith.addf %255, %258 : vector<32x256xf32>
    %260 = arith.mulf %259, %259 : vector<32x256xf32>
    %261 = arith.mulf %259, %260 : vector<32x256xf32>
    %cst_107 = arith.constant 4.471500e-02 : f32
    %262 = vector.broadcast %cst_107 : f32 to vector<32x256xf32>
    %263 = arith.mulf %262, %261 : vector<32x256xf32>
    %264 = arith.addf %259, %263 : vector<32x256xf32>
    %cst_108 = arith.constant 0.797884583 : f32
    %265 = vector.broadcast %cst_108 : f32 to vector<32x256xf32>
    %266 = arith.mulf %265, %264 : vector<32x256xf32>
    %267 = math.tanh %266 : vector<32x256xf32>
    %cst_109 = arith.constant 1.000000e+00 : f32
    %268 = vector.broadcast %cst_109 : f32 to vector<32x256xf32>
    %269 = arith.addf %268, %267 : vector<32x256xf32>
    %cst_110 = arith.constant 5.000000e-01 : f32
    %270 = vector.broadcast %cst_110 : f32 to vector<32x256xf32>
    %271 = arith.mulf %270, %269 : vector<32x256xf32>
    %272 = arith.mulf %259, %271 : vector<32x256xf32>
    %273 = arith.truncf %272 : vector<32x256xf32> to vector<32x256xbf16>
    %c1_111 = arith.constant 1 : index
    %c0_112 = arith.constant 0 : index
    %c0_113 = arith.constant 0 : index
    %274 = vector.load %arg13[%c1_111, %c0_112, %c0_113] : memref<2x256x128xbf16, #tpu.memory_space<vmem>>, vector<1x256x128xbf16>
    %275 = vector.shape_cast %274 : vector<1x256x128xbf16> to vector<256x128xbf16>
    %cst_114 = arith.constant dense<0.000000e+00> : vector<32x128xf32>
    %276 = tpu.matmul %273, %275, %cst_114 {dimension_numbers = #tpu.dot_dimension_numbers<[1], [0], [0], [1], [0, 0, 1, 1], [], []>} : vector<32x256xbf16>, vector<256x128xbf16>, vector<32x128xf32> -> vector<32x128xf32>
    %c1_115 = arith.constant 1 : index
    %c0_116 = arith.constant 0 : index
    %c0_117 = arith.constant 0 : index
    %277 = vector.load %arg14[%c1_115, %c0_116, %c0_117] : memref<2x1x128xf32, #tpu.memory_space<vmem>>, vector<1x1x128xf32>
    %278 = vector.shape_cast %277 : vector<1x1x128xf32> to vector<1x128xf32>
    %279 = vector.broadcast %278 : vector<1x128xf32> to vector<32x128xf32>
    %280 = arith.addf %276, %279 : vector<32x128xf32>
    %281 = arith.addf %251, %280 : vector<32x128xf32>
    %c1_118 = arith.constant 1 : index
    %c0_119 = arith.constant 0 : index
    %c0_120 = arith.constant 0 : index
    %282 = vector.load %arg15[%c1_118, %c0_119, %c0_120] : memref<2x1x128xf32, #tpu.memory_space<vmem>>, vector<1x1x128xf32>
    %283 = vector.shape_cast %282 : vector<1x1x128xf32> to vector<1x128xf32>
    %c1_121 = arith.constant 1 : index
    %c0_122 = arith.constant 0 : index
    %c0_123 = arith.constant 0 : index
    %284 = vector.load %arg16[%c1_121, %c0_122, %c0_123] : memref<2x1x128xf32, #tpu.memory_space<vmem>>, vector<1x1x128xf32>
    %285 = vector.shape_cast %284 : vector<1x1x128xf32> to vector<1x128xf32>
    %cst_124 = arith.constant dense<0.000000e+00> : vector<32xf32>
    %286 = vector.multi_reduction <add>, %281, %cst_124 [1] : vector<32x128xf32> to vector<32xf32>
    %287 = vector.shape_cast %286 : vector<32xf32> to vector<32x1xf32>
    %cst_125 = arith.constant 1.280000e+02 : f32
    %288 = vector.broadcast %cst_125 : f32 to vector<32x1xf32>
    %289 = arith.divf %287, %288 : vector<32x1xf32>
    %290 = vector.broadcast %289 : vector<32x1xf32> to vector<32x128xf32>
    %291 = arith.subf %281, %290 : vector<32x128xf32>
    %292 = arith.mulf %291, %291 : vector<32x128xf32>
    %cst_126 = arith.constant dense<0.000000e+00> : vector<32xf32>
    %293 = vector.multi_reduction <add>, %292, %cst_126 [1] : vector<32x128xf32> to vector<32xf32>
    %294 = vector.shape_cast %293 : vector<32xf32> to vector<32x1xf32>
    %cst_127 = arith.constant 1.280000e+02 : f32
    %295 = vector.broadcast %cst_127 : f32 to vector<32x1xf32>
    %296 = arith.divf %294, %295 : vector<32x1xf32>
    %297 = vector.broadcast %289 : vector<32x1xf32> to vector<32x128xf32>
    %298 = arith.subf %281, %297 : vector<32x128xf32>
    %cst_128 = arith.constant 9.99999996E-13 : f32
    %299 = vector.broadcast %cst_128 : f32 to vector<32x1xf32>
    %300 = arith.addf %296, %299 : vector<32x1xf32>
    %301 = math.rsqrt %300 : vector<32x1xf32>
    %302 = vector.broadcast %301 : vector<32x1xf32> to vector<32x128xf32>
    %303 = arith.mulf %298, %302 : vector<32x128xf32>
    %304 = vector.broadcast %283 : vector<1x128xf32> to vector<32x128xf32>
    %305 = arith.mulf %303, %304 : vector<32x128xf32>
    %306 = vector.broadcast %285 : vector<1x128xf32> to vector<32x128xf32>
    %307 = arith.addf %305, %306 : vector<32x128xf32>
    %308 = arith.truncf %307 : vector<32x128xf32> to vector<32x128xbf16>
    %c0_129 = arith.constant 0 : index
    %c0_130 = arith.constant 0 : index
    %309 = vector.load %arg17[%c0_129, %c0_130] : memref<128x128xbf16, #tpu.memory_space<vmem>>, vector<128x128xbf16>
    %cst_131 = arith.constant dense<0.000000e+00> : vector<32x128xf32>
    %310 = tpu.matmul %308, %309, %cst_131 {dimension_numbers = #tpu.dot_dimension_numbers<[1], [0], [0], [1], [0, 0, 1, 1], [], []>} : vector<32x128xbf16>, vector<128x128xbf16>, vector<32x128xf32> -> vector<32x128xf32>
    %c0_132 = arith.constant 0 : index
    %c0_133 = arith.constant 0 : index
    %311 = vector.load %arg18[%c0_132, %c0_133] : memref<1x128xf32, #tpu.memory_space<vmem>>, vector<1x128xf32>
    %312 = vector.broadcast %311 : vector<1x128xf32> to vector<32x128xf32>
    %313 = arith.addf %310, %312 : vector<32x128xf32>
    %c0_134 = arith.constant 0 : index
    %c0_135 = arith.constant 0 : index
    %314 = vector.load %arg19[%c0_134, %c0_135] : memref<32x128xf32, #tpu.memory_space<vmem>>, vector<32x128xf32>
    tpu.vector_store %arg19[%c0_134, %c0_135], %313 {strides = array<i32>} : memref<32x128xf32, #tpu.memory_space<vmem>>, vector<32x128xf32>,
    return
  }
  func.func @transform_0(%arg0: i32) -> (i32, i32) {
    %c0_i32 = arith.constant 0 : i32
    %c0_i32_0 = arith.constant 0 : i32
    %c0_i32_1 = arith.constant 0 : i32
    return %c0_i32, %c0_i32_0 : i32, i32
  }
  func.func @transform_1(%arg0: i32) -> (i32, i32, i32) {
    %c0_i32 = arith.constant 0 : i32
    %c0_i32_0 = arith.constant 0 : i32
    %c0_i32_1 = arith.constant 0 : i32
    %c0_i32_2 = arith.constant 0 : i32
    return %c0_i32, %c0_i32_0, %c0_i32_1 : i32, i32, i32
  }
  func.func @transform_2(%arg0: i32) -> (i32, i32) {
    %c0_i32 = arith.constant 0 : i32
    %c0_i32_0 = arith.constant 0 : i32
    %c0_i32_1 = arith.constant 0 : i32
    return %c0_i32, %c0_i32_0 : i32, i32
  }
  func.func @transform_3(%arg0: i32) -> (i32, i32) {
    %c0_i32 = arith.constant 0 : i32
    %c0_i32_0 = arith.constant 0 : i32
    %c0_i32_1 = arith.constant 0 : i32
    return %c0_i32, %c0_i32_0 : i32, i32
  }
  func.func @transform_4(%arg0: i32) -> (i32, i32, i32) {
    %c0_i32 = arith.constant 0 : i32
    %c0_i32_0 = arith.constant 0 : i32
    %c0_i32_1 = arith.constant 0 : i32
    %c0_i32_2 = arith.constant 0 : i32
    return %c0_i32, %c0_i32_0, %c0_i32_1 : i32, i32, i32
  }
  func.func @transform_5(%arg0: i32) -> (i32, i32, i32) {
    %c0_i32 = arith.constant 0 : i32
    %c0_i32_0 = arith.constant 0 : i32
    %c0_i32_1 = arith.constant 0 : i32
    %c0_i32_2 = arith.constant 0 : i32
    return %c0_i32, %c0_i32_0, %c0_i32_1 : i32, i32, i32
  }
  func.func @transform_6(%arg0: i32) -> (i32, i32, i32) {
    %c0_i32 = arith.constant 0 : i32
    %c0_i32_0 = arith.constant 0 : i32
    %c0_i32_1 = arith.constant 0 : i32
    %c0_i32_2 = arith.constant 0 : i32
    return %c0_i32, %c0_i32_0, %c0_i32_1 : i32, i32, i32
  }
  func.func @transform_7(%arg0: i32) -> (i32, i32, i32) {
    %c0_i32 = arith.constant 0 : i32
    %c0_i32_0 = arith.constant 0 : i32
    %c0_i32_1 = arith.constant 0 : i32
    %c0_i32_2 = arith.constant 0 : i32
    return %c0_i32, %c0_i32_0, %c0_i32_1 : i32, i32, i32
  }
  func.func @transform_8(%arg0: i32) -> (i32, i32, i32) {
    %c0_i32 = arith.constant 0 : i32
    %c0_i32_0 = arith.constant 0 : i32
    %c0_i32_1 = arith.constant 0 : i32
    %c0_i32_2 = arith.constant 0 : i32
    return %c0_i32, %c0_i32_0, %c0_i32_1 : i32, i32, i32
  }
  func.func @transform_9(%arg0: i32) -> (i32, i32, i32) {
    %c0_i32 = arith.constant 0 : i32
    %c0_i32_0 = arith.constant 0 : i32
    %c0_i32_1 = arith.constant 0 : i32
    %c0_i32_2 = arith.constant 0 : i32
    return %c0_i32, %c0_i32_0, %c0_i32_1 : i32, i32, i32
  }
  func.func @transform_10(%arg0: i32) -> (i32, i32, i32) {
    %c0_i32 = arith.constant 0 : i32
    %c0_i32_0 = arith.constant 0 : i32
    %c0_i32_1 = arith.constant 0 : i32
    %c0_i32_2 = arith.constant 0 : i32
    return %c0_i32, %c0_i32_0, %c0_i32_1 : i32, i32, i32
  }
  func.func @transform_11(%arg0: i32) -> (i32, i32, i32) {
    %c0_i32 = arith.constant 0 : i32
    %c0_i32_0 = arith.constant 0 : i32
    %c0_i32_1 = arith.constant 0 : i32
    %c0_i32_2 = arith.constant 0 : i32
    return %c0_i32, %c0_i32_0, %c0_i32_1 : i32, i32, i32
  }
  func.func @transform_12(%arg0: i32) -> (i32, i32, i32) {
    %c0_i32 = arith.constant 0 : i32
    %c0_i32_0 = arith.constant 0 : i32
    %c0_i32_1 = arith.constant 0 : i32
    %c0_i32_2 = arith.constant 0 : i32
    return %c0_i32, %c0_i32_0, %c0_i32_1 : i32, i32, i32
  }
  func.func @transform_13(%arg0: i32) -> (i32, i32, i32) {
    %c0_i32 = arith.constant 0 : i32
    %c0_i32_0 = arith.constant 0 : i32
    %c0_i32_1 = arith.constant 0 : i32
    %c0_i32_2 = arith.constant 0 : i32
    return %c0_i32, %c0_i32_0, %c0_i32_1 : i32, i32, i32
  }
  func.func @transform_14(%arg0: i32) -> (i32, i32, i32) {
    %c0_i32 = arith.constant 0 : i32
    %c0_i32_0 = arith.constant 0 : i32
    %c0_i32_1 = arith.constant 0 : i32
    %c0_i32_2 = arith.constant 0 : i32
    return %c0_i32, %c0_i32_0, %c0_i32_1 : i32, i32, i32
  }
  func.func @transform_15(%arg0: i32) -> (i32, i32, i32) {
    %c0_i32 = arith.constant 0 : i32
    %c0_i32_0 = arith.constant 0 : i32
    %c0_i32_1 = arith.constant 0 : i32
    %c0_i32_2 = arith.constant 0 : i32
    return %c0_i32, %c0_i32_0, %c0_i32_1 : i32, i32, i32
  }
  func.func @transform_16(%arg0: i32) -> (i32, i32) {
    %c0_i32 = arith.constant 0 : i32
    %c0_i32_0 = arith.constant 0 : i32
    %c0_i32_1 = arith.constant 0 : i32
    return %c0_i32, %c0_i32_0 : i32, i32
  }
  func.func @transform_17(%arg0: i32) -> (i32, i32) {
    %c0_i32 = arith.constant 0 : i32
    %c0_i32_0 = arith.constant 0 : i32
    %c0_i32_1 = arith.constant 0 : i32
    return %c0_i32, %c0_i32_0 : i32, i32
  }
  func.func @transform_18(%arg0: i32) -> (i32, i32) {
    %c0_i32 = arith.constant 0 : i32
    %c0_i32_0 = arith.constant 0 : i32
    %c0_i32_1 = arith.constant 0 : i32
    return %c0_i32, %c0_i32_0 : i32, i32
  }
}

</mosaic_0001>

<llo_original>
// kernel: bert_labeler_forward.1
$region0: #{bert_labeler_forward.1}
  #allocation0 [shape = 'u32[]', space=smem, size = 0x4, offset = 0x4, fixed_abs, tag = 'smem constant byte address 0x4 - core index']
  #allocation1 [shape = 'u32[144,128]{1,0:T(1,128)}', space=vmem, size = 0x12000, scoped, tag = 'internal scratch']
  %s0 = inlined_call_operand.vmem [shape: f32[32,128], index: 0, kind: input, shape index: {}]
  %s1 = inlined_call_operand.vmem [shape: f32[8,1,16], index: 1, kind: input, shape index: {}]
  %s2 = inlined_call_operand.vmem [shape: f32[1,128], index: 2, kind: input, shape index: {}]
  %s3 = inlined_call_operand.vmem [shape: f32[1,128], index: 3, kind: input, shape index: {}]
  %s4 = inlined_call_operand.vmem [shape: bf16[2,128,384], index: 4, kind: input, shape index: {}]
  %s5 = inlined_call_operand.vmem [shape: f32[2,1,384], index: 5, kind: input, shape index: {}]
  %s6 = inlined_call_operand.hbm [shape: bf16[2,128,128], index: 6, kind: input, shape index: {}]
  %s7 = inlined_call_operand.vmem [shape: f32[2,1,128], index: 7, kind: input, shape index: {}]
  %s8 = inlined_call_operand.vmem [shape: f32[2,1,128], index: 8, kind: input, shape index: {}]
  %s9 = inlined_call_operand.vmem [shape: f32[2,1,128], index: 9, kind: input, shape index: {}]
  %s10 = inlined_call_operand.hbm [shape: bf16[2,128,256], index: 10, kind: input, shape index: {}]
  %s11 = inlined_call_operand.vmem [shape: f32[2,1,256], index: 11, kind: input, shape index: {}]
  %s12 = inlined_call_operand.hbm [shape: bf16[2,256,128], index: 12, kind: input, shape index: {}]
  %s13 = inlined_call_operand.vmem [shape: f32[2,1,128], index: 13, kind: input, shape index: {}]
  %s14 = inlined_call_operand.vmem [shape: f32[2,1,128], index: 14, kind: input, shape index: {}]
  %s15 = inlined_call_operand.vmem [shape: f32[2,1,128], index: 15, kind: input, shape index: {}]
  %s16 = inlined_call_operand.vmem [shape: bf16[128,128], index: 16, kind: input, shape index: {}]
  %s17 = inlined_call_operand.vmem [shape: f32[1,128], index: 17, kind: input, shape index: {}]
  %s18 = inlined_call_operand.vmem [shape: f32[32,128], index: 18, kind: output, shape index: {}]
  %s19 = sld [smem:[#allocation0]]
  $region94: #{bert_labeler_forward.1} parent=0
    _
  %s21 = ssub.s32 1, %s19
  %s22 = scalar_select 0, %s21, %s19
  $region1: #{bert_labeler_forward.1} parent=0
    #allocation2 [shape = 'u8[65536]{0}', space=vmem, size = 0x10000, scoped, tag = 'input window, operand 6, single buffered']
    #allocation3 [shape = 's32[1]{0}', space=sflag, size = 0x4, scoped, tag = 'scoped memory for bert_labeler_forward.1']
    #allocation4 [shape = 'u8[131072]{0}', space=vmem, size = 0x20000, scoped, tag = 'input window, operand 10, single buffered']
    #allocation5 [shape = 's32[1]{0}', space=sflag, size = 0x4, scoped, tag = 'scoped memory for bert_labeler_forward.1']
    #allocation6 [shape = 'u8[131072]{0}', space=vmem, size = 0x20000, scoped, tag = 'input window, operand 12, single buffered']
    %23 = vsyncpa [#allocation3], 0
    %24 = vsyncpa [#allocation5], 0
    // Predicated region
    $region2: #{bert_labeler_forward.1} parent=1 // pred_check
      _
    $region3: #{bert_labeler_forward.1} parent=1 // pred_check_branch
      %26 = sbr.rel (0) target = $region5
    $region4: #{bert_labeler_forward.1} parent=1 // pred_region
      _
    $region5: #{bert_labeler_forward.1} parent=1 // pred_fallthru
      _
    // Predicated region
    $region6: #{bert_labeler_forward.1} parent=1 // pred_check
      _
    $region7: #{bert_labeler_forward.1} parent=1 // pred_check_branch
      %28 = sbr.rel (0) target = $region9
    $region8: #{bert_labeler_forward.1} parent=1 // pred_region
      _
    $region9: #{bert_labeler_forward.1} parent=1 // pred_fallthru
      _
    // Predicated region
    $region10: #{bert_labeler_forward.1} parent=1 // pred_check
      _
    $region11: #{bert_labeler_forward.1} parent=1 // pred_check_branch
      %30 = sbr.rel (0) target = $region13
    $region12: #{bert_labeler_forward.1} parent=1 // pred_region
      _
    $region13: #{bert_labeler_forward.1} parent=1 // pred_fallthru
      _
    // Predicated region
    $region14: #{bert_labeler_forward.1} parent=1 // pred_check
      _
    $region15: #{bert_labeler_forward.1} parent=1 // pred_check_branch
      %32 = sbr.rel (0) target = $region17
    $region16: #{bert_labeler_forward.1} parent=1 // pred_region
      _
    $region17: #{bert_labeler_forward.1} parent=1 // pred_fallthru
      _
    // Predicated region
    $region18: #{bert_labeler_forward.1} parent=1 // pred_check
      _
    $region19: #{bert_labeler_forward.1} parent=1 // pred_check_branch
      %34 = sbr.rel (0) target = $region21
    $region20: #{bert_labeler_forward.1} parent=1 // pred_region
      _
    $region21: #{bert_labeler_forward.1} parent=1 // pred_fallthru
      _
    // Predicated region
    $region22: #{bert_labeler_forward.1} parent=1 // pred_check
      _
    $region23: #{bert_labeler_forward.1} parent=1 // pred_check_branch
      %36 = sbr.rel (0) target = $region25
    $region24: #{bert_labeler_forward.1} parent=1 // pred_region
      _
    $region25: #{bert_labeler_forward.1} parent=1 // pred_fallthru
      _
    // Predicated region
    $region26: #{bert_labeler_forward.1} parent=1 // pred_check
      _
    $region27: #{bert_labeler_forward.1} parent=1 // pred_check_branch
      %38 = sbr.rel (0) target = $region29
    $region28: #{bert_labeler_forward.1} parent=1 // pred_region
      %s40 = ssub.s32 2048, 2048
      %41 = vsyncadd [#allocation3], %s40
      %s42 = sshll.u32 [#allocation2], 4
      %s43 = int_to_ptr.vmem [resolvable:$true] %s42
      %48 = dma.hbm_to_vmem [thread:$0]  %s6, 2048, %s43, [#allocation3], 64, 64, 4
    $region29: #{bert_labeler_forward.1} parent=1 // pred_fallthru
      _
    // Predicated region
    $region30: #{bert_labeler_forward.1} parent=1 // pred_check
      _
    $region31: #{bert_labeler_forward.1} parent=1 // pred_check_branch
      %50 = sbr.rel (0) target = $region33
    $region32: #{bert_labeler_forward.1} parent=1 // pred_region
      _
    $region33: #{bert_labeler_forward.1} parent=1 // pred_fallthru
      _
    // Predicated region
    $region34: #{bert_labeler_forward.1} parent=1 // pred_check
      _
    $region35: #{bert_labeler_forward.1} parent=1 // pred_check_branch
      %52 = sbr.rel (0) target = $region37
    $region36: #{bert_labeler_forward.1} parent=1 // pred_region
      _
    $region37: #{bert_labeler_forward.1} parent=1 // pred_fallthru
      _
    // Predicated region
    $region38: #{bert_labeler_forward.1} parent=1 // pred_check
      _
    $region39: #{bert_labeler_forward.1} parent=1 // pred_check_branch
      %54 = sbr.rel (0) target = $region41
    $region40: #{bert_labeler_forward.1} parent=1 // pred_region
      _
    $region41: #{bert_labeler_forward.1} parent=1 // pred_fallthru
      _
    // Predicated region
    $region42: #{bert_labeler_forward.1} parent=1 // pred_check
      _
    $region43: #{bert_labeler_forward.1} parent=1 // pred_check_branch
      %56 = sbr.rel (0) target = $region45
    $region44: #{bert_labeler_forward.1} parent=1 // pred_region
      %s58 = ssub.s32 4096, 4096
      %59 = vsyncadd [#allocation5], %s58
      %s60 = sshll.u32 [#allocation4], 4
      %s61 = int_to_ptr.vmem [resolvable:$true] %s60
      %66 = dma.hbm_to_vmem [thread:$0]  %s10, 4096, %s61, [#allocation5], 128, 128, 8
    $region45: #{bert_labeler_forward.1} parent=1 // pred_fallthru
      _
    // Predicated region
    $region46: #{bert_labeler_forward.1} parent=1 // pred_check
      _
    $region47: #{bert_labeler_forward.1} parent=1 // pred_check_branch
      %68 = sbr.rel (0) target = $region49
    $region48: #{bert_labeler_forward.1} parent=1 // pred_region
      _
    $region49: #{bert_labeler_forward.1} parent=1 // pred_fallthru
      _
    // Predicated region
    $region50: #{bert_labeler_forward.1} parent=1 // pred_check
      _
    $region51: #{bert_labeler_forward.1} parent=1 // pred_check_branch
      %70 = sbr.rel (0) target = $region53
    $region52: #{bert_labeler_forward.1} parent=1 // pred_region
      %s72 = ssub.s32 4096, 4096
      %73 = vsyncadd [#allocation5], %s72
      %s74 = sshll.u32 [#allocation6], 4
      %s75 = int_to_ptr.vmem [resolvable:$true] %s74
      %80 = dma.hbm_to_vmem [thread:$0]  %s12, 4096, %s75, [#allocation5], 64, 64, 4
    $region53: #{bert_labeler_forward.1} parent=1 // pred_fallthru
      _
    // Predicated region
    $region54: #{bert_labeler_forward.1} parent=1 // pred_check
      _
    $region55: #{bert_labeler_forward.1} parent=1 // pred_check_branch
      %82 = sbr.rel (0) target = $region57
    $region56: #{bert_labeler_forward.1} parent=1 // pred_region
      _
    $region57: #{bert_labeler_forward.1} parent=1 // pred_fallthru
      _
    // Predicated region
    $region58: #{bert_labeler_forward.1} parent=1 // pred_check
      _
    $region59: #{bert_labeler_forward.1} parent=1 // pred_check_branch
      %84 = sbr.rel (0) target = $region61
    $region60: #{bert_labeler_forward.1} parent=1 // pred_region
      _
    $region61: #{bert_labeler_forward.1} parent=1 // pred_fallthru
      _
    // Predicated region
    $region62: #{bert_labeler_forward.1} parent=1 // pred_check
      _
    $region63: #{bert_labeler_forward.1} parent=1 // pred_check_branch
      %86 = sbr.rel (0) target = $region65
    $region64: #{bert_labeler_forward.1} parent=1 // pred_region
      _
    $region65: #{bert_labeler_forward.1} parent=1 // pred_fallthru
      _
    // Predicated region
    $region66: #{bert_labeler_forward.1} parent=1 // pred_check
      _
    $region67: #{bert_labeler_forward.1} parent=1 // pred_check_branch
      %88 = sbr.rel (0) target = $region69
    $region68: #{bert_labeler_forward.1} parent=1 // pred_region
      _
    $region69: #{bert_labeler_forward.1} parent=1 // pred_fallthru
      _
    // Predicated region
    $region70: #{bert_labeler_forward.1} parent=1 // pred_check
      _
    $region71: #{bert_labeler_forward.1} parent=1 // pred_check_branch
      %90 = sbr.rel (0) target = $region73
    $region72: #{bert_labeler_forward.1} parent=1 // pred_region
      _
    $region73: #{bert_labeler_forward.1} parent=1 // pred_fallthru
      _
    // Predicated region
    $region74: #{bert_labeler_forward.1} parent=1 // pred_check
      _
    $region75: #{bert_labeler_forward.1} parent=1 // pred_check_branch
      %92 = sbr.rel (0) target = $region77
    $region76: #{bert_labeler_forward.1} parent=1 // pred_region
      %93 = dma.done [#allocation3], 2048
    $region77: #{bert_labeler_forward.1} parent=1 // pred_fallthru
      _
    // Predicated region
    $region78: #{bert_labeler_forward.1} parent=1 // pred_check
      _
    $region79: #{bert_labeler_forward.1} parent=1 // pred_check_branch
      %95 = sbr.rel (0) target = $region81
    $region80: #{bert_labeler_forward.1} parent=1 // pred_region
      %96 = dma.done [#allocation5], 4096
    $region81: #{bert_labeler_forward.1} parent=1 // pred_fallthru
      _
    // Predicated region
    $region82: #{bert_labeler_forward.1} parent=1 // pred_check
      _
    $region83: #{bert_labeler_forward.1} parent=1 // pred_check_branch
      %98 = sbr.rel (0) target = $region85
    $region84: #{bert_labeler_forward.1} parent=1 // pred_region
      %99 = dma.done [#allocation5], 4096
    $region85: #{bert_labeler_forward.1} parent=1 // pred_fallthru
      _
    %v101 = vld [vmem:[%s0] sm:$0xff]
    %v102 = vld [vmem:[%s0 + $0x8] sm:$0xff]
    %v103 = vld [vmem:[%s0 + $0x10] sm:$0xff]
    %v104 = vld [vmem:[%s0 + $0x18] sm:$0xff]
    %v105 = vld [vmem:[%s2] sm:$0x1]
    %v106 = vld [vmem:[%s3] sm:$0x1]
    %107 = vadd.xlane.f32.xlu0 %v101
    %v108 = vpop.xlane.xlu0 %107
    %109 = vadd.xlane.f32.xlu0 %v102
    %v110 = vpop.xlane.xlu0 %109
    %111 = vadd.xlane.f32.xlu0 %v103
    %v112 = vpop.xlane.xlu0 %111
    %113 = vadd.xlane.f32.xlu0 %v104
    %v114 = vpop.xlane.xlu0 %113
    %v115 = vrcp.pop 128.0
    %v116 = vmul.f32 %v108, %v115
    %v117 = vmul.f32 %v110, %v115
    %v118 = vmul.f32 %v112, %v115
    %v119 = vmul.f32 %v114, %v115
    %v120 = vsub.f32 %v101, %v116
    %v121 = vsub.f32 %v102, %v117
    %v122 = vsub.f32 %v103, %v118
    %v123 = vsub.f32 %v104, %v119
    %v124 = vmul.f32 %v120, %v120
    %v125 = vmul.f32 %v121, %v121
    %v126 = vmul.f32 %v122, %v122
    %v127 = vmul.f32 %v123, %v123
    %128 = vadd.xlane.f32.xlu0 %v124
    %v129 = vpop.xlane.xlu0 %128
    %130 = vadd.xlane.f32.xlu0 %v125
    %v131 = vpop.xlane.xlu0 %130
    %132 = vadd.xlane.f32.xlu0 %v126
    %v133 = vpop.xlane.xlu0 %132
    %134 = vadd.xlane.f32.xlu0 %v127
    %v135 = vpop.xlane.xlu0 %134
    %v136 = vmul.f32 %v129, %v115
    %v137 = vmul.f32 %v131, %v115
    %v138 = vmul.f32 %v133, %v115
    %v139 = vmul.f32 %v135, %v115
    %v140 = vadd.f32 %v136, 1e-12
    %v141 = vadd.f32 %v137, 1e-12
    %v142 = vadd.f32 %v138, 1e-12
    %v143 = vadd.f32 %v139, 1e-12
    %v144 = vrsqrt.pop %v140
    %v145 = vrsqrt.pop %v141
    %v146 = vrsqrt.pop %v142
    %v147 = vrsqrt.pop %v143
    %v148 = vmul.f32 %v120, %v144
    %v149 = vmul.f32 %v121, %v145
    %v150 = vmul.f32 %v122, %v146
    %v151 = vmul.f32 %v123, %v147
    %v153 = vlaneseq
    %v154 = vshrl.u32 %v153, 7
    %v155 = vsub.s32 0, %v154
    %v156 = vrot.slane %v105, %v155
    %v158 = vmul.f32 %v148, %v156
    %v159 = vmul.f32 %v149, %v156
    %v160 = vmul.f32 %v150, %v156
    %v161 = vmul.f32 %v151, %v156
    %v163 = vlaneseq
    %v164 = vshrl.u32 %v163, 7
    %v165 = vsub.s32 0, %v164
    %v166 = vrot.slane %v106, %v165
    %v168 = vadd.f32 %v158, %v166
    %v169 = vadd.f32 %v159, %v166
    %v170 = vadd.f32 %v160, %v166
    %v171 = vadd.f32 %v161, %v166
    %v172 = vld [vmem:[%s1] sm:$0x1]
    %v173 = vld [vmem:[%s1 + $0x1] sm:$0x1]
    %v174 = vld [vmem:[%s1 + $0x2] sm:$0x1]
    %v175 = vld [vmem:[%s1 + $0x3] sm:$0x1]
    %v176 = vld [vmem:[%s1 + $0x4] sm:$0x1]
    %v177 = vld [vmem:[%s1 + $0x5] sm:$0x1]
    %v178 = vld [vmem:[%s1 + $0x6] sm:$0x1]
    %v179 = vld [vmem:[%s1 + $0x7] sm:$0x1]
    %v180 = vpack.c.bf16 %v169, %v168
    %v181 = vpack.c.bf16 %v171, %v170
    %v182 = vld [vmem:[%s4] sm:$0xff]
    %v183 = vld [vmem:[%s4 + $0x8] sm:$0xf]
    %v184 = vld [vmem:[%s4 + $0xc] sm:$0xff]
    %v185 = vld [vmem:[%s4 + $0x14] sm:$0xf]
    %v186 = vld [vmem:[%s4 + $0x18] sm:$0xff]
    %v187 = vld [vmem:[%s4 + $0x20] sm:$0xf]
    %v188 = vld [vmem:[%s4 + $0x24] sm:$0xff]
    %v189 = vld [vmem:[%s4 + $0x2c] sm:$0xf]
    %v190 = vld [vmem:[%s4 + $0x30] sm:$0xff]
    %v191 = vld [vmem:[%s4 + $0x38] sm:$0xf]
    %v192 = vld [vmem:[%s4 + $0x3c] sm:$0xff]
    %v193 = vld [vmem:[%s4 + $0x44] sm:$0xf]
    %v194 = vld [vmem:[%s4 + $0x48] sm:$0xff]
    %v195 = vld [vmem:[%s4 + $0x50] sm:$0xf]
    %v196 = vld [vmem:[%s4 + $0x54] sm:$0xff]
    %v197 = vld [vmem:[%s4 + $0x5c] sm:$0xf]
    %v198 = vld [vmem:[%s4 + $0x60] sm:$0xff]
    %v199 = vld [vmem:[%s4 + $0x68] sm:$0xf]
    %v200 = vld [vmem:[%s4 + $0x6c] sm:$0xff]
    %v201 = vld [vmem:[%s4 + $0x74] sm:$0xf]
    %v202 = vld [vmem:[%s4 + $0x78] sm:$0xff]
    %v203 = vld [vmem:[%s4 + $0x80] sm:$0xf]
    %v204 = vld [vmem:[%s4 + $0x84] sm:$0xff]
    %v205 = vld [vmem:[%s4 + $0x8c] sm:$0xf]
    %v206 = vld [vmem:[%s4 + $0x90] sm:$0xff]
    %v207 = vld [vmem:[%s4 + $0x98] sm:$0xf]
    %v208 = vld [vmem:[%s4 + $0x9c] sm:$0xff]
    %v209 = vld [vmem:[%s4 + $0xa4] sm:$0xf]
    %v210 = vld [vmem:[%s4 + $0xa8] sm:$0xff]
    %v211 = vld [vmem:[%s4 + $0xb0] sm:$0xf]
    %v212 = vld [vmem:[%s4 + $0xb4] sm:$0xff]
    %v213 = vld [vmem:[%s4 + $0xbc] sm:$0xf]
    %v214 = vld [vmem:[%s5] sm:$0x7]
    %v216 = vlaneseq
    %v217 = vshrl.u32 %v216, 7
    %v218 = vsub.s32 0, %v217
    %v219 = vrot.slane %v214, %v218
    %v220 = vlaneseq
    %v221 = vshrl.u32 %v220, 7
    %v222 = vsub.s32 1, %v221
    %v223 = vrot.slane %v214, %v222
    %v224 = vlaneseq
    %v225 = vshrl.u32 %v224, 7
    %v226 = vsub.s32 2, %v225
    %v227 = vrot.slane %v214, %v226
    %v263 = vunpack.c.l.b16 %v182
    %v264 = vunpack.c.h.b16 %v182
    %v265 = vunpack.c.l.b16 %v183
    %v266 = vunpack.c.l.b16 %v184
    %v267 = vunpack.c.h.b16 %v184
    %v268 = vunpack.c.l.b16 %v185
    %v269 = vunpack.c.l.b16 %v186
    %v270 = vunpack.c.h.b16 %v186
    %v271 = vunpack.c.l.b16 %v187
    %v272 = vunpack.c.l.b16 %v188
    %v273 = vunpack.c.h.b16 %v188
    %v274 = vunpack.c.l.b16 %v189
    %v275 = vunpack.c.l.b16 %v190
    %v276 = vunpack.c.h.b16 %v190
    %v277 = vunpack.c.l.b16 %v191
    %v278 = vunpack.c.l.b16 %v192
    %v279 = vunpack.c.h.b16 %v192
    %v280 = vunpack.c.l.b16 %v193
    %v281 = vunpack.c.l.b16 %v194
    %v282 = vunpack.c.h.b16 %v194
    %v283 = vunpack.c.l.b16 %v195
    %v284 = vunpack.c.l.b16 %v196
    %v285 = vunpack.c.h.b16 %v196
    %v286 = vunpack.c.l.b16 %v197
    %v287 = vunpack.c.l.b16 %v198
    %v288 = vunpack.c.h.b16 %v198
    %v289 = vunpack.c.l.b16 %v199
    %v290 = vunpack.c.l.b16 %v200
    %v291 = vunpack.c.h.b16 %v200
    %v292 = vunpack.c.l.b16 %v201
    %v293 = vunpack.c.l.b16 %v202
    %v294 = vunpack.c.h.b16 %v202
    %v295 = vunpack.c.l.b16 %v203
    %v296 = vunpack.c.l.b16 %v204
    %v297 = vunpack.c.h.b16 %v204
    %v298 = vunpack.c.l.b16 %v205
    %v299 = vunpack.c.l.b16 %v206
    %v300 = vunpack.c.h.b16 %v206
    %v301 = vunpack.c.l.b16 %v207
    %v302 = vunpack.c.l.b16 %v208
    %v303 = vunpack.c.h.b16 %v208
    %v304 = vunpack.c.l.b16 %v209
    %v305 = vunpack.c.l.b16 %v210
    %v306 = vunpack.c.h.b16 %v210
    %v307 = vunpack.c.l.b16 %v211
    %v308 = vunpack.c.l.b16 %v212
    %v309 = vunpack.c.h.b16 %v212
    %v310 = vunpack.c.l.b16 %v213
    %v311 = vpack.c.b16 %v266, %v263
    %v312 = vpack.c.b16 %v267, %v264
    %v313 = vpack.c.b16 %v268, %v265
    %v314 = vpack.c.b16 %v272, %v269
    %v315 = vpack.c.b16 %v273, %v270
    %v316 = vpack.c.b16 %v274, %v271
    %v317 = vpack.c.b16 %v278, %v275
    %v318 = vpack.c.b16 %v279, %v276
    %v319 = vpack.c.b16 %v280, %v277
    %v320 = vpack.c.b16 %v284, %v281
    %v321 = vpack.c.b16 %v285, %v282
    %v322 = vpack.c.b16 %v286, %v283
    %v323 = vpack.c.b16 %v290, %v287
    %v324 = vpack.c.b16 %v291, %v288
    %v325 = vpack.c.b16 %v292, %v289
    %v326 = vpack.c.b16 %v296, %v293
    %v327 = vpack.c.b16 %v297, %v294
    %v328 = vpack.c.b16 %v298, %v295
    %v329 = vpack.c.b16 %v302, %v299
    %v330 = vpack.c.b16 %v303, %v300
    %v331 = vpack.c.b16 %v304, %v301
    %v332 = vpack.c.b16 %v308, %v305
    %v333 = vpack.c.b16 %v309, %v306
    %v334 = vpack.c.b16 %v310, %v307
    %359 = vmatprep.subr.bf16.mxu0 %v333
    %360 = vmatpush1.bf16.msra.mxu0 %v332
    %361 = vmatprep.subr.bf16.mxu0 %v330
    %362 = vmatpush1.bf16.msra.mxu0 %v329
    %363 = vmatprep.subr.bf16.mxu0 %v327
    %364 = vmatpush1.bf16.msra.mxu0 %v326
    %365 = vmatprep.subr.bf16.mxu0 %v324
    %366 = vmatpush1.bf16.msra.mxu0 %v323
    %367 = vmatprep.subr.bf16.mxu0 %v321
    %368 = vmatpush1.bf16.msra.mxu0 %v320
    %369 = vmatprep.subr.bf16.mxu0 %v318
    %370 = vmatpush1.bf16.msra.mxu0 %v317
    %371 = vmatprep.subr.bf16.mxu0 %v315
    %372 = vmatpush1.bf16.msra.mxu0 %v314
    %373 = vmatprep.subr.bf16.mxu0 %v312
    %374 = vmatpush1.bf16.msra.mxu0 %v311
    %375 = vmatprep.subr.bf16.mxu0 0
    %376 = vmatpush2.bf16.msra.mxu0 0
    %377 = vmatprep.subr.bf16.mxu0 0
    %378 = vmatpush2.bf16.msra.mxu0 0
    %379 = vmatprep.subr.bf16.mxu0 0
    %380 = vmatpush2.bf16.msra.mxu0 0
    %381 = vmatprep.subr.bf16.mxu0 0
    %382 = vmatpush2.bf16.msra.mxu0 0
    %383 = vmatprep.subr.bf16.mxu0 0
    %384 = vmatpush2.bf16.msra.mxu0 0
    %385 = vmatprep.subr.bf16.mxu0 0
    %386 = vmatpush2.bf16.msra.mxu0 0
    %387 = vmatprep.subr.bf16.mxu0 0
    %388 = vmatpush2.bf16.msra.mxu0 0
    %389 = vmatprep.subr.bf16.mxu0 0
    %390 = vmatpush2.bf16.msra.mxu0 0
    %391 = vmatprep.mubr.bf16.mxu0 0
    %392 = vmatmul.mubr.bf16.gmra.mxu0 %v180
    %v393 = vpop.f32.mrf.mxu0
    %v394 = vadd.f32 %v219, %v393
    %v395 = vpop.f32.mrf.mxu0
    %v396 = vadd.f32 %v223, %v395
    %v397 = vpop.f32.mrf.mxu0
    %v398 = vadd.f32 %v219, %v397
    %v399 = vpop.f32.mrf.mxu0
    %v400 = vadd.f32 %v223, %v399
    %401 = vmatprep.mubr.bf16.mxu0 0
    %402 = vmatmul.mubr.bf16.gmra.mxu0 %v181
    %v403 = vpop.f32.mrf.mxu0
    %v404 = vadd.f32 %v219, %v403
    %v405 = vpop.f32.mrf.mxu0
    %v406 = vadd.f32 %v223, %v405
    %v407 = vpop.f32.mrf.mxu0
    %v408 = vadd.f32 %v219, %v407
    %v409 = vpop.f32.mrf.mxu0
    %v410 = vadd.f32 %v223, %v409
    %411 = vdwg.mxu0
    %412 = vmatprep.subr.bf16.mxu0 0
    %413 = vmatpush1.bf16.msra.mxu0 %v334
    %414 = vmatprep.subr.bf16.mxu0 0
    %415 = vmatpush1.bf16.msra.mxu0 %v331
    %416 = vmatprep.subr.bf16.mxu0 0
    %417 = vmatpush1.bf16.msra.mxu0 %v328
    %418 = vmatprep.subr.bf16.mxu0 0
    %419 = vmatpush1.bf16.msra.mxu0 %v325
    %420 = vmatprep.subr.bf16.mxu0 0
    %421 = vmatpush1.bf16.msra.mxu0 %v322
    %422 = vmatprep.subr.bf16.mxu0 0
    %423 = vmatpush1.bf16.msra.mxu0 %v319
    %424 = vmatprep.subr.bf16.mxu0 0
    %425 = vmatpush1.bf16.msra.mxu0 %v316
    %426 = vmatprep.subr.bf16.mxu0 0
    %427 = vmatpush1.bf16.msra.mxu0 %v313
    %428 = vmatprep.subr.bf16.mxu0 0
    %429 = vmatpush2.bf16.msra.mxu0 0
    %430 = vmatprep.subr.bf16.mxu0 0
    %431 = vmatpush2.bf16.msra.mxu0 0
    %432 = vmatprep.subr.bf16.mxu0 0
    %433 = vmatpush2.bf16.msra.mxu0 0
    %434 = vmatprep.subr.bf16.mxu0 0
    %435 = vmatpush2.bf16.msra.mxu0 0
    %436 = vmatprep.subr.bf16.mxu0 0
    %437 = vmatpush2.bf16.msra.mxu0 0
    %438 = vmatprep.subr.bf16.mxu0 0
    %439 = vmatpush2.bf16.msra.mxu0 0
    %440 = vmatprep.subr.bf16.mxu0 0
    %441 = vmatpush2.bf16.msra.mxu0 0
    %442 = vmatprep.subr.bf16.mxu0 0
    %443 = vmatpush2.bf16.msra.mxu0 0
    %444 = vmatprep.mubr.bf16.mxu0 0
    %445 = vmatmul.mubr.bf16.gmra.mxu0 %v180
    %v446 = vpop.f32.mrf.mxu0
    %v447 = vadd.f32 %v227, %v446
    %v448 = vpop.f32.mrf.mxu0
    %v449 = vpop.f32.mrf.mxu0
    %v450 = vadd.f32 %v227, %v449
    %v451 = vpop.f32.mrf.mxu0
    %452 = vmatprep.mubr.bf16.mxu0 0
    %453 = vmatmul.mubr.bf16.gmra.mxu0 %v181
    %v454 = vpop.f32.mrf.mxu0
    %v455 = vadd.f32 %v227, %v454
    %v456 = vpop.f32.mrf.mxu0
    %v457 = vpop.f32.mrf.mxu0
    %v458 = vadd.f32 %v227, %v457
    %v459 = vpop.f32.mrf.mxu0
    %460 = vdwg.mxu0
    %465 = vrot.lane.b32.xlu0 %v394, 96
    %v466 = vpop.permute.xlu0 %465
    %467 = vrot.lane.b32.xlu0 %v398, 96
    %v468 = vpop.permute.xlu0 %467
    %469 = vrot.lane.b32.xlu0 %v404, 96
    %v470 = vpop.permute.xlu0 %469
    %471 = vrot.lane.b32.xlu0 %v408, 96
    %v472 = vpop.permute.xlu0 %471
    %477 = vrot.lane.b32.xlu0 %v394, 64
    %v478 = vpop.permute.xlu0 %477
    %479 = vrot.lane.b32.xlu0 %v398, 64
    %v480 = vpop.permute.xlu0 %479
    %481 = vrot.lane.b32.xlu0 %v404, 64
    %v482 = vpop.permute.xlu0 %481
    %483 = vrot.lane.b32.xlu0 %v408, 64
    %v484 = vpop.permute.xlu0 %483
    %489 = vrot.lane.b32.xlu0 %v394, 32
    %v490 = vpop.permute.xlu0 %489
    %491 = vrot.lane.b32.xlu0 %v398, 32
    %v492 = vpop.permute.xlu0 %491
    %493 = vrot.lane.b32.xlu0 %v404, 32
    %v494 = vpop.permute.xlu0 %493
    %495 = vrot.lane.b32.xlu0 %v408, 32
    %v496 = vpop.permute.xlu0 %495
    %505 = vrot.lane.b32.xlu0 %v396, 96
    %v506 = vpop.permute.xlu0 %505
    %507 = vrot.lane.b32.xlu0 %v400, 96
    %v508 = vpop.permute.xlu0 %507
    %509 = vrot.lane.b32.xlu0 %v406, 96
    %v510 = vpop.permute.xlu0 %509
    %511 = vrot.lane.b32.xlu0 %v410, 96
    %v512 = vpop.permute.xlu0 %511
    %517 = vrot.lane.b32.xlu0 %v396, 64
    %v518 = vpop.permute.xlu0 %517
    %519 = vrot.lane.b32.xlu0 %v400, 64
    %v520 = vpop.permute.xlu0 %519
    %521 = vrot.lane.b32.xlu0 %v406, 64
    %v522 = vpop.permute.xlu0 %521
    %523 = vrot.lane.b32.xlu0 %v410, 64
    %v524 = vpop.permute.xlu0 %523
    %529 = vrot.lane.b32.xlu0 %v396, 32
    %v530 = vpop.permute.xlu0 %529
    %531 = vrot.lane.b32.xlu0 %v400, 32
    %v532 = vpop.permute.xlu0 %531
    %533 = vrot.lane.b32.xlu0 %v406, 32
    %v534 = vpop.permute.xlu0 %533
    %535 = vrot.lane.b32.xlu0 %v410, 32
    %v536 = vpop.permute.xlu0 %535
    %545 = vrot.lane.b32.xlu0 %v447, 96
    %v546 = vpop.permute.xlu0 %545
    %547 = vrot.lane.b32.xlu0 %v450, 96
    %v548 = vpop.permute.xlu0 %547
    %549 = vrot.lane.b32.xlu0 %v455, 96
    %v550 = vpop.permute.xlu0 %549
    %551 = vrot.lane.b32.xlu0 %v458, 96
    %v552 = vpop.permute.xlu0 %551
    %557 = vrot.lane.b32.xlu0 %v447, 64
    %v558 = vpop.permute.xlu0 %557
    %559 = vrot.lane.b32.xlu0 %v450, 64
    %v560 = vpop.permute.xlu0 %559
    %561 = vrot.lane.b32.xlu0 %v455, 64
    %v562 = vpop.permute.xlu0 %561
    %563 = vrot.lane.b32.xlu0 %v458, 64
    %v564 = vpop.permute.xlu0 %563
    %569 = vrot.lane.b32.xlu0 %v447, 32
    %v570 = vpop.permute.xlu0 %569
    %571 = vrot.lane.b32.xlu0 %v450, 32
    %v572 = vpop.permute.xlu0 %571
    %573 = vrot.lane.b32.xlu0 %v455, 32
    %v574 = vpop.permute.xlu0 %573
    %575 = vrot.lane.b32.xlu0 %v458, 32
    %v576 = vpop.permute.xlu0 %575
    %v581 = vpack.c.bf16 %v398, %v394
    %v582 = vpack.c.bf16 %v408, %v404
    %v583 = vpack.c.bf16 %v468, %v466
    %v584 = vpack.c.bf16 %v472, %v470
    %v585 = vpack.c.bf16 %v480, %v478
    %v586 = vpack.c.bf16 %v484, %v482
    %v587 = vpack.c.bf16 %v492, %v490
    %v588 = vpack.c.bf16 %v496, %v494
    %v589 = vpack.c.bf16 %v400, %v396
    %v590 = vpack.c.bf16 %v410, %v406
    %v591 = vpack.c.bf16 %v508, %v506
    %v592 = vpack.c.bf16 %v512, %v510
    %v593 = vpack.c.bf16 %v520, %v518
    %v594 = vpack.c.bf16 %v524, %v522
    %v595 = vpack.c.bf16 %v532, %v530
    %v596 = vpack.c.bf16 %v536, %v534
    %vm597 = vcmask 261120
    %v599 = vsel %vm597, %v581, 0
    %v602 = vsel %vm597, %v589, 0
    %604 = vmatprep.subr.bf16.mxu0 0
    %605 = vmatpush1.bf16.xpose.msra.mxu0 0
    %606 = vmatprep.subr.bf16.mxu0 0
    %607 = vmatpush1.bf16.xpose.msra.mxu0 0
    %608 = vmatprep.subr.bf16.mxu0 0
    %609 = vmatpush1.bf16.xpose.msra.mxu0 0
    %610 = vmatprep.subr.bf16.mxu0 0
    %611 = vmatpush1.bf16.xpose.msra.mxu0 0
    %612 = vmatprep.subr.bf16.mxu0 0
    %613 = vmatpush1.bf16.xpose.msra.mxu0 0
    %614 = vmatprep.subr.bf16.mxu0 0
    %615 = vmatpush1.bf16.xpose.msra.mxu0 0
    %616 = vmatprep.subr.bf16.mxu0 0
    %617 = vmatpush1.bf16.xpose.msra.mxu0 0
    %618 = vmatprep.subr.bf16.mxu0 0
    %619 = vmatpush1.bf16.xpose.msra.mxu0 %v602
    %620 = vmatprep.subr.bf16.mxu0 0
    %621 = vmatpush2.bf16.xpose.msra.mxu0 0
    %622 = vmatprep.subr.bf16.mxu0 0
    %623 = vmatpush2.bf16.xpose.msra.mxu0 0
    %624 = vmatprep.subr.bf16.mxu0 0
    %625 = vmatpush2.bf16.xpose.msra.mxu0 0
    %626 = vmatprep.subr.bf16.mxu0 0
    %627 = vmatpush2.bf16.xpose.msra.mxu0 0
    %628 = vmatprep.subr.bf16.mxu0 0
    %629 = vmatpush2.bf16.xpose.msra.mxu0 0
    %630 = vmatprep.subr.bf16.mxu0 0
    %631 = vmatpush2.bf16.xpose.msra.mxu0 0
    %632 = vmatprep.subr.bf16.mxu0 0
    %633 = vmatpush2.bf16.xpose.msra.mxu0 0
    %634 = vmatprep.subr.bf16.mxu0 0
    %635 = vmatpush2.bf16.xpose.msra.mxu0 0
    %636 = vmatprep.mubr.bf16.mxu0 0
    %637 = vmatmul.mubr.bf16.gmra.mxu0 %v599
    %v638 = vpop.f32.mrf.mxu0
    %v639 = vadd.f32 0.0, %v638
    %v640 = vpop.f32.mrf.mxu0
    %v641 = vpop.f32.mrf.mxu0
    %v642 = vadd.f32 0.0, %v641
    %v643 = vpop.f32.mrf.mxu0
    %644 = vdwg.mxu0
    %v646 = vsel %vm597, %v582, 0
    %v649 = vsel %vm597, %v590, 0
    %651 = vmatprep.subr.bf16.mxu0 0
    %652 = vmatpush1.bf16.xpose.msra.mxu0 0
    %653 = vmatprep.subr.bf16.mxu0 0
    %654 = vmatpush1.bf16.xpose.msra.mxu0 0
    %655 = vmatprep.subr.bf16.mxu0 0
    %656 = vmatpush1.bf16.xpose.msra.mxu0 0
    %657 = vmatprep.subr.bf16.mxu0 0
    %658 = vmatpush1.bf16.xpose.msra.mxu0 0
    %659 = vmatprep.subr.bf16.mxu0 0
    %660 = vmatpush1.bf16.xpose.msra.mxu0 0
    %661 = vmatprep.subr.bf16.mxu0 0
    %662 = vmatpush1.bf16.xpose.msra.mxu0 0
    %663 = vmatprep.subr.bf16.mxu0 0
    %664 = vmatpush1.bf16.xpose.msra.mxu0 0
    %665 = vmatprep.subr.bf16.mxu0 0
    %666 = vmatpush1.bf16.xpose.msra.mxu0 %v649
    %667 = vmatprep.subr.bf16.mxu0 0
    %668 = vmatpush2.bf16.xpose.msra.mxu0 0
    %669 = vmatprep.subr.bf16.mxu0 0
    %670 = vmatpush2.bf16.xpose.msra.mxu0 0
    %671 = vmatprep.subr.bf16.mxu0 0
    %672 = vmatpush2.bf16.xpose.msra.mxu0 0
    %673 = vmatprep.subr.bf16.mxu0 0
    %674 = vmatpush2.bf16.xpose.msra.mxu0 0
    %675 = vmatprep.subr.bf16.mxu0 0
    %676 = vmatpush2.bf16.xpose.msra.mxu0 0
    %677 = vmatprep.subr.bf16.mxu0 0
    %678 = vmatpush2.bf16.xpose.msra.mxu0 0
    %679 = vmatprep.subr.bf16.mxu0 0
    %680 = vmatpush2.bf16.xpose.msra.mxu0 0
    %681 = vmatprep.subr.bf16.mxu0 0
    %682 = vmatpush2.bf16.xpose.msra.mxu0 0
    %683 = vmatprep.mubr.bf16.mxu0 0
    %684 = vmatmul.mubr.bf16.gmra.mxu0 %v646
    %v685 = vpop.f32.mrf.mxu0
    %v686 = vadd.f32 0.0, %v685
    %v687 = vpop.f32.mrf.mxu0
    %v688 = vpop.f32.mrf.mxu0
    %v689 = vadd.f32 0.0, %v688
    %v690 = vpop.f32.mrf.mxu0
    %691 = vdwg.mxu0
    %v693 = vsel %vm597, %v583, 0
    %v696 = vsel %vm597, %v591, 0
    %698 = vmatprep.subr.bf16.mxu0 0
    %699 = vmatpush1.bf16.xpose.msra.mxu0 0
    %700 = vmatprep.subr.bf16.mxu0 0
    %701 = vmatpush1.bf16.xpose.msra.mxu0 0
    %702 = vmatprep.subr.bf16.mxu0 0
    %703 = vmatpush1.bf16.xpose.msra.mxu0 0
    %704 = vmatprep.subr.bf16.mxu0 0
    %705 = vmatpush1.bf16.xpose.msra.mxu0 0
    %706 = vmatprep.subr.bf16.mxu0 0
    %707 = vmatpush1.bf16.xpose.msra.mxu0 0
    %708 = vmatprep.subr.bf16.mxu0 0
    %709 = vmatpush1.bf16.xpose.msra.mxu0 0
    %710 = vmatprep.subr.bf16.mxu0 0
    %711 = vmatpush1.bf16.xpose.msra.mxu0 0
    %712 = vmatprep.subr.bf16.mxu0 0
    %713 = vmatpush1.bf16.xpose.msra.mxu0 %v696
    %714 = vmatprep.subr.bf16.mxu0 0
    %715 = vmatpush2.bf16.xpose.msra.mxu0 0
    %716 = vmatprep.subr.bf16.mxu0 0
    %717 = vmatpush2.bf16.xpose.msra.mxu0 0
    %718 = vmatprep.subr.bf16.mxu0 0
    %719 = vmatpush2.bf16.xpose.msra.mxu0 0
    %720 = vmatprep.subr.bf16.mxu0 0
    %721 = vmatpush2.bf16.xpose.msra.mxu0 0
    %722 = vmatprep.subr.bf16.mxu0 0
    %723 = vmatpush2.bf16.xpose.msra.mxu0 0
    %724 = vmatprep.subr.bf16.mxu0 0
    %725 = vmatpush2.bf16.xpose.msra.mxu0 0
    %726 = vmatprep.subr.bf16.mxu0 0
    %727 = vmatpush2.bf16.xpose.msra.mxu0 0
    %728 = vmatprep.subr.bf16.mxu0 0
    %729 = vmatpush2.bf16.xpose.msra.mxu0 0
    %730 = vmatprep.mubr.bf16.mxu0 0
    %731 = vmatmul.mubr.bf16.gmra.mxu0 %v693
    %v732 = vpop.f32.mrf.mxu0
    %v733 = vadd.f32 0.0, %v732
    %v734 = vpop.f32.mrf.mxu0
    %v735 = vpop.f32.mrf.mxu0
    %v736 = vadd.f32 0.0, %v735
    %v737 = vpop.f32.mrf.mxu0
    %738 = vdwg.mxu0
    %v740 = vsel %vm597, %v584, 0
    %v743 = vsel %vm597, %v592, 0
    %745 = vmatprep.subr.bf16.mxu0 0
    %746 = vmatpush1.bf16.xpose.msra.mxu0 0
    %747 = vmatprep.subr.bf16.mxu0 0
    %748 = vmatpush1.bf16.xpose.msra.mxu0 0
    %749 = vmatprep.subr.bf16.mxu0 0
    %750 = vmatpush1.bf16.xpose.msra.mxu0 0
    %751 = vmatprep.subr.bf16.mxu0 0
    %752 = vmatpush1.bf16.xpose.msra.mxu0 0
    %753 = vmatprep.subr.bf16.mxu0 0
    %754 = vmatpush1.bf16.xpose.msra.mxu0 0
    %755 = vmatprep.subr.bf16.mxu0 0
    %756 = vmatpush1.bf16.xpose.msra.mxu0 0
    %757 = vmatprep.subr.bf16.mxu0 0
    %758 = vmatpush1.bf16.xpose.msra.mxu0 0
    %759 = vmatprep.subr.bf16.mxu0 0
    %760 = vmatpush1.bf16.xpose.msra.mxu0 %v743
    %761 = vmatprep.subr.bf16.mxu0 0
    %762 = vmatpush2.bf16.xpose.msra.mxu0 0
    %763 = vmatprep.subr.bf16.mxu0 0
    %764 = vmatpush2.bf16.xpose.msra.mxu0 0
    %765 = vmatprep.subr.bf16.mxu0 0
    %766 = vmatpush2.bf16.xpose.msra.mxu0 0
    %767 = vmatprep.subr.bf16.mxu0 0
    %768 = vmatpush2.bf16.xpose.msra.mxu0 0
    %769 = vmatprep.subr.bf16.mxu0 0
    %770 = vmatpush2.bf16.xpose.msra.mxu0 0
    %771 = vmatprep.subr.bf16.mxu0 0
    %772 = vmatpush2.bf16.xpose.msra.mxu0 0
    %773 = vmatprep.subr.bf16.mxu0 0
    %774 = vmatpush2.bf16.xpose.msra.mxu0 0
    %775 = vmatprep.subr.bf16.mxu0 0
    %776 = vmatpush2.bf16.xpose.msra.mxu0 0
    %777 = vmatprep.mubr.bf16.mxu0 0
    %778 = vmatmul.mubr.bf16.gmra.mxu0 %v740
    %v779 = vpop.f32.mrf.mxu0
    %v780 = vadd.f32 0.0, %v779
    %v781 = vpop.f32.mrf.mxu0
    %v782 = vpop.f32.mrf.mxu0
    %v783 = vadd.f32 0.0, %v782
    %v784 = vpop.f32.mrf.mxu0
    %785 = vdwg.mxu0
    %v787 = vsel %vm597, %v585, 0
    %v790 = vsel %vm597, %v593, 0
    %792 = vmatprep.subr.bf16.mxu0 0
    %793 = vmatpush1.bf16.xpose.msra.mxu0 0
    %794 = vmatprep.subr.bf16.mxu0 0
    %795 = vmatpush1.bf16.xpose.msra.mxu0 0
    %796 = vmatprep.subr.bf16.mxu0 0
    %797 = vmatpush1.bf16.xpose.msra.mxu0 0
    %798 = vmatprep.subr.bf16.mxu0 0
    %799 = vmatpush1.bf16.xpose.msra.mxu0 0
    %800 = vmatprep.subr.bf16.mxu0 0
    %801 = vmatpush1.bf16.xpose.msra.mxu0 0
    %802 = vmatprep.subr.bf16.mxu0 0
    %803 = vmatpush1.bf16.xpose.msra.mxu0 0
    %804 = vmatprep.subr.bf16.mxu0 0
    %805 = vmatpush1.bf16.xpose.msra.mxu0 0
    %806 = vmatprep.subr.bf16.mxu0 0
    %807 = vmatpush1.bf16.xpose.msra.mxu0 %v790
    %808 = vmatprep.subr.bf16.mxu0 0
    %809 = vmatpush2.bf16.xpose.msra.mxu0 0
    %810 = vmatprep.subr.bf16.mxu0 0
    %811 = vmatpush2.bf16.xpose.msra.mxu0 0
    %812 = vmatprep.subr.bf16.mxu0 0
    %813 = vmatpush2.bf16.xpose.msra.mxu0 0
    %814 = vmatprep.subr.bf16.mxu0 0
    %815 = vmatpush2.bf16.xpose.msra.mxu0 0
    %816 = vmatprep.subr.bf16.mxu0 0
    %817 = vmatpush2.bf16.xpose.msra.mxu0 0
    %818 = vmatprep.subr.bf16.mxu0 0
    %819 = vmatpush2.bf16.xpose.msra.mxu0 0
    %820 = vmatprep.subr.bf16.mxu0 0
    %821 = vmatpush2.bf16.xpose.msra.mxu0 0
    %822 = vmatprep.subr.bf16.mxu0 0
    %823 = vmatpush2.bf16.xpose.msra.mxu0 0
    %824 = vmatprep.mubr.bf16.mxu0 0
    %825 = vmatmul.mubr.bf16.gmra.mxu0 %v787
    %v826 = vpop.f32.mrf.mxu0
    %v827 = vadd.f32 0.0, %v826
    %v828 = vpop.f32.mrf.mxu0
    %v829 = vpop.f32.mrf.mxu0
    %v830 = vadd.f32 0.0, %v829
    %v831 = vpop.f32.mrf.mxu0
    %832 = vdwg.mxu0
    %v834 = vsel %vm597, %v586, 0
    %v837 = vsel %vm597, %v594, 0
    %839 = vmatprep.subr.bf16.mxu0 0
    %840 = vmatpush1.bf16.xpose.msra.mxu0 0
    %841 = vmatprep.subr.bf16.mxu0 0
    %842 = vmatpush1.bf16.xpose.msra.mxu0 0
    %843 = vmatprep.subr.bf16.mxu0 0
    %844 = vmatpush1.bf16.xpose.msra.mxu0 0
    %845 = vmatprep.subr.bf16.mxu0 0
    %846 = vmatpush1.bf16.xpose.msra.mxu0 0
    %847 = vmatprep.subr.bf16.mxu0 0
    %848 = vmatpush1.bf16.xpose.msra.mxu0 0
    %849 = vmatprep.subr.bf16.mxu0 0
    %850 = vmatpush1.bf16.xpose.msra.mxu0 0
    %851 = vmatprep.subr.bf16.mxu0 0
    %852 = vmatpush1.bf16.xpose.msra.mxu0 0
    %853 = vmatprep.subr.bf16.mxu0 0
    %854 = vmatpush1.bf16.xpose.msra.mxu0 %v837
    %855 = vmatprep.subr.bf16.mxu0 0
    %856 = vmatpush2.bf16.xpose.msra.mxu0 0
    %857 = vmatprep.subr.bf16.mxu0 0
    %858 = vmatpush2.bf16.xpose.msra.mxu0 0
    %859 = vmatprep.subr.bf16.mxu0 0
    %860 = vmatpush2.bf16.xpose.msra.mxu0 0
    %861 = vmatprep.subr.bf16.mxu0 0
    %862 = vmatpush2.bf16.xpose.msra.mxu0 0
    %863 = vmatprep.subr.bf16.mxu0 0
    %864 = vmatpush2.bf16.xpose.msra.mxu0 0
    %865 = vmatprep.subr.bf16.mxu0 0
    %866 = vmatpush2.bf16.xpose.msra.mxu0 0
    %867 = vmatprep.subr.bf16.mxu0 0
    %868 = vmatpush2.bf16.xpose.msra.mxu0 0
    %869 = vmatprep.subr.bf16.mxu0 0
    %870 = vmatpush2.bf16.xpose.msra.mxu0 0
    %871 = vmatprep.mubr.bf16.mxu0 0
    %872 = vmatmul.mubr.bf16.gmra.mxu0 %v834
    %v873 = vpop.f32.mrf.mxu0
    %v874 = vadd.f32 0.0, %v873
    %v875 = vpop.f32.mrf.mxu0
    %v876 = vpop.f32.mrf.mxu0
    %v877 = vadd.f32 0.0, %v876
    %v878 = vpop.f32.mrf.mxu0
    %879 = vdwg.mxu0
    %v881 = vsel %vm597, %v587, 0
    %v884 = vsel %vm597, %v595, 0
    %886 = vmatprep.subr.bf16.mxu0 0
    %887 = vmatpush1.bf16.xpose.msra.mxu0 0
    %888 = vmatprep.subr.bf16.mxu0 0
    %889 = vmatpush1.bf16.xpose.msra.mxu0 0
    %890 = vmatprep.subr.bf16.mxu0 0
    %891 = vmatpush1.bf16.xpose.msra.mxu0 0
    %892 = vmatprep.subr.bf16.mxu0 0
    %893 = vmatpush1.bf16.xpose.msra.mxu0 0
    %894 = vmatprep.subr.bf16.mxu0 0
    %895 = vmatpush1.bf16.xpose.msra.mxu0 0
    %896 = vmatprep.subr.bf16.mxu0 0
    %897 = vmatpush1.bf16.xpose.msra.mxu0 0
    %898 = vmatprep.subr.bf16.mxu0 0
    %899 = vmatpush1.bf16.xpose.msra.mxu0 0
    %900 = vmatprep.subr.bf16.mxu0 0
    %901 = vmatpush1.bf16.xpose.msra.mxu0 %v884
    %902 = vmatprep.subr.bf16.mxu0 0
    %903 = vmatpush2.bf16.xpose.msra.mxu0 0
    %904 = vmatprep.subr.bf16.mxu0 0
    %905 = vmatpush2.bf16.xpose.msra.mxu0 0
    %906 = vmatprep.subr.bf16.mxu0 0
    %907 = vmatpush2.bf16.xpose.msra.mxu0 0
    %908 = vmatprep.subr.bf16.mxu0 0
    %909 = vmatpush2.bf16.xpose.msra.mxu0 0
    %910 = vmatprep.subr.bf16.mxu0 0
    %911 = vmatpush2.bf16.xpose.msra.mxu0 0
    %912 = vmatprep.subr.bf16.mxu0 0
    %913 = vmatpush2.bf16.xpose.msra.mxu0 0
    %914 = vmatprep.subr.bf16.mxu0 0
    %915 = vmatpush2.bf16.xpose.msra.mxu0 0
    %916 = vmatprep.subr.bf16.mxu0 0
    %917 = vmatpush2.bf16.xpose.msra.mxu0 0
    %918 = vmatprep.mubr.bf16.mxu0 0
    %919 = vmatmul.mubr.bf16.gmra.mxu0 %v881
    %v920 = vpop.f32.mrf.mxu0
    %v921 = vadd.f32 0.0, %v920
    %v922 = vpop.f32.mrf.mxu0
    %v923 = vpop.f32.mrf.mxu0
    %v924 = vadd.f32 0.0, %v923
    %v925 = vpop.f32.mrf.mxu0
    %926 = vdwg.mxu0
    %v928 = vsel %vm597, %v588, 0
    %v931 = vsel %vm597, %v596, 0
    %933 = vmatprep.subr.bf16.mxu0 0
    %934 = vmatpush1.bf16.xpose.msra.mxu0 0
    %935 = vmatprep.subr.bf16.mxu0 0
    %936 = vmatpush1.bf16.xpose.msra.mxu0 0
    %937 = vmatprep.subr.bf16.mxu0 0
    %938 = vmatpush1.bf16.xpose.msra.mxu0 0
    %939 = vmatprep.subr.bf16.mxu0 0
    %940 = vmatpush1.bf16.xpose.msra.mxu0 0
    %941 = vmatprep.subr.bf16.mxu0 0
    %942 = vmatpush1.bf16.xpose.msra.mxu0 0
    %943 = vmatprep.subr.bf16.mxu0 0
    %944 = vmatpush1.bf16.xpose.msra.mxu0 0
    %945 = vmatprep.subr.bf16.mxu0 0
    %946 = vmatpush1.bf16.xpose.msra.mxu0 0
    %947 = vmatprep.subr.bf16.mxu0 0
    %948 = vmatpush1.bf16.xpose.msra.mxu0 %v931
    %949 = vmatprep.subr.bf16.mxu0 0
    %950 = vmatpush2.bf16.xpose.msra.mxu0 0
    %951 = vmatprep.subr.bf16.mxu0 0
    %952 = vmatpush2.bf16.xpose.msra.mxu0 0
    %953 = vmatprep.subr.bf16.mxu0 0
    %954 = vmatpush2.bf16.xpose.msra.mxu0 0
    %955 = vmatprep.subr.bf16.mxu0 0
    %956 = vmatpush2.bf16.xpose.msra.mxu0 0
    %957 = vmatprep.subr.bf16.mxu0 0
    %958 = vmatpush2.bf16.xpose.msra.mxu0 0
    %959 = vmatprep.subr.bf16.mxu0 0
    %960 = vmatpush2.bf16.xpose.msra.mxu0 0
    %961 = vmatprep.subr.bf16.mxu0 0
    %962 = vmatpush2.bf16.xpose.msra.mxu0 0
    %963 = vmatprep.subr.bf16.mxu0 0
    %964 = vmatpush2.bf16.xpose.msra.mxu0 0
    %965 = vmatprep.mubr.bf16.mxu0 0
    %966 = vmatmul.mubr.bf16.gmra.mxu0 %v928
    %v967 = vpop.f32.mrf.mxu0
    %v968 = vadd.f32 0.0, %v967
    %v969 = vpop.f32.mrf.mxu0
    %v970 = vpop.f32.mrf.mxu0
    %v971 = vadd.f32 0.0, %v970
    %v972 = vpop.f32.mrf.mxu0
    %973 = vdwg.mxu0
    %v974 = vmul.f32 %v639, 0.17677669
    %v975 = vmul.f32 %v642, 0.17677669
    %v976 = vmul.f32 %v686, 0.17677669
    %v977 = vmul.f32 %v689, 0.17677669
    %v978 = vmul.f32 %v733, 0.17677669
    %v979 = vmul.f32 %v736, 0.17677669
    %v980 = vmul.f32 %v780, 0.17677669
    %v981 = vmul.f32 %v783, 0.17677669
    %v982 = vmul.f32 %v827, 0.17677669
    %v983 = vmul.f32 %v830, 0.17677669
    %v984 = vmul.f32 %v874, 0.17677669
    %v985 = vmul.f32 %v877, 0.17677669
    %v986 = vmul.f32 %v921, 0.17677669
    %v987 = vmul.f32 %v924, 0.17677669
    %v988 = vmul.f32 %v968, 0.17677669
    %v989 = vmul.f32 %v971, 0.17677669
    %v998 = vlaneseq
    %v999 = vshrl.u32 %v998, 7
    %v1000 = vsub.s32 0, %v999
    %v1001 = vrot.slane %v172, %v1000
    %v1002 = vlaneseq
    %v1003 = vshrl.u32 %v1002, 7
    %v1004 = vsub.s32 0, %v1003
    %v1005 = vrot.slane %v173, %v1004
    %v1006 = vlaneseq
    %v1007 = vshrl.u32 %v1006, 7
    %v1008 = vsub.s32 0, %v1007
    %v1009 = vrot.slane %v174, %v1008
    %v1010 = vlaneseq
    %v1011 = vshrl.u32 %v1010, 7
    %v1012 = vsub.s32 0, %v1011
    %v1013 = vrot.slane %v175, %v1012
    %v1014 = vlaneseq
    %v1015 = vshrl.u32 %v1014, 7
    %v1016 = vsub.s32 0, %v1015
    %v1017 = vrot.slane %v176, %v1016
    %v1018 = vlaneseq
    %v1019 = vshrl.u32 %v1018, 7
    %v1020 = vsub.s32 0, %v1019
    %v1021 = vrot.slane %v177, %v1020
    %v1022 = vlaneseq
    %v1023 = vshrl.u32 %v1022, 7
    %v1024 = vsub.s32 0, %v1023
    %v1025 = vrot.slane %v178, %v1024
    %v1026 = vlaneseq
    %v1027 = vshrl.u32 %v1026, 7
    %v1028 = vsub.s32 0, %v1027
    %v1029 = vrot.slane %v179, %v1028
    %v1038 = vadd.f32 %v974, %v1001
    %v1039 = vadd.f32 %v975, %v1001
    %v1040 = vadd.f32 %v976, %v1005
    %v1041 = vadd.f32 %v977, %v1005
    %v1042 = vadd.f32 %v978, %v1009
    %v1043 = vadd.f32 %v979, %v1009
    %v1044 = vadd.f32 %v980, %v1013
    %v1045 = vadd.f32 %v981, %v1013
    %v1046 = vadd.f32 %v982, %v1017
    %v1047 = vadd.f32 %v983, %v1017
    %v1048 = vadd.f32 %v984, %v1021
    %v1049 = vadd.f32 %v985, %v1021
    %v1050 = vadd.f32 %v986, %v1025
    %v1051 = vadd.f32 %v987, %v1025
    %v1052 = vadd.f32 %v988, %v1029
    %v1053 = vadd.f32 %v989, %v1029
    %vm1054 = vcmask 130048
    %v1055 = vsel %vm1054, %v1038, -inf
    %1056 = vmax.xlane.f32.xlu0 %v1055
    %v1057 = vpop.xlane.xlu0 %1056
    %v1058 = vsel %vm1054, %v1039, -inf
    %1059 = vmax.xlane.f32.xlu0 %v1058
    %v1060 = vpop.xlane.xlu0 %1059
    %v1061 = vsel %vm1054, %v1040, -inf
    %1062 = vmax.xlane.f32.xlu0 %v1061
    %v1063 = vpop.xlane.xlu0 %1062
    %v1064 = vsel %vm1054, %v1041, -inf
    %1065 = vmax.xlane.f32.xlu0 %v1064
    %v1066 = vpop.xlane.xlu0 %1065
    %v1067 = vsel %vm1054, %v1042, -inf
    %1068 = vmax.xlane.f32.xlu0 %v1067
    %v1069 = vpop.xlane.xlu0 %1068
    %v1070 = vsel %vm1054, %v1043, -inf
    %1071 = vmax.xlane.f32.xlu0 %v1070
    %v1072 = vpop.xlane.xlu0 %1071
    %v1073 = vsel %vm1054, %v1044, -inf
    %1074 = vmax.xlane.f32.xlu0 %v1073
    %v1075 = vpop.xlane.xlu0 %1074
    %v1076 = vsel %vm1054, %v1045, -inf
    %1077 = vmax.xlane.f32.xlu0 %v1076
    %v1078 = vpop.xlane.xlu0 %1077
    %v1079 = vsel %vm1054, %v1046, -inf
    %1080 = vmax.xlane.f32.xlu0 %v1079
    %v1081 = vpop.xlane.xlu0 %1080
    %v1082 = vsel %vm1054, %v1047, -inf
    %1083 = vmax.xlane.f32.xlu0 %v1082
    %v1084 = vpop.xlane.xlu0 %1083
    %v1085 = vsel %vm1054, %v1048, -inf
    %1086 = vmax.xlane.f32.xlu0 %v1085
    %v1087 = vpop.xlane.xlu0 %1086
    %v1088 = vsel %vm1054, %v1049, -inf
    %1089 = vmax.xlane.f32.xlu0 %v1088
    %v1090 = vpop.xlane.xlu0 %1089
    %v1091 = vsel %vm1054, %v1050, -inf
    %1092 = vmax.xlane.f32.xlu0 %v1091
    %v1093 = vpop.xlane.xlu0 %1092
    %v1094 = vsel %vm1054, %v1051, -inf
    %1095 = vmax.xlane.f32.xlu0 %v1094
    %v1096 = vpop.xlane.xlu0 %1095
    %v1097 = vsel %vm1054, %v1052, -inf
    %1098 = vmax.xlane.f32.xlu0 %v1097
    %v1099 = vpop.xlane.xlu0 %1098
    %v1100 = vsel %vm1054, %v1053, -inf
    %1101 = vmax.xlane.f32.xlu0 %v1100
    %v1102 = vpop.xlane.xlu0 %1101
    %v1103 = vsub.f32 %v1038, %v1057
    %v1104 = vsub.f32 %v1039, %v1060
    %v1105 = vsub.f32 %v1040, %v1063
    %v1106 = vsub.f32 %v1041, %v1066
    %v1107 = vsub.f32 %v1042, %v1069
    %v1108 = vsub.f32 %v1043, %v1072
    %v1109 = vsub.f32 %v1044, %v1075
    %v1110 = vsub.f32 %v1045, %v1078
    %v1111 = vsub.f32 %v1046, %v1081
    %v1112 = vsub.f32 %v1047, %v1084
    %v1113 = vsub.f32 %v1048, %v1087
    %v1114 = vsub.f32 %v1049, %v1090
    %v1115 = vsub.f32 %v1050, %v1093
    %v1116 = vsub.f32 %v1051, %v1096
    %v1117 = vsub.f32 %v1052, %v1099
    %v1118 = vsub.f32 %v1053, %v1102
    %v1119 = vmul.f32 %v1103, 1.442695
    %v1120 = vpow.pop %v1119
    %v1121 = vmul.f32 %v1104, 1.442695
    %v1122 = vpow.pop %v1121
    %v1123 = vmul.f32 %v1105, 1.442695
    %v1124 = vpow.pop %v1123
    %v1125 = vmul.f32 %v1106, 1.442695
    %v1126 = vpow.pop %v1125
    %v1127 = vmul.f32 %v1107, 1.442695
    %v1128 = vpow.pop %v1127
    %v1129 = vmul.f32 %v1108, 1.442695
    %v1130 = vpow.pop %v1129
    %v1131 = vmul.f32 %v1109, 1.442695
    %v1132 = vpow.pop %v1131
    %v1133 = vmul.f32 %v1110, 1.442695
    %v1134 = vpow.pop %v1133
    %v1135 = vmul.f32 %v1111, 1.442695
    %v1136 = vpow.pop %v1135
    %v1137 = vmul.f32 %v1112, 1.442695
    %v1138 = vpow.pop %v1137
    %v1139 = vmul.f32 %v1113, 1.442695
    %v1140 = vpow.pop %v1139
    %v1141 = vmul.f32 %v1114, 1.442695
    %v1142 = vpow.pop %v1141
    %v1143 = vmul.f32 %v1115, 1.442695
    %v1144 = vpow.pop %v1143
    %v1145 = vmul.f32 %v1116, 1.442695
    %v1146 = vpow.pop %v1145
    %v1147 = vmul.f32 %v1117, 1.442695
    %v1148 = vpow.pop %v1147
    %v1149 = vmul.f32 %v1118, 1.442695
    %v1150 = vpow.pop %v1149
    %v1151 = vsel %vm1054, %v1120, 0.0
    %1152 = vadd.xlane.f32.xlu0 %v1151
    %v1153 = vpop.xlane.xlu0 %1152
    %v1154 = vsel %vm1054, %v1122, 0.0
    %1155 = vadd.xlane.f32.xlu0 %v1154
    %v1156 = vpop.xlane.xlu0 %1155
    %v1157 = vsel %vm1054, %v1124, 0.0
    %1158 = vadd.xlane.f32.xlu0 %v1157
    %v1159 = vpop.xlane.xlu0 %1158
    %v1160 = vsel %vm1054, %v1126, 0.0
    %1161 = vadd.xlane.f32.xlu0 %v1160
    %v1162 = vpop.xlane.xlu0 %1161
    %v1163 = vsel %vm1054, %v1128, 0.0
    %1164 = vadd.xlane.f32.xlu0 %v1163
    %v1165 = vpop.xlane.xlu0 %1164
    %v1166 = vsel %vm1054, %v1130, 0.0
    %1167 = vadd.xlane.f32.xlu0 %v1166
    %v1168 = vpop.xlane.xlu0 %1167
    %v1169 = vsel %vm1054, %v1132, 0.0
    %1170 = vadd.xlane.f32.xlu0 %v1169
    %v1171 = vpop.xlane.xlu0 %1170
    %v1172 = vsel %vm1054, %v1134, 0.0
    %1173 = vadd.xlane.f32.xlu0 %v1172
    %v1174 = vpop.xlane.xlu0 %1173
    %v1175 = vsel %vm1054, %v1136, 0.0
    %1176 = vadd.xlane.f32.xlu0 %v1175
    %v1177 = vpop.xlane.xlu0 %1176
    %v1178 = vsel %vm1054, %v1138, 0.0
    %1179 = vadd.xlane.f32.xlu0 %v1178
    %v1180 = vpop.xlane.xlu0 %1179
    %v1181 = vsel %vm1054, %v1140, 0.0
    %1182 = vadd.xlane.f32.xlu0 %v1181
    %v1183 = vpop.xlane.xlu0 %1182
    %v1184 = vsel %vm1054, %v1142, 0.0
    %1185 = vadd.xlane.f32.xlu0 %v1184
    %v1186 = vpop.xlane.xlu0 %1185
    %v1187 = vsel %vm1054, %v1144, 0.0
    %1188 = vadd.xlane.f32.xlu0 %v1187
    %v1189 = vpop.xlane.xlu0 %1188
    %v1190 = vsel %vm1054, %v1146, 0.0
    %1191 = vadd.xlane.f32.xlu0 %v1190
    %v1192 = vpop.xlane.xlu0 %1191
    %v1193 = vsel %vm1054, %v1148, 0.0
    %1194 = vadd.xlane.f32.xlu0 %v1193
    %v1195 = vpop.xlane.xlu0 %1194
    %v1196 = vsel %vm1054, %v1150, 0.0
    %1197 = vadd.xlane.f32.xlu0 %v1196
    %v1198 = vpop.xlane.xlu0 %1197
    %v1199 = vrcp.pop %v1153
    %v1200 = vrcp.pop %v1156
    %v1201 = vrcp.pop %v1159
    %v1202 = vrcp.pop %v1162
    %v1203 = vrcp.pop %v1165
    %v1204 = vrcp.pop %v1168
    %v1205 = vrcp.pop %v1171
    %v1206 = vrcp.pop %v1174
    %v1207 = vrcp.pop %v1177
    %v1208 = vrcp.pop %v1180
    %v1209 = vrcp.pop %v1183
    %v1210 = vrcp.pop %v1186
    %v1211 = vrcp.pop %v1189
    %v1212 = vrcp.pop %v1192
    %v1213 = vrcp.pop %v1195
    %v1214 = vrcp.pop %v1198
    %v1215 = vmul.f32 %v1120, %v1199
    %v1216 = vmul.f32 %v1122, %v1200
    %v1217 = vmul.f32 %v1124, %v1201
    %v1218 = vmul.f32 %v1126, %v1202
    %v1219 = vmul.f32 %v1128, %v1203
    %v1220 = vmul.f32 %v1130, %v1204
    %v1221 = vmul.f32 %v1132, %v1205
    %v1222 = vmul.f32 %v1134, %v1206
    %v1223 = vmul.f32 %v1136, %v1207
    %v1224 = vmul.f32 %v1138, %v1208
    %v1225 = vmul.f32 %v1140, %v1209
    %v1226 = vmul.f32 %v1142, %v1210
    %v1227 = vmul.f32 %v1144, %v1211
    %v1228 = vmul.f32 %v1146, %v1212
    %v1229 = vmul.f32 %v1148, %v1213
    %v1230 = vmul.f32 %v1150, %v1214
    %v1231 = vpack.c.bf16 %v1216, %v1215
    %v1232 = vpack.c.bf16 %v1218, %v1217
    %v1233 = vpack.c.bf16 %v1220, %v1219
    %v1234 = vpack.c.bf16 %v1222, %v1221
    %v1235 = vpack.c.bf16 %v1224, %v1223
    %v1236 = vpack.c.bf16 %v1226, %v1225
    %v1237 = vpack.c.bf16 %v1228, %v1227
    %v1238 = vpack.c.bf16 %v1230, %v1229
    %v1239 = vpack.c.bf16 %v450, %v447
    %v1240 = vpack.c.bf16 %v458, %v455
    %v1241 = vpack.c.bf16 %v548, %v546
    %v1242 = vpack.c.bf16 %v552, %v550
    %v1243 = vpack.c.bf16 %v560, %v558
    %v1244 = vpack.c.bf16 %v564, %v562
    %v1245 = vpack.c.bf16 %v572, %v570
    %v1246 = vpack.c.bf16 %v576, %v574
    %v1248 = vsel %vm1054, %v1231, 0
    %1250 = vmatprep.subr.bf16.mxu0 0
    %1251 = vmatpush1.bf16.msra.mxu0 0
    %1252 = vmatprep.subr.bf16.mxu0 0
    %1253 = vmatpush1.bf16.msra.mxu0 0
    %1254 = vmatprep.subr.bf16.mxu0 0
    %1255 = vmatpush1.bf16.msra.mxu0 0
    %1256 = vmatprep.subr.bf16.mxu0 0
    %1257 = vmatpush1.bf16.msra.mxu0 0
    %1258 = vmatprep.subr.bf16.mxu0 0
    %1259 = vmatpush1.bf16.msra.mxu0 0
    %1260 = vmatprep.subr.bf16.mxu0 0
    %1261 = vmatpush1.bf16.msra.mxu0 0
    %1262 = vmatprep.subr.bf16.mxu0 0
    %1263 = vmatpush1.bf16.msra.mxu0 0
    %1264 = vmatprep.subr.bf16.mxu0 0
    %1265 = vmatpush1.bf16.msra.mxu0 %v1239
    %1266 = vmatprep.subr.bf16.mxu0 0
    %1267 = vmatpush2.bf16.msra.mxu0 0
    %1268 = vmatprep.subr.bf16.mxu0 0
    %1269 = vmatpush2.bf16.msra.mxu0 0
    %1270 = vmatprep.subr.bf16.mxu0 0
    %1271 = vmatpush2.bf16.msra.mxu0 0
    %1272 = vmatprep.subr.bf16.mxu0 0
    %1273 = vmatpush2.bf16.msra.mxu0 0
    %1274 = vmatprep.subr.bf16.mxu0 0
    %1275 = vmatpush2.bf16.msra.mxu0 0
    %1276 = vmatprep.subr.bf16.mxu0 0
    %1277 = vmatpush2.bf16.msra.mxu0 0
    %1278 = vmatprep.subr.bf16.mxu0 0
    %1279 = vmatpush2.bf16.msra.mxu0 0
    %1280 = vmatprep.subr.bf16.mxu0 0
    %1281 = vmatpush2.bf16.msra.mxu0 0
    %1282 = vmatprep.mubr.bf16.mxu0 0
    %1283 = vmatmul.mubr.bf16.gmra.mxu0 %v1248
    %v1284 = vpop.f32.mrf.mxu0
    %v1285 = vadd.f32 0.0, %v1284
    %v1286 = vpop.f32.mrf.mxu0
    %v1287 = vpop.f32.mrf.mxu0
    %v1288 = vadd.f32 0.0, %v1287
    %v1289 = vpop.f32.mrf.mxu0
    %1290 = vdwg.mxu0
    %v1292 = vsel %vm1054, %v1232, 0
    %1294 = vmatprep.subr.bf16.mxu0 0
    %1295 = vmatpush1.bf16.msra.mxu0 0
    %1296 = vmatprep.subr.bf16.mxu0 0
    %1297 = vmatpush1.bf16.msra.mxu0 0
    %1298 = vmatprep.subr.bf16.mxu0 0
    %1299 = vmatpush1.bf16.msra.mxu0 0
    %1300 = vmatprep.subr.bf16.mxu0 0
    %1301 = vmatpush1.bf16.msra.mxu0 0
    %1302 = vmatprep.subr.bf16.mxu0 0
    %1303 = vmatpush1.bf16.msra.mxu0 0
    %1304 = vmatprep.subr.bf16.mxu0 0
    %1305 = vmatpush1.bf16.msra.mxu0 0
    %1306 = vmatprep.subr.bf16.mxu0 0
    %1307 = vmatpush1.bf16.msra.mxu0 0
    %1308 = vmatprep.subr.bf16.mxu0 0
    %1309 = vmatpush1.bf16.msra.mxu0 %v1240
    %1310 = vmatprep.subr.bf16.mxu0 0
    %1311 = vmatpush2.bf16.msra.mxu0 0
    %1312 = vmatprep.subr.bf16.mxu0 0
    %1313 = vmatpush2.bf16.msra.mxu0 0
    %1314 = vmatprep.subr.bf16.mxu0 0
    %1315 = vmatpush2.bf16.msra.mxu0 0
    %1316 = vmatprep.subr.bf16.mxu0 0
    %1317 = vmatpush2.bf16.msra.mxu0 0
    %1318 = vmatprep.subr.bf16.mxu0 0
    %1319 = vmatpush2.bf16.msra.mxu0 0
    %1320 = vmatprep.subr.bf16.mxu0 0
    %1321 = vmatpush2.bf16.msra.mxu0 0
    %1322 = vmatprep.subr.bf16.mxu0 0
    %1323 = vmatpush2.bf16.msra.mxu0 0
    %1324 = vmatprep.subr.bf16.mxu0 0
    %1325 = vmatpush2.bf16.msra.mxu0 0
    %1326 = vmatprep.mubr.bf16.mxu0 0
    %1327 = vmatmul.mubr.bf16.gmra.mxu0 %v1292
    %v1328 = vpop.f32.mrf.mxu0
    %v1329 = vadd.f32 0.0, %v1328
    %v1330 = vpop.f32.mrf.mxu0
    %v1331 = vpop.f32.mrf.mxu0
    %v1332 = vadd.f32 0.0, %v1331
    %v1333 = vpop.f32.mrf.mxu0
    %1334 = vdwg.mxu0
    %v1336 = vsel %vm1054, %v1233, 0
    %1338 = vmatprep.subr.bf16.mxu0 0
    %1339 = vmatpush1.bf16.msra.mxu0 0
    %1340 = vmatprep.subr.bf16.mxu0 0
    %1341 = vmatpush1.bf16.msra.mxu0 0
    %1342 = vmatprep.subr.bf16.mxu0 0
    %1343 = vmatpush1.bf16.msra.mxu0 0
    %1344 = vmatprep.subr.bf16.mxu0 0
    %1345 = vmatpush1.bf16.msra.mxu0 0
    %1346 = vmatprep.subr.bf16.mxu0 0
    %1347 = vmatpush1.bf16.msra.mxu0 0
    %1348 = vmatprep.subr.bf16.mxu0 0
    %1349 = vmatpush1.bf16.msra.mxu0 0
    %1350 = vmatprep.subr.bf16.mxu0 0
    %1351 = vmatpush1.bf16.msra.mxu0 0
    %1352 = vmatprep.subr.bf16.mxu0 0
    %1353 = vmatpush1.bf16.msra.mxu0 %v1241
    %1354 = vmatprep.subr.bf16.mxu0 0
    %1355 = vmatpush2.bf16.msra.mxu0 0
    %1356 = vmatprep.subr.bf16.mxu0 0
    %1357 = vmatpush2.bf16.msra.mxu0 0
    %1358 = vmatprep.subr.bf16.mxu0 0
    %1359 = vmatpush2.bf16.msra.mxu0 0
    %1360 = vmatprep.subr.bf16.mxu0 0
    %1361 = vmatpush2.bf16.msra.mxu0 0
    %1362 = vmatprep.subr.bf16.mxu0 0
    %1363 = vmatpush2.bf16.msra.mxu0 0
    %1364 = vmatprep.subr.bf16.mxu0 0
    %1365 = vmatpush2.bf16.msra.mxu0 0
    %1366 = vmatprep.subr.bf16.mxu0 0
    %1367 = vmatpush2.bf16.msra.mxu0 0
    %1368 = vmatprep.subr.bf16.mxu0 0
    %1369 = vmatpush2.bf16.msra.mxu0 0
    %1370 = vmatprep.mubr.bf16.mxu0 0
    %1371 = vmatmul.mubr.bf16.gmra.mxu0 %v1336
    %v1372 = vpop.f32.mrf.mxu0
    %v1373 = vadd.f32 0.0, %v1372
    %v1374 = vpop.f32.mrf.mxu0
    %v1375 = vpop.f32.mrf.mxu0
    %v1376 = vadd.f32 0.0, %v1375
    %v1377 = vpop.f32.mrf.mxu0
    %1378 = vdwg.mxu0
    %v1380 = vsel %vm1054, %v1234, 0
    %1382 = vmatprep.subr.bf16.mxu0 0
    %1383 = vmatpush1.bf16.msra.mxu0 0
    %1384 = vmatprep.subr.bf16.mxu0 0
    %1385 = vmatpush1.bf16.msra.mxu0 0
    %1386 = vmatprep.subr.bf16.mxu0 0
    %1387 = vmatpush1.bf16.msra.mxu0 0
    %1388 = vmatprep.subr.bf16.mxu0 0
    %1389 = vmatpush1.bf16.msra.mxu0 0
    %1390 = vmatprep.subr.bf16.mxu0 0
    %1391 = vmatpush1.bf16.msra.mxu0 0
    %1392 = vmatprep.subr.bf16.mxu0 0
    %1393 = vmatpush1.bf16.msra.mxu0 0
    %1394 = vmatprep.subr.bf16.mxu0 0
    %1395 = vmatpush1.bf16.msra.mxu0 0
    %1396 = vmatprep.subr.bf16.mxu0 0
    %1397 = vmatpush1.bf16.msra.mxu0 %v1242
    %1398 = vmatprep.subr.bf16.mxu0 0
    %1399 = vmatpush2.bf16.msra.mxu0 0
    %1400 = vmatprep.subr.bf16.mxu0 0
    %1401 = vmatpush2.bf16.msra.mxu0 0
    %1402 = vmatprep.subr.bf16.mxu0 0
    %1403 = vmatpush2.bf16.msra.mxu0 0
    %1404 = vmatprep.subr.bf16.mxu0 0
    %1405 = vmatpush2.bf16.msra.mxu0 0
    %1406 = vmatprep.subr.bf16.mxu0 0
    %1407 = vmatpush2.bf16.msra.mxu0 0
    %1408 = vmatprep.subr.bf16.mxu0 0
    %1409 = vmatpush2.bf16.msra.mxu0 0
    %1410 = vmatprep.subr.bf16.mxu0 0
    %1411 = vmatpush2.bf16.msra.mxu0 0
    %1412 = vmatprep.subr.bf16.mxu0 0
    %1413 = vmatpush2.bf16.msra.mxu0 0
    %1414 = vmatprep.mubr.bf16.mxu0 0
    %1415 = vmatmul.mubr.bf16.gmra.mxu0 %v1380
    %v1416 = vpop.f32.mrf.mxu0
    %v1417 = vadd.f32 0.0, %v1416
    %v1418 = vpop.f32.mrf.mxu0
    %v1419 = vpop.f32.mrf.mxu0
    %v1420 = vadd.f32 0.0, %v1419
    %v1421 = vpop.f32.mrf.mxu0
    %1422 = vdwg.mxu0
    %v1424 = vsel %vm1054, %v1235, 0
    %1426 = vmatprep.subr.bf16.mxu0 0
    %1427 = vmatpush1.bf16.msra.mxu0 0
    %1428 = vmatprep.subr.bf16.mxu0 0
    %1429 = vmatpush1.bf16.msra.mxu0 0
    %1430 = vmatprep.subr.bf16.mxu0 0
    %1431 = vmatpush1.bf16.msra.mxu0 0
    %1432 = vmatprep.subr.bf16.mxu0 0
    %1433 = vmatpush1.bf16.msra.mxu0 0
    %1434 = vmatprep.subr.bf16.mxu0 0
    %1435 = vmatpush1.bf16.msra.mxu0 0
    %1436 = vmatprep.subr.bf16.mxu0 0
    %1437 = vmatpush1.bf16.msra.mxu0 0
    %1438 = vmatprep.subr.bf16.mxu0 0
    %1439 = vmatpush1.bf16.msra.mxu0 0
    %1440 = vmatprep.subr.bf16.mxu0 0
    %1441 = vmatpush1.bf16.msra.mxu0 %v1243
    %1442 = vmatprep.subr.bf16.mxu0 0
    %1443 = vmatpush2.bf16.msra.mxu0 0
    %1444 = vmatprep.subr.bf16.mxu0 0
    %1445 = vmatpush2.bf16.msra.mxu0 0
    %1446 = vmatprep.subr.bf16.mxu0 0
    %1447 = vmatpush2.bf16.msra.mxu0 0
    %1448 = vmatprep.subr.bf16.mxu0 0
    %1449 = vmatpush2.bf16.msra.mxu0 0
    %1450 = vmatprep.subr.bf16.mxu0 0
    %1451 = vmatpush2.bf16.msra.mxu0 0
    %1452 = vmatprep.subr.bf16.mxu0 0
    %1453 = vmatpush2.bf16.msra.mxu0 0
    %1454 = vmatprep.subr.bf16.mxu0 0
    %1455 = vmatpush2.bf16.msra.mxu0 0
    %1456 = vmatprep.subr.bf16.mxu0 0
    %1457 = vmatpush2.bf16.msra.mxu0 0
    %1458 = vmatprep.mubr.bf16.mxu0 0
    %1459 = vmatmul.mubr.bf16.gmra.mxu0 %v1424
    %v1460 = vpop.f32.mrf.mxu0
    %v1461 = vadd.f32 0.0, %v1460
    %v1462 = vpop.f32.mrf.mxu0
    %v1463 = vpop.f32.mrf.mxu0
    %v1464 = vadd.f32 0.0, %v1463
    %v1465 = vpop.f32.mrf.mxu0
    %1466 = vdwg.mxu0
    %v1468 = vsel %vm1054, %v1236, 0
    %1470 = vmatprep.subr.bf16.mxu0 0
    %1471 = vmatpush1.bf16.msra.mxu0 0
    %1472 = vmatprep.subr.bf16.mxu0 0
    %1473 = vmatpush1.bf16.msra.mxu0 0
    %1474 = vmatprep.subr.bf16.mxu0 0
    %1475 = vmatpush1.bf16.msra.mxu0 0
    %1476 = vmatprep.subr.bf16.mxu0 0
    %1477 = vmatpush1.bf16.msra.mxu0 0
    %1478 = vmatprep.subr.bf16.mxu0 0
    %1479 = vmatpush1.bf16.msra.mxu0 0
    %1480 = vmatprep.subr.bf16.mxu0 0
    %1481 = vmatpush1.bf16.msra.mxu0 0
    %1482 = vmatprep.subr.bf16.mxu0 0
    %1483 = vmatpush1.bf16.msra.mxu0 0
    %1484 = vmatprep.subr.bf16.mxu0 0
    %1485 = vmatpush1.bf16.msra.mxu0 %v1244
    %1486 = vmatprep.subr.bf16.mxu0 0
    %1487 = vmatpush2.bf16.msra.mxu0 0
    %1488 = vmatprep.subr.bf16.mxu0 0
    %1489 = vmatpush2.bf16.msra.mxu0 0
    %1490 = vmatprep.subr.bf16.mxu0 0
    %1491 = vmatpush2.bf16.msra.mxu0 0
    %1492 = vmatprep.subr.bf16.mxu0 0
    %1493 = vmatpush2.bf16.msra.mxu0 0
    %1494 = vmatprep.subr.bf16.mxu0 0
    %1495 = vmatpush2.bf16.msra.mxu0 0
    %1496 = vmatprep.subr.bf16.mxu0 0
    %1497 = vmatpush2.bf16.msra.mxu0 0
    %1498 = vmatprep.subr.bf16.mxu0 0
    %1499 = vmatpush2.bf16.msra.mxu0 0
    %1500 = vmatprep.subr.bf16.mxu0 0
    %1501 = vmatpush2.bf16.msra.mxu0 0
    %1502 = vmatprep.mubr.bf16.mxu0 0
    %1503 = vmatmul.mubr.bf16.gmra.mxu0 %v1468
    %v1504 = vpop.f32.mrf.mxu0
    %v1505 = vadd.f32 0.0, %v1504
    %v1506 = vpop.f32.mrf.mxu0
    %v1507 = vpop.f32.mrf.mxu0
    %v1508 = vadd.f32 0.0, %v1507
    %v1509 = vpop.f32.mrf.mxu0
    %1510 = vdwg.mxu0
    %v1512 = vsel %vm1054, %v1237, 0
    %1514 = vmatprep.subr.bf16.mxu0 0
    %1515 = vmatpush1.bf16.msra.mxu0 0
    %1516 = vmatprep.subr.bf16.mxu0 0
    %1517 = vmatpush1.bf16.msra.mxu0 0
    %1518 = vmatprep.subr.bf16.mxu0 0
    %1519 = vmatpush1.bf16.msra.mxu0 0
    %1520 = vmatprep.subr.bf16.mxu0 0
    %1521 = vmatpush1.bf16.msra.mxu0 0
    %1522 = vmatprep.subr.bf16.mxu0 0
    %1523 = vmatpush1.bf16.msra.mxu0 0
    %1524 = vmatprep.subr.bf16.mxu0 0
    %1525 = vmatpush1.bf16.msra.mxu0 0
    %1526 = vmatprep.subr.bf16.mxu0 0
    %1527 = vmatpush1.bf16.msra.mxu0 0
    %1528 = vmatprep.subr.bf16.mxu0 0
    %1529 = vmatpush1.bf16.msra.mxu0 %v1245
    %1530 = vmatprep.subr.bf16.mxu0 0
    %1531 = vmatpush2.bf16.msra.mxu0 0
    %1532 = vmatprep.subr.bf16.mxu0 0
    %1533 = vmatpush2.bf16.msra.mxu0 0
    %1534 = vmatprep.subr.bf16.mxu0 0
    %1535 = vmatpush2.bf16.msra.mxu0 0
    %1536 = vmatprep.subr.bf16.mxu0 0
    %1537 = vmatpush2.bf16.msra.mxu0 0
    %1538 = vmatprep.subr.bf16.mxu0 0
    %1539 = vmatpush2.bf16.msra.mxu0 0
    %1540 = vmatprep.subr.bf16.mxu0 0
    %1541 = vmatpush2.bf16.msra.mxu0 0
    %1542 = vmatprep.subr.bf16.mxu0 0
    %1543 = vmatpush2.bf16.msra.mxu0 0
    %1544 = vmatprep.subr.bf16.mxu0 0
    %1545 = vmatpush2.bf16.msra.mxu0 0
    %1546 = vmatprep.mubr.bf16.mxu0 0
    %1547 = vmatmul.mubr.bf16.gmra.mxu0 %v1512
    %v1548 = vpop.f32.mrf.mxu0
    %v1549 = vadd.f32 0.0, %v1548
    %v1550 = vpop.f32.mrf.mxu0
    %v1551 = vpop.f32.mrf.mxu0
    %v1552 = vadd.f32 0.0, %v1551
    %v1553 = vpop.f32.mrf.mxu0
    %1554 = vdwg.mxu0
    %v1556 = vsel %vm1054, %v1238, 0
    %1558 = vmatprep.subr.bf16.mxu0 0
    %1559 = vmatpush1.bf16.msra.mxu0 0
    %1560 = vmatprep.subr.bf16.mxu0 0
    %1561 = vmatpush1.bf16.msra.mxu0 0
    %1562 = vmatprep.subr.bf16.mxu0 0
    %1563 = vmatpush1.bf16.msra.mxu0 0
    %1564 = vmatprep.subr.bf16.mxu0 0
    %1565 = vmatpush1.bf16.msra.mxu0 0
    %1566 = vmatprep.subr.bf16.mxu0 0
    %1567 = vmatpush1.bf16.msra.mxu0 0
    %1568 = vmatprep.subr.bf16.mxu0 0
    %1569 = vmatpush1.bf16.msra.mxu0 0
    %1570 = vmatprep.subr.bf16.mxu0 0
    %1571 = vmatpush1.bf16.msra.mxu0 0
    %1572 = vmatprep.subr.bf16.mxu0 0
    %1573 = vmatpush1.bf16.msra.mxu0 %v1246
    %1574 = vmatprep.subr.bf16.mxu0 0
    %1575 = vmatpush2.bf16.msra.mxu0 0
    %1576 = vmatprep.subr.bf16.mxu0 0
    %1577 = vmatpush2.bf16.msra.mxu0 0
    %1578 = vmatprep.subr.bf16.mxu0 0
    %1579 = vmatpush2.bf16.msra.mxu0 0
    %1580 = vmatprep.subr.bf16.mxu0 0
    %1581 = vmatpush2.bf16.msra.mxu0 0
    %1582 = vmatprep.subr.bf16.mxu0 0
    %1583 = vmatpush2.bf16.msra.mxu0 0
    %1584 = vmatprep.subr.bf16.mxu0 0
    %1585 = vmatpush2.bf16.msra.mxu0 0
    %1586 = vmatprep.subr.bf16.mxu0 0
    %1587 = vmatpush2.bf16.msra.mxu0 0
    %1588 = vmatprep.subr.bf16.mxu0 0
    %1589 = vmatpush2.bf16.msra.mxu0 0
    %1590 = vmatprep.mubr.bf16.mxu0 0
    %1591 = vmatmul.mubr.bf16.gmra.mxu0 %v1556
    %v1592 = vpop.f32.mrf.mxu0
    %v1593 = vadd.f32 0.0, %v1592
    %v1594 = vpop.f32.mrf.mxu0
    %v1595 = vpop.f32.mrf.mxu0
    %v1596 = vadd.f32 0.0, %v1595
    %v1597 = vpop.f32.mrf.mxu0
    %1598 = vdwg.mxu0
    %1603 = vrot.lane.b32.xlu0 %v1373, 32
    %v1604 = vpop.permute.xlu0 %1603
    %1605 = vrot.lane.b32.xlu0 %v1376, 32
    %v1606 = vpop.permute.xlu0 %1605
    %1607 = vrot.lane.b32.xlu0 %v1417, 32
    %v1608 = vpop.permute.xlu0 %1607
    %1609 = vrot.lane.b32.xlu0 %v1420, 32
    %v1610 = vpop.permute.xlu0 %1609
    %1619 = vrot.lane.b32.xlu0 %v1461, 64
    %v1620 = vpop.permute.xlu0 %1619
    %1621 = vrot.lane.b32.xlu0 %v1464, 64
    %v1622 = vpop.permute.xlu0 %1621
    %1623 = vrot.lane.b32.xlu0 %v1505, 64
    %v1624 = vpop.permute.xlu0 %1623
    %1625 = vrot.lane.b32.xlu0 %v1508, 64
    %v1626 = vpop.permute.xlu0 %1625
    %1635 = vrot.lane.b32.xlu0 %v1549, 96
    %v1636 = vpop.permute.xlu0 %1635
    %1637 = vrot.lane.b32.xlu0 %v1552, 96
    %v1638 = vpop.permute.xlu0 %1637
    %1639 = vrot.lane.b32.xlu0 %v1593, 96
    %v1640 = vpop.permute.xlu0 %1639
    %1641 = vrot.lane.b32.xlu0 %v1596, 96
    %v1642 = vpop.permute.xlu0 %1641
    %v1647 = vsel %vm597, %v1285, %v1604
    %v1648 = vsel %vm597, %v1288, %v1606
    %v1649 = vsel %vm597, %v1329, %v1608
    %v1650 = vsel %vm597, %v1332, %v1610
    %vm1651 = vcmask 523264
    %v1652 = vsel %vm1651, %v1647, %v1620
    %v1653 = vsel %vm1651, %v1648, %v1622
    %v1654 = vsel %vm1651, %v1649, %v1624
    %v1655 = vsel %vm1651, %v1650, %v1626
    %vm1656 = vcmask 785408
    %v1657 = vsel %vm1656, %v1652, %v1636
    %v1658 = vsel %vm1656, %v1653, %v1638
    %v1659 = vsel %vm1656, %v1654, %v1640
    %v1660 = vsel %vm1656, %v1655, %v1642
    %v1661 = vpack.c.bf16 %v1658, %v1657
    %v1662 = vpack.c.bf16 %v1660, %v1659
    %v1663 = vld [vmem:[#allocation2] sm:$0xf]
    %v1664 = vld [vmem:[#allocation2 + $0x4] sm:$0xf]
    %v1665 = vld [vmem:[#allocation2 + $0x8] sm:$0xf]
    %v1666 = vld [vmem:[#allocation2 + $0xc] sm:$0xf]
    %v1667 = vld [vmem:[#allocation2 + $0x10] sm:$0xf]
    %v1668 = vld [vmem:[#allocation2 + $0x14] sm:$0xf]
    %v1669 = vld [vmem:[#allocation2 + $0x18] sm:$0xf]
    %v1670 = vld [vmem:[#allocation2 + $0x1c] sm:$0xf]
    %v1671 = vld [vmem:[#allocation2 + $0x20] sm:$0xf]
    %v1672 = vld [vmem:[#allocation2 + $0x24] sm:$0xf]
    %v1673 = vld [vmem:[#allocation2 + $0x28] sm:$0xf]
    %v1674 = vld [vmem:[#allocation2 + $0x2c] sm:$0xf]
    %v1675 = vld [vmem:[#allocation2 + $0x30] sm:$0xf]
    %v1676 = vld [vmem:[#allocation2 + $0x34] sm:$0xf]
    %v1677 = vld [vmem:[#allocation2 + $0x38] sm:$0xf]
    %v1678 = vld [vmem:[#allocation2 + $0x3c] sm:$0xf]
    %v1679 = vld [vmem:[%s7] sm:$0x1]
    %v1681 = vlaneseq
    %v1682 = vshrl.u32 %v1681, 7
    %v1683 = vsub.s32 0, %v1682
    %v1684 = vrot.slane %v1679, %v1683
    %v1702 = vunpack.c.l.b16 %v1663
    %v1703 = vunpack.c.l.b16 %v1664
    %v1704 = vunpack.c.l.b16 %v1665
    %v1705 = vunpack.c.l.b16 %v1666
    %v1706 = vunpack.c.l.b16 %v1667
    %v1707 = vunpack.c.l.b16 %v1668
    %v1708 = vunpack.c.l.b16 %v1669
    %v1709 = vunpack.c.l.b16 %v1670
    %v1710 = vunpack.c.l.b16 %v1671
    %v1711 = vunpack.c.l.b16 %v1672
    %v1712 = vunpack.c.l.b16 %v1673
    %v1713 = vunpack.c.l.b16 %v1674
    %v1714 = vunpack.c.l.b16 %v1675
    %v1715 = vunpack.c.l.b16 %v1676
    %v1716 = vunpack.c.l.b16 %v1677
    %v1717 = vunpack.c.l.b16 %v1678
    %v1718 = vpack.c.b16 %v1703, %v1702
    %v1719 = vpack.c.b16 %v1705, %v1704
    %v1720 = vpack.c.b16 %v1707, %v1706
    %v1721 = vpack.c.b16 %v1709, %v1708
    %v1722 = vpack.c.b16 %v1711, %v1710
    %v1723 = vpack.c.b16 %v1713, %v1712
    %v1724 = vpack.c.b16 %v1715, %v1714
    %v1725 = vpack.c.b16 %v1717, %v1716
    %1734 = vmatprep.subr.bf16.mxu0 0
    %1735 = vmatpush1.bf16.msra.mxu0 %v1725
    %1736 = vmatprep.subr.bf16.mxu0 0
    %1737 = vmatpush1.bf16.msra.mxu0 %v1724
    %1738 = vmatprep.subr.bf16.mxu0 0
    %1739 = vmatpush1.bf16.msra.mxu0 %v1723
    %1740 = vmatprep.subr.bf16.mxu0 0
    %1741 = vmatpush1.bf16.msra.mxu0 %v1722
    %1742 = vmatprep.subr.bf16.mxu0 0
    %1743 = vmatpush1.bf16.msra.mxu0 %v1721
    %1744 = vmatprep.subr.bf16.mxu0 0
    %1745 = vmatpush1.bf16.msra.mxu0 %v1720
    %1746 = vmatprep.subr.bf16.mxu0 0
    %1747 = vmatpush1.bf16.msra.mxu0 %v1719
    %1748 = vmatprep.subr.bf16.mxu0 0
    %1749 = vmatpush1.bf16.msra.mxu0 %v1718
    %1750 = vmatprep.subr.bf16.mxu0 0
    %1751 = vmatpush2.bf16.msra.mxu0 0
    %1752 = vmatprep.subr.bf16.mxu0 0
    %1753 = vmatpush2.bf16.msra.mxu0 0
    %1754 = vmatprep.subr.bf16.mxu0 0
    %1755 = vmatpush2.bf16.msra.mxu0 0
    %1756 = vmatprep.subr.bf16.mxu0 0
    %1757 = vmatpush2.bf16.msra.mxu0 0
    %1758 = vmatprep.subr.bf16.mxu0 0
    %1759 = vmatpush2.bf16.msra.mxu0 0
    %1760 = vmatprep.subr.bf16.mxu0 0
    %1761 = vmatpush2.bf16.msra.mxu0 0
    %1762 = vmatprep.subr.bf16.mxu0 0
    %1763 = vmatpush2.bf16.msra.mxu0 0
    %1764 = vmatprep.subr.bf16.mxu0 0
    %1765 = vmatpush2.bf16.msra.mxu0 0
    %1766 = vmatprep.mubr.bf16.mxu0 0
    %1767 = vmatmul.mubr.bf16.gmra.mxu0 %v1661
    %v1768 = vpop.f32.mrf.mxu0
    %v1769 = vadd.f32 %v1684, %v1768
    %v1770 = vpop.f32.mrf.mxu0
    %v1771 = vpop.f32.mrf.mxu0
    %v1772 = vadd.f32 %v1684, %v1771
    %v1773 = vpop.f32.mrf.mxu0
    %1774 = vmatprep.mubr.bf16.mxu0 0
    %1775 = vmatmul.mubr.bf16.gmra.mxu0 %v1662
    %v1776 = vpop.f32.mrf.mxu0
    %v1777 = vadd.f32 %v1684, %v1776
    %v1778 = vpop.f32.mrf.mxu0
    %v1779 = vpop.f32.mrf.mxu0
    %v1780 = vadd.f32 %v1684, %v1779
    %v1781 = vpop.f32.mrf.mxu0
    %1782 = vdwg.mxu0
    %v1783 = vadd.f32 %v168, %v1769
    %v1784 = vadd.f32 %v169, %v1772
    %v1785 = vadd.f32 %v170, %v1777
    %v1786 = vadd.f32 %v171, %v1780
    %v1787 = vld [vmem:[%s8] sm:$0x1]
    %v1788 = vld [vmem:[%s9] sm:$0x1]
    %1789 = vadd.xlane.f32.xlu0 %v1783
    %v1790 = vpop.xlane.xlu0 %1789
    %1791 = vadd.xlane.f32.xlu0 %v1784
    %v1792 = vpop.xlane.xlu0 %1791
    %1793 = vadd.xlane.f32.xlu0 %v1785
    %v1794 = vpop.xlane.xlu0 %1793
    %1795 = vadd.xlane.f32.xlu0 %v1786
    %v1796 = vpop.xlane.xlu0 %1795
    %v1797 = vmul.f32 %v1790, %v115
    %v1798 = vmul.f32 %v1792, %v115
    %v1799 = vmul.f32 %v1794, %v115
    %v1800 = vmul.f32 %v1796, %v115
    %v1801 = vsub.f32 %v1783, %v1797
    %v1802 = vsub.f32 %v1784, %v1798
    %v1803 = vsub.f32 %v1785, %v1799
    %v1804 = vsub.f32 %v1786, %v1800
    %v1805 = vmul.f32 %v1801, %v1801
    %v1806 = vmul.f32 %v1802, %v1802
    %v1807 = vmul.f32 %v1803, %v1803
    %v1808 = vmul.f32 %v1804, %v1804
    %1809 = vadd.xlane.f32.xlu0 %v1805
    %v1810 = vpop.xlane.xlu0 %1809
    %1811 = vadd.xlane.f32.xlu0 %v1806
    %v1812 = vpop.xlane.xlu0 %1811
    %1813 = vadd.xlane.f32.xlu0 %v1807
    %v1814 = vpop.xlane.xlu0 %1813
    %1815 = vadd.xlane.f32.xlu0 %v1808
    %v1816 = vpop.xlane.xlu0 %1815
    %v1817 = vmul.f32 %v1810, %v115
    %v1818 = vmul.f32 %v1812, %v115
    %v1819 = vmul.f32 %v1814, %v115
    %v1820 = vmul.f32 %v1816, %v115
    %v1821 = vadd.f32 %v1817, 1e-12
    %v1822 = vadd.f32 %v1818, 1e-12
    %v1823 = vadd.f32 %v1819, 1e-12
    %v1824 = vadd.f32 %v1820, 1e-12
    %v1825 = vrsqrt.pop %v1821
    %v1826 = vrsqrt.pop %v1822
    %v1827 = vrsqrt.pop %v1823
    %v1828 = vrsqrt.pop %v1824
    %v1829 = vmul.f32 %v1801, %v1825
    %v1830 = vmul.f32 %v1802, %v1826
    %v1831 = vmul.f32 %v1803, %v1827
    %v1832 = vmul.f32 %v1804, %v1828
    %v1834 = vlaneseq
    %v1835 = vshrl.u32 %v1834, 7
    %v1836 = vsub.s32 0, %v1835
    %v1837 = vrot.slane %v1787, %v1836
    %v1839 = vmul.f32 %v1829, %v1837
    %v1840 = vmul.f32 %v1830, %v1837
    %v1841 = vmul.f32 %v1831, %v1837
    %v1842 = vmul.f32 %v1832, %v1837
    %v1844 = vlaneseq
    %v1845 = vshrl.u32 %v1844, 7
    %v1846 = vsub.s32 0, %v1845
    %v1847 = vrot.slane %v1788, %v1846
    %v1849 = vadd.f32 %v1839, %v1847
    %v1850 = vadd.f32 %v1840, %v1847
    %v1851 = vadd.f32 %v1841, %v1847
    %v1852 = vadd.f32 %v1842, %v1847
    %v1853 = vpack.c.bf16 %v1850, %v1849
    %v1854 = vpack.c.bf16 %v1852, %v1851
    %v1855 = vld [vmem:[#allocation4] sm:$0xff]
    %v1856 = vld [vmem:[#allocation4 + $0x8] sm:$0xff]
    %v1857 = vld [vmem:[#allocation4 + $0x10] sm:$0xff]
    %v1858 = vld [vmem:[#allocation4 + $0x18] sm:$0xff]
    %v1859 = vld [vmem:[#allocation4 + $0x20] sm:$0xff]
    %v1860 = vld [vmem:[#allocation4 + $0x28] sm:$0xff]
    %v1861 = vld [vmem:[#allocation4 + $0x30] sm:$0xff]
    %v1862 = vld [vmem:[#allocation4 + $0x38] sm:$0xff]
    %v1863 = vld [vmem:[#allocation4 + $0x40] sm:$0xff]
    %v1864 = vld [vmem:[#allocation4 + $0x48] sm:$0xff]
    %v1865 = vld [vmem:[#allocation4 + $0x50] sm:$0xff]
    %v1866 = vld [vmem:[#allocation4 + $0x58] sm:$0xff]
    %v1867 = vld [vmem:[#allocation4 + $0x60] sm:$0xff]
    %v1868 = vld [vmem:[#allocation4 + $0x68] sm:$0xff]
    %v1869 = vld [vmem:[#allocation4 + $0x70] sm:$0xff]
    %v1870 = vld [vmem:[#allocation4 + $0x78] sm:$0xff]
    %v1871 = vld [vmem:[%s11] sm:$0x3]
    %v1873 = vlaneseq
    %v1874 = vshrl.u32 %v1873, 7
    %v1875 = vsub.s32 0, %v1874
    %v1876 = vrot.slane %v1871, %v1875
    %v1877 = vlaneseq
    %v1878 = vshrl.u32 %v1877, 7
    %v1879 = vsub.s32 1, %v1878
    %v1880 = vrot.slane %v1871, %v1879
    %v1899 = vunpack.c.l.b16 %v1855
    %v1900 = vunpack.c.h.b16 %v1855
    %v1901 = vunpack.c.l.b16 %v1856
    %v1902 = vunpack.c.h.b16 %v1856
    %v1903 = vunpack.c.l.b16 %v1857
    %v1904 = vunpack.c.h.b16 %v1857
    %v1905 = vunpack.c.l.b16 %v1858
    %v1906 = vunpack.c.h.b16 %v1858
    %v1907 = vunpack.c.l.b16 %v1859
    %v1908 = vunpack.c.h.b16 %v1859
    %v1909 = vunpack.c.l.b16 %v1860
    %v1910 = vunpack.c.h.b16 %v1860
    %v1911 = vunpack.c.l.b16 %v1861
    %v1912 = vunpack.c.h.b16 %v1861
    %v1913 = vunpack.c.l.b16 %v1862
    %v1914 = vunpack.c.h.b16 %v1862
    %v1915 = vunpack.c.l.b16 %v1863
    %v1916 = vunpack.c.h.b16 %v1863
    %v1917 = vunpack.c.l.b16 %v1864
    %v1918 = vunpack.c.h.b16 %v1864
    %v1919 = vunpack.c.l.b16 %v1865
    %v1920 = vunpack.c.h.b16 %v1865
    %v1921 = vunpack.c.l.b16 %v1866
    %v1922 = vunpack.c.h.b16 %v1866
    %v1923 = vunpack.c.l.b16 %v1867
    %v1924 = vunpack.c.h.b16 %v1867
    %v1925 = vunpack.c.l.b16 %v1868
    %v1926 = vunpack.c.h.b16 %v1868
    %v1927 = vunpack.c.l.b16 %v1869
    %v1928 = vunpack.c.h.b16 %v1869
    %v1929 = vunpack.c.l.b16 %v1870
    %v1930 = vunpack.c.h.b16 %v1870
    %v1931 = vpack.c.b16 %v1901, %v1899
    %v1932 = vpack.c.b16 %v1902, %v1900
    %v1933 = vpack.c.b16 %v1905, %v1903
    %v1934 = vpack.c.b16 %v1906, %v1904
    %v1935 = vpack.c.b16 %v1909, %v1907
    %v1936 = vpack.c.b16 %v1910, %v1908
    %v1937 = vpack.c.b16 %v1913, %v1911
    %v1938 = vpack.c.b16 %v1914, %v1912
    %v1939 = vpack.c.b16 %v1917, %v1915
    %v1940 = vpack.c.b16 %v1918, %v1916
    %v1941 = vpack.c.b16 %v1921, %v1919
    %v1942 = vpack.c.b16 %v1922, %v1920
    %v1943 = vpack.c.b16 %v1925, %v1923
    %v1944 = vpack.c.b16 %v1926, %v1924
    %v1945 = vpack.c.b16 %v1929, %v1927
    %v1946 = vpack.c.b16 %v1930, %v1928
    %1963 = vmatprep.subr.bf16.mxu0 %v1946
    %1964 = vmatpush1.bf16.msra.mxu0 %v1945
    %1965 = vmatprep.subr.bf16.mxu0 %v1944
    %1966 = vmatpush1.bf16.msra.mxu0 %v1943
    %1967 = vmatprep.subr.bf16.mxu0 %v1942
    %1968 = vmatpush1.bf16.msra.mxu0 %v1941
    %1969 = vmatprep.subr.bf16.mxu0 %v1940
    %1970 = vmatpush1.bf16.msra.mxu0 %v1939
    %1971 = vmatprep.subr.bf16.mxu0 %v1938
    %1972 = vmatpush1.bf16.msra.mxu0 %v1937
    %1973 = vmatprep.subr.bf16.mxu0 %v1936
    %1974 = vmatpush1.bf16.msra.mxu0 %v1935
    %1975 = vmatprep.subr.bf16.mxu0 %v1934
    %1976 = vmatpush1.bf16.msra.mxu0 %v1933
    %1977 = vmatprep.subr.bf16.mxu0 %v1932
    %1978 = vmatpush1.bf16.msra.mxu0 %v1931
    %1979 = vmatprep.subr.bf16.mxu0 0
    %1980 = vmatpush2.bf16.msra.mxu0 0
    %1981 = vmatprep.subr.bf16.mxu0 0
    %1982 = vmatpush2.bf16.msra.mxu0 0
    %1983 = vmatprep.subr.bf16.mxu0 0
    %1984 = vmatpush2.bf16.msra.mxu0 0
    %1985 = vmatprep.subr.bf16.mxu0 0
    %1986 = vmatpush2.bf16.msra.mxu0 0
    %1987 = vmatprep.subr.bf16.mxu0 0
    %1988 = vmatpush2.bf16.msra.mxu0 0
    %1989 = vmatprep.subr.bf16.mxu0 0
    %1990 = vmatpush2.bf16.msra.mxu0 0
    %1991 = vmatprep.subr.bf16.mxu0 0
    %1992 = vmatpush2.bf16.msra.mxu0 0
    %1993 = vmatprep.subr.bf16.mxu0 0
    %1994 = vmatpush2.bf16.msra.mxu0 0
    %1995 = vmatprep.mubr.bf16.mxu0 0
    %1996 = vmatmul.mubr.bf16.gmra.mxu0 %v1853
    %v1997 = vpop.f32.mrf.mxu0
    %v1998 = vadd.f32 %v1876, %v1997
    %v1999 = vpop.f32.mrf.mxu0
    %v2000 = vadd.f32 %v1880, %v1999
    %v2001 = vpop.f32.mrf.mxu0
    %v2002 = vadd.f32 %v1876, %v2001
    %v2003 = vpop.f32.mrf.mxu0
    %v2004 = vadd.f32 %v1880, %v2003
    %2005 = vmatprep.mubr.bf16.mxu0 0
    %2006 = vmatmul.mubr.bf16.gmra.mxu0 %v1854
    %v2007 = vpop.f32.mrf.mxu0
    %v2008 = vadd.f32 %v1876, %v2007
    %v2009 = vpop.f32.mrf.mxu0
    %v2010 = vadd.f32 %v1880, %v2009
    %v2011 = vpop.f32.mrf.mxu0
    %v2012 = vadd.f32 %v1876, %v2011
    %v2013 = vpop.f32.mrf.mxu0
    %v2014 = vadd.f32 %v1880, %v2013
    %2015 = vdwg.mxu0
    %v2016 = vmul.f32 %v1998, %v1998
    %v2017 = vmul.f32 %v2000, %v2000
    %v2018 = vmul.f32 %v2002, %v2002
    %v2019 = vmul.f32 %v2004, %v2004
    %v2020 = vmul.f32 %v2008, %v2008
    %v2021 = vmul.f32 %v2010, %v2010
    %v2022 = vmul.f32 %v2012, %v2012
    %v2023 = vmul.f32 %v2014, %v2014
    %v2024 = vmul.f32 %v1998, %v2016
    %v2025 = vmul.f32 %v2000, %v2017
    %v2026 = vmul.f32 %v2002, %v2018
    %v2027 = vmul.f32 %v2004, %v2019
    %v2028 = vmul.f32 %v2008, %v2020
    %v2029 = vmul.f32 %v2010, %v2021
    %v2030 = vmul.f32 %v2012, %v2022
    %v2031 = vmul.f32 %v2014, %v2023
    %v2032 = vmul.f32 %v2024, 0.044715
    %v2033 = vmul.f32 %v2025, 0.044715
    %v2034 = vmul.f32 %v2026, 0.044715
    %v2035 = vmul.f32 %v2027, 0.044715
    %v2036 = vmul.f32 %v2028, 0.044715
    %v2037 = vmul.f32 %v2029, 0.044715
    %v2038 = vmul.f32 %v2030, 0.044715
    %v2039 = vmul.f32 %v2031, 0.044715
    %v2040 = vadd.f32 %v1998, %v2032
    %v2041 = vadd.f32 %v2000, %v2033
    %v2042 = vadd.f32 %v2002, %v2034
    %v2043 = vadd.f32 %v2004, %v2035
    %v2044 = vadd.f32 %v2008, %v2036
    %v2045 = vadd.f32 %v2010, %v2037
    %v2046 = vadd.f32 %v2012, %v2038
    %v2047 = vadd.f32 %v2014, %v2039
    %v2048 = vmul.f32 %v2040, 0.7978846
    %v2049 = vmul.f32 %v2041, 0.7978846
    %v2050 = vmul.f32 %v2042, 0.7978846
    %v2051 = vmul.f32 %v2043, 0.7978846
    %v2052 = vmul.f32 %v2044, 0.7978846
    %v2053 = vmul.f32 %v2045, 0.7978846
    %v2054 = vmul.f32 %v2046, 0.7978846
    %v2055 = vmul.f32 %v2047, 0.7978846
    %v2056 = vtanh.pop %v2048
    %v2057 = vtanh.pop %v2049
    %v2058 = vtanh.pop %v2050
    %v2059 = vtanh.pop %v2051
    %v2060 = vtanh.pop %v2052
    %v2061 = vtanh.pop %v2053
    %v2062 = vtanh.pop %v2054
    %v2063 = vtanh.pop %v2055
    %v2064 = vadd.f32 %v2056, 1.0
    %v2065 = vadd.f32 %v2057, 1.0
    %v2066 = vadd.f32 %v2058, 1.0
    %v2067 = vadd.f32 %v2059, 1.0
    %v2068 = vadd.f32 %v2060, 1.0
    %v2069 = vadd.f32 %v2061, 1.0
    %v2070 = vadd.f32 %v2062, 1.0
    %v2071 = vadd.f32 %v2063, 1.0
    %v2072 = vmul.f32 %v2064, 0.5
    %v2073 = vmul.f32 %v2065, 0.5
    %v2074 = vmul.f32 %v2066, 0.5
    %v2075 = vmul.f32 %v2067, 0.5
    %v2076 = vmul.f32 %v2068, 0.5
    %v2077 = vmul.f32 %v2069, 0.5
    %v2078 = vmul.f32 %v2070, 0.5
    %v2079 = vmul.f32 %v2071, 0.5
    %v2080 = vmul.f32 %v1998, %v2072
    %v2081 = vmul.f32 %v2000, %v2073
    %v2082 = vmul.f32 %v2002, %v2074
    %v2083 = vmul.f32 %v2004, %v2075
    %v2084 = vmul.f32 %v2008, %v2076
    %v2085 = vmul.f32 %v2010, %v2077
    %v2086 = vmul.f32 %v2012, %v2078
    %v2087 = vmul.f32 %v2014, %v2079
    %v2088 = vpack.c.bf16 %v2082, %v2080
    %v2089 = vpack.c.bf16 %v2083, %v2081
    %v2090 = vpack.c.bf16 %v2086, %v2084
    %v2091 = vpack.c.bf16 %v2087, %v2085
    %v2092 = vld [vmem:[#allocation6] sm:$0xf]
    %v2093 = vld [vmem:[#allocation6 + $0x4] sm:$0xf]
    %v2094 = vld [vmem:[#allocation6 + $0x8] sm:$0xf]
    %v2095 = vld [vmem:[#allocation6 + $0xc] sm:$0xf]
    %v2096 = vld [vmem:[#allocation6 + $0x10] sm:$0xf]
    %v2097 = vld [vmem:[#allocation6 + $0x14] sm:$0xf]
    %v2098 = vld [vmem:[#allocation6 + $0x18] sm:$0xf]
    %v2099 = vld [vmem:[#allocation6 + $0x1c] sm:$0xf]
    %v2100 = vld [vmem:[#allocation6 + $0x20] sm:$0xf]
    %v2101 = vld [vmem:[#allocation6 + $0x24] sm:$0xf]
    %v2102 = vld [vmem:[#allocation6 + $0x28] sm:$0xf]
    %v2103 = vld [vmem:[#allocation6 + $0x2c] sm:$0xf]
    %v2104 = vld [vmem:[#allocation6 + $0x30] sm:$0xf]
    %v2105 = vld [vmem:[#allocation6 + $0x34] sm:$0xf]
    %v2106 = vld [vmem:[#allocation6 + $0x38] sm:$0xf]
    %v2107 = vld [vmem:[#allocation6 + $0x3c] sm:$0xf]
    %v2108 = vld [vmem:[#allocation6 + $0x40] sm:$0xf]
    %v2109 = vld [vmem:[#allocation6 + $0x44] sm:$0xf]
    %v2110 = vld [vmem:[#allocation6 + $0x48] sm:$0xf]
    %v2111 = vld [vmem:[#allocation6 + $0x4c] sm:$0xf]
    %v2112 = vld [vmem:[#allocation6 + $0x50] sm:$0xf]
    %v2113 = vld [vmem:[#allocation6 + $0x54] sm:$0xf]
    %v2114 = vld [vmem:[#allocation6 + $0x58] sm:$0xf]
    %v2115 = vld [vmem:[#allocation6 + $0x5c] sm:$0xf]
    %v2116 = vld [vmem:[#allocation6 + $0x60] sm:$0xf]
    %v2117 = vld [vmem:[#allocation6 + $0x64] sm:$0xf]
    %v2118 = vld [vmem:[#allocation6 + $0x68] sm:$0xf]
    %v2119 = vld [vmem:[#allocation6 + $0x6c] sm:$0xf]
    %v2120 = vld [vmem:[#allocation6 + $0x70] sm:$0xf]
    %v2121 = vld [vmem:[#allocation6 + $0x74] sm:$0xf]
    %v2122 = vld [vmem:[#allocation6 + $0x78] sm:$0xf]
    %v2123 = vld [vmem:[#allocation6 + $0x7c] sm:$0xf]
    %v2124 = vld [vmem:[%s13] sm:$0x1]
    %v2126 = vlaneseq
    %v2127 = vshrl.u32 %v2126, 7
    %v2128 = vsub.s32 0, %v2127
    %v2129 = vrot.slane %v2124, %v2128
    %v2163 = vunpack.c.l.b16 %v2092
    %v2164 = vunpack.c.l.b16 %v2093
    %v2165 = vunpack.c.l.b16 %v2094
    %v2166 = vunpack.c.l.b16 %v2095
    %v2167 = vunpack.c.l.b16 %v2096
    %v2168 = vunpack.c.l.b16 %v2097
    %v2169 = vunpack.c.l.b16 %v2098
    %v2170 = vunpack.c.l.b16 %v2099
    %v2171 = vunpack.c.l.b16 %v2100
    %v2172 = vunpack.c.l.b16 %v2101
    %v2173 = vunpack.c.l.b16 %v2102
    %v2174 = vunpack.c.l.b16 %v2103
    %v2175 = vunpack.c.l.b16 %v2104
    %v2176 = vunpack.c.l.b16 %v2105
    %v2177 = vunpack.c.l.b16 %v2106
    %v2178 = vunpack.c.l.b16 %v2107
    %v2179 = vunpack.c.l.b16 %v2108
    %v2180 = vunpack.c.l.b16 %v2109
    %v2181 = vunpack.c.l.b16 %v2110
    %v2182 = vunpack.c.l.b16 %v2111
    %v2183 = vunpack.c.l.b16 %v2112
    %v2184 = vunpack.c.l.b16 %v2113
    %v2185 = vunpack.c.l.b16 %v2114
    %v2186 = vunpack.c.l.b16 %v2115
    %v2187 = vunpack.c.l.b16 %v2116
    %v2188 = vunpack.c.l.b16 %v2117
    %v2189 = vunpack.c.l.b16 %v2118
    %v2190 = vunpack.c.l.b16 %v2119
    %v2191 = vunpack.c.l.b16 %v2120
    %v2192 = vunpack.c.l.b16 %v2121
    %v2193 = vunpack.c.l.b16 %v2122
    %v2194 = vunpack.c.l.b16 %v2123
    %v2195 = vpack.c.b16 %v2164, %v2163
    %v2196 = vpack.c.b16 %v2166, %v2165
    %v2197 = vpack.c.b16 %v2168, %v2167
    %v2198 = vpack.c.b16 %v2170, %v2169
    %v2199 = vpack.c.b16 %v2172, %v2171
    %v2200 = vpack.c.b16 %v2174, %v2173
    %v2201 = vpack.c.b16 %v2176, %v2175
    %v2202 = vpack.c.b16 %v2178, %v2177
    %v2203 = vpack.c.b16 %v2180, %v2179
    %v2204 = vpack.c.b16 %v2182, %v2181
    %v2205 = vpack.c.b16 %v2184, %v2183
    %v2206 = vpack.c.b16 %v2186, %v2185
    %v2207 = vpack.c.b16 %v2188, %v2187
    %v2208 = vpack.c.b16 %v2190, %v2189
    %v2209 = vpack.c.b16 %v2192, %v2191
    %v2210 = vpack.c.b16 %v2194, %v2193
    %2227 = vmatprep.subr.bf16.mxu0 0
    %2228 = vmatpush1.bf16.msra.mxu0 %v2202
    %2229 = vmatprep.subr.bf16.mxu0 0
    %2230 = vmatpush1.bf16.msra.mxu0 %v2201
    %2231 = vmatprep.subr.bf16.mxu0 0
    %2232 = vmatpush1.bf16.msra.mxu0 %v2200
    %2233 = vmatprep.subr.bf16.mxu0 0
    %2234 = vmatpush1.bf16.msra.mxu0 %v2199
    %2235 = vmatprep.subr.bf16.mxu0 0
    %2236 = vmatpush1.bf16.msra.mxu0 %v2198
    %2237 = vmatprep.subr.bf16.mxu0 0
    %2238 = vmatpush1.bf16.msra.mxu0 %v2197
    %2239 = vmatprep.subr.bf16.mxu0 0
    %2240 = vmatpush1.bf16.msra.mxu0 %v2196
    %2241 = vmatprep.subr.bf16.mxu0 0
    %2242 = vmatpush1.bf16.msra.mxu0 %v2195
    %2243 = vmatprep.subr.bf16.mxu0 0
    %2244 = vmatpush2.bf16.msra.mxu0 %v2210
    %2245 = vmatprep.subr.bf16.mxu0 0
    %2246 = vmatpush2.bf16.msra.mxu0 %v2209
    %2247 = vmatprep.subr.bf16.mxu0 0
    %2248 = vmatpush2.bf16.msra.mxu0 %v2208
    %2249 = vmatprep.subr.bf16.mxu0 0
    %2250 = vmatpush2.bf16.msra.mxu0 %v2207
    %2251 = vmatprep.subr.bf16.mxu0 0
    %2252 = vmatpush2.bf16.msra.mxu0 %v2206
    %2253 = vmatprep.subr.bf16.mxu0 0
    %2254 = vmatpush2.bf16.msra.mxu0 %v2205
    %2255 = vmatprep.subr.bf16.mxu0 0
    %2256 = vmatpush2.bf16.msra.mxu0 %v2204
    %2257 = vmatprep.subr.bf16.mxu0 0
    %2258 = vmatpush2.bf16.msra.mxu0 %v2203
    %2259 = vmatprep.mubr.bf16.mxu0 %v2089
    %2260 = vmatmul.mubr.bf16.gmra.mxu0 %v2088
    %v2261 = vpop.f32.mrf.mxu0
    %v2262 = vadd.f32 %v2129, %v2261
    %v2263 = vpop.f32.mrf.mxu0
    %v2264 = vpop.f32.mrf.mxu0
    %v2265 = vadd.f32 %v2129, %v2264
    %v2266 = vpop.f32.mrf.mxu0
    %2267 = vmatprep.mubr.bf16.mxu0 %v2091
    %2268 = vmatmul.mubr.bf16.gmra.mxu0 %v2090
    %v2269 = vpop.f32.mrf.mxu0
    %v2270 = vadd.f32 %v2129, %v2269
    %v2271 = vpop.f32.mrf.mxu0
    %v2272 = vpop.f32.mrf.mxu0
    %v2273 = vadd.f32 %v2129, %v2272
    %v2274 = vpop.f32.mrf.mxu0
    %2275 = vdwg.mxu0
    %v2276 = vadd.f32 %v1849, %v2262
    %v2277 = vadd.f32 %v1850, %v2265
    %v2278 = vadd.f32 %v1851, %v2270
    %v2279 = vadd.f32 %v1852, %v2273
    %v2280 = vld [vmem:[%s14] sm:$0x1]
    %v2281 = vld [vmem:[%s15] sm:$0x1]
    %2282 = vadd.xlane.f32.xlu0 %v2276
    %v2283 = vpop.xlane.xlu0 %2282
    %2284 = vadd.xlane.f32.xlu0 %v2277
    %v2285 = vpop.xlane.xlu0 %2284
    %2286 = vadd.xlane.f32.xlu0 %v2278
    %v2287 = vpop.xlane.xlu0 %2286
    %2288 = vadd.xlane.f32.xlu0 %v2279
    %v2289 = vpop.xlane.xlu0 %2288
    %v2290 = vmul.f32 %v2283, %v115
    %v2291 = vmul.f32 %v2285, %v115
    %v2292 = vmul.f32 %v2287, %v115
    %v2293 = vmul.f32 %v2289, %v115
    %v2294 = vsub.f32 %v2276, %v2290
    %v2295 = vsub.f32 %v2277, %v2291
    %v2296 = vsub.f32 %v2278, %v2292
    %v2297 = vsub.f32 %v2279, %v2293
    %v2298 = vmul.f32 %v2294, %v2294
    %v2299 = vmul.f32 %v2295, %v2295
    %v2300 = vmul.f32 %v2296, %v2296
    %v2301 = vmul.f32 %v2297, %v2297
    %2302 = vadd.xlane.f32.xlu0 %v2298
    %v2303 = vpop.xlane.xlu0 %2302
    %2304 = vadd.xlane.f32.xlu0 %v2299
    %v2305 = vpop.xlane.xlu0 %2304
    %2306 = vadd.xlane.f32.xlu0 %v2300
    %v2307 = vpop.xlane.xlu0 %2306
    %2308 = vadd.xlane.f32.xlu0 %v2301
    %v2309 = vpop.xlane.xlu0 %2308
    %v2310 = vmul.f32 %v2303, %v115
    %v2311 = vmul.f32 %v2305, %v115
    %v2312 = vmul.f32 %v2307, %v115
    %v2313 = vmul.f32 %v2309, %v115
    %v2314 = vadd.f32 %v2310, 1e-12
    %v2315 = vadd.f32 %v2311, 1e-12
    %v2316 = vadd.f32 %v2312, 1e-12
    %v2317 = vadd.f32 %v2313, 1e-12
    %v2318 = vrsqrt.pop %v2314
    %v2319 = vrsqrt.pop %v2315
    %v2320 = vrsqrt.pop %v2316
    %v2321 = vrsqrt.pop %v2317
    %v2322 = vmul.f32 %v2294, %v2318
    %v2323 = vmul.f32 %v2295, %v2319
    %v2324 = vmul.f32 %v2296, %v2320
    %v2325 = vmul.f32 %v2297, %v2321
    %v2327 = vlaneseq
    %v2328 = vshrl.u32 %v2327, 7
    %v2329 = vsub.s32 0, %v2328
    %v2330 = vrot.slane %v2280, %v2329
    %v2332 = vmul.f32 %v2322, %v2330
    %v2333 = vmul.f32 %v2323, %v2330
    %v2334 = vmul.f32 %v2324, %v2330
    %v2335 = vmul.f32 %v2325, %v2330
    %v2337 = vlaneseq
    %v2338 = vshrl.u32 %v2337, 7
    %v2339 = vsub.s32 0, %v2338
    %v2340 = vrot.slane %v2281, %v2339
    %v2342 = vadd.f32 %v2332, %v2340
    %v2343 = vadd.f32 %v2333, %v2340
    %v2344 = vadd.f32 %v2334, %v2340
    %v2345 = vadd.f32 %v2335, %v2340
    %v2346 = vpack.c.bf16 %v2343, %v2342
    %v2347 = vpack.c.bf16 %v2345, %v2344
    %s2348 = scalar_lea.vmem %s4, 192
    %v2349 = vld [vmem:[%s2348] sm:$0xff]
    %v2350 = vld [vmem:[%s2348 + $0x8] sm:$0xf]
    %v2351 = vld [vmem:[%s2348 + $0xc] sm:$0xff]
    %v2352 = vld [vmem:[%s2348 + $0x14] sm:$0xf]
    %v2353 = vld [vmem:[%s2348 + $0x18] sm:$0xff]
    %v2354 = vld [vmem:[%s2348 + $0x20] sm:$0xf]
    %v2355 = vld [vmem:[%s2348 + $0x24] sm:$0xff]
    %v2356 = vld [vmem:[%s2348 + $0x2c] sm:$0xf]
    %v2357 = vld [vmem:[%s2348 + $0x30] sm:$0xff]
    %v2358 = vld [vmem:[%s2348 + $0x38] sm:$0xf]
    %v2359 = vld [vmem:[%s2348 + $0x3c] sm:$0xff]
    %v2360 = vld [vmem:[%s2348 + $0x44] sm:$0xf]
    %v2361 = vld [vmem:[%s2348 + $0x48] sm:$0xff]
    %v2362 = vld [vmem:[%s2348 + $0x50] sm:$0xf]
    %v2363 = vld [vmem:[%s2348 + $0x54] sm:$0xff]
    %v2364 = vld [vmem:[%s2348 + $0x5c] sm:$0xf]
    %v2365 = vld [vmem:[%s2348 + $0x60] sm:$0xff]
    %v2366 = vld [vmem:[%s2348 + $0x68] sm:$0xf]
    %v2367 = vld [vmem:[%s2348 + $0x6c] sm:$0xff]
    %v2368 = vld [vmem:[%s2348 + $0x74] sm:$0xf]
    %v2369 = vld [vmem:[%s2348 + $0x78] sm:$0xff]
    %v2370 = vld [vmem:[%s2348 + $0x80] sm:$0xf]
    %v2371 = vld [vmem:[%s2348 + $0x84] sm:$0xff]
    %v2372 = vld [vmem:[%s2348 + $0x8c] sm:$0xf]
    %v2373 = vld [vmem:[%s2348 + $0x90] sm:$0xff]
    %v2374 = vld [vmem:[%s2348 + $0x98] sm:$0xf]
    %v2375 = vld [vmem:[%s2348 + $0x9c] sm:$0xff]
    %v2376 = vld [vmem:[%s2348 + $0xa4] sm:$0xf]
    %v2377 = vld [vmem:[%s2348 + $0xa8] sm:$0xff]
    %v2378 = vld [vmem:[%s2348 + $0xb0] sm:$0xf]
    %v2379 = vld [vmem:[%s2348 + $0xb4] sm:$0xff]
    %v2380 = vld [vmem:[%s2348 + $0xbc] sm:$0xf]
    %s2381 = scalar_lea.vmem %s5, 3
    %v2382 = vld [vmem:[%s2381] sm:$0x7]
    %v2384 = vlaneseq
    %v2385 = vshrl.u32 %v2384, 7
    %v2386 = vsub.s32 0, %v2385
    %v2387 = vrot.slane %v2382, %v2386
    %v2388 = vlaneseq
    %v2389 = vshrl.u32 %v2388, 7
    %v2390 = vsub.s32 1, %v2389
    %v2391 = vrot.slane %v2382, %v2390
    %v2392 = vlaneseq
    %v2393 = vshrl.u32 %v2392, 7
    %v2394 = vsub.s32 2, %v2393
    %v2395 = vrot.slane %v2382, %v2394
    %v2431 = vunpack.c.l.b16 %v2349
    %v2432 = vunpack.c.h.b16 %v2349
    %v2433 = vunpack.c.l.b16 %v2350
    %v2434 = vunpack.c.l.b16 %v2351
    %v2435 = vunpack.c.h.b16 %v2351
    %v2436 = vunpack.c.l.b16 %v2352
    %v2437 = vunpack.c.l.b16 %v2353
    %v2438 = vunpack.c.h.b16 %v2353
    %v2439 = vunpack.c.l.b16 %v2354
    %v2440 = vunpack.c.l.b16 %v2355
    %v2441 = vunpack.c.h.b16 %v2355
    %v2442 = vunpack.c.l.b16 %v2356
    %v2443 = vunpack.c.l.b16 %v2357
    %v2444 = vunpack.c.h.b16 %v2357
    %v2445 = vunpack.c.l.b16 %v2358
    %v2446 = vunpack.c.l.b16 %v2359
    %v2447 = vunpack.c.h.b16 %v2359
    %v2448 = vunpack.c.l.b16 %v2360
    %v2449 = vunpack.c.l.b16 %v2361
    %v2450 = vunpack.c.h.b16 %v2361
    %v2451 = vunpack.c.l.b16 %v2362
    %v2452 = vunpack.c.l.b16 %v2363
    %v2453 = vunpack.c.h.b16 %v2363
    %v2454 = vunpack.c.l.b16 %v2364
    %v2455 = vunpack.c.l.b16 %v2365
    %v2456 = vunpack.c.h.b16 %v2365
    %v2457 = vunpack.c.l.b16 %v2366
    %v2458 = vunpack.c.l.b16 %v2367
    %v2459 = vunpack.c.h.b16 %v2367
    %v2460 = vunpack.c.l.b16 %v2368
    %v2461 = vunpack.c.l.b16 %v2369
    %v2462 = vunpack.c.h.b16 %v2369
    %v2463 = vunpack.c.l.b16 %v2370
    %v2464 = vunpack.c.l.b16 %v2371
    %v2465 = vunpack.c.h.b16 %v2371
    %v2466 = vunpack.c.l.b16 %v2372
    %v2467 = vunpack.c.l.b16 %v2373
    %v2468 = vunpack.c.h.b16 %v2373
    %v2469 = vunpack.c.l.b16 %v2374
    %v2470 = vunpack.c.l.b16 %v2375
    %v2471 = vunpack.c.h.b16 %v2375
    %v2472 = vunpack.c.l.b16 %v2376
    %v2473 = vunpack.c.l.b16 %v2377
    %v2474 = vunpack.c.h.b16 %v2377
    %v2475 = vunpack.c.l.b16 %v2378
    %v2476 = vunpack.c.l.b16 %v2379
    %v2477 = vunpack.c.h.b16 %v2379
    %v2478 = vunpack.c.l.b16 %v2380
    %v2479 = vpack.c.b16 %v2434, %v2431
    %v2480 = vpack.c.b16 %v2435, %v2432
    %v2481 = vpack.c.b16 %v2436, %v2433
    %v2482 = vpack.c.b16 %v2440, %v2437
    %v2483 = vpack.c.b16 %v2441, %v2438
    %v2484 = vpack.c.b16 %v2442, %v2439
    %v2485 = vpack.c.b16 %v2446, %v2443
    %v2486 = vpack.c.b16 %v2447, %v2444
    %v2487 = vpack.c.b16 %v2448, %v2445
    %v2488 = vpack.c.b16 %v2452, %v2449
    %v2489 = vpack.c.b16 %v2453, %v2450
    %v2490 = vpack.c.b16 %v2454, %v2451
    %v2491 = vpack.c.b16 %v2458, %v2455
    %v2492 = vpack.c.b16 %v2459, %v2456
    %v2493 = vpack.c.b16 %v2460, %v2457
    %v2494 = vpack.c.b16 %v2464, %v2461
    %v2495 = vpack.c.b16 %v2465, %v2462
    %v2496 = vpack.c.b16 %v2466, %v2463
    %v2497 = vpack.c.b16 %v2470, %v2467
    %v2498 = vpack.c.b16 %v2471, %v2468
    %v2499 = vpack.c.b16 %v2472, %v2469
    %v2500 = vpack.c.b16 %v2476, %v2473
    %v2501 = vpack.c.b16 %v2477, %v2474
    %v2502 = vpack.c.b16 %v2478, %v2475
    %2527 = vmatprep.subr.bf16.mxu0 %v2501
    %2528 = vmatpush1.bf16.msra.mxu0 %v2500
    %2529 = vmatprep.subr.bf16.mxu0 %v2498
    %2530 = vmatpush1.bf16.msra.mxu0 %v2497
    %2531 = vmatprep.subr.bf16.mxu0 %v2495
    %2532 = vmatpush1.bf16.msra.mxu0 %v2494
    %2533 = vmatprep.subr.bf16.mxu0 %v2492
    %2534 = vmatpush1.bf16.msra.mxu0 %v2491
    %2535 = vmatprep.subr.bf16.mxu0 %v2489
    %2536 = vmatpush1.bf16.msra.mxu0 %v2488
    %2537 = vmatprep.subr.bf16.mxu0 %v2486
    %2538 = vmatpush1.bf16.msra.mxu0 %v2485
    %2539 = vmatprep.subr.bf16.mxu0 %v2483
    %2540 = vmatpush1.bf16.msra.mxu0 %v2482
    %2541 = vmatprep.subr.bf16.mxu0 %v2480
    %2542 = vmatpush1.bf16.msra.mxu0 %v2479
    %2543 = vmatprep.subr.bf16.mxu0 0
    %2544 = vmatpush2.bf16.msra.mxu0 0
    %2545 = vmatprep.subr.bf16.mxu0 0
    %2546 = vmatpush2.bf16.msra.mxu0 0
    %2547 = vmatprep.subr.bf16.mxu0 0
    %2548 = vmatpush2.bf16.msra.mxu0 0
    %2549 = vmatprep.subr.bf16.mxu0 0
    %2550 = vmatpush2.bf16.msra.mxu0 0
    %2551 = vmatprep.subr.bf16.mxu0 0
    %2552 = vmatpush2.bf16.msra.mxu0 0
    %2553 = vmatprep.subr.bf16.mxu0 0
    %2554 = vmatpush2.bf16.msra.mxu0 0
    %2555 = vmatprep.subr.bf16.mxu0 0
    %2556 = vmatpush2.bf16.msra.mxu0 0
    %2557 = vmatprep.subr.bf16.mxu0 0
    %2558 = vmatpush2.bf16.msra.mxu0 0
    %2559 = vmatprep.mubr.bf16.mxu0 0
    %2560 = vmatmul.mubr.bf16.gmra.mxu0 %v2346
    %v2561 = vpop.f32.mrf.mxu0
    %v2562 = vadd.f32 %v2387, %v2561
    %v2563 = vpop.f32.mrf.mxu0
    %v2564 = vadd.f32 %v2391, %v2563
    %v2565 = vpop.f32.mrf.mxu0
    %v2566 = vadd.f32 %v2387, %v2565
    %v2567 = vpop.f32.mrf.mxu0
    %v2568 = vadd.f32 %v2391, %v2567
    %2569 = vmatprep.mubr.bf16.mxu0 0
    %2570 = vmatmul.mubr.bf16.gmra.mxu0 %v2347
    %v2571 = vpop.f32.mrf.mxu0
    %v2572 = vadd.f32 %v2387, %v2571
    %v2573 = vpop.f32.mrf.mxu0
    %v2574 = vadd.f32 %v2391, %v2573
    %v2575 = vpop.f32.mrf.mxu0
    %v2576 = vadd.f32 %v2387, %v2575
    %v2577 = vpop.f32.mrf.mxu0
    %v2578 = vadd.f32 %v2391, %v2577
    %2579 = vdwg.mxu0
    %2580 = vmatprep.subr.bf16.mxu0 0
    %2581 = vmatpush1.bf16.msra.mxu0 %v2502
    %2582 = vmatprep.subr.bf16.mxu0 0
    %2583 = vmatpush1.bf16.msra.mxu0 %v2499
    %2584 = vmatprep.subr.bf16.mxu0 0
    %2585 = vmatpush1.bf16.msra.mxu0 %v2496
    %2586 = vmatprep.subr.bf16.mxu0 0
    %2587 = vmatpush1.bf16.msra.mxu0 %v2493
    %2588 = vmatprep.subr.bf16.mxu0 0
    %2589 = vmatpush1.bf16.msra.mxu0 %v2490
    %2590 = vmatprep.subr.bf16.mxu0 0
    %2591 = vmatpush1.bf16.msra.mxu0 %v2487
    %2592 = vmatprep.subr.bf16.mxu0 0
    %2593 = vmatpush1.bf16.msra.mxu0 %v2484
    %2594 = vmatprep.subr.bf16.mxu0 0
    %2595 = vmatpush1.bf16.msra.mxu0 %v2481
    %2596 = vmatprep.subr.bf16.mxu0 0
    %2597 = vmatpush2.bf16.msra.mxu0 0
    %2598 = vmatprep.subr.bf16.mxu0 0
    %2599 = vmatpush2.bf16.msra.mxu0 0
    %2600 = vmatprep.subr.bf16.mxu0 0
    %2601 = vmatpush2.bf16.msra.mxu0 0
    %2602 = vmatprep.subr.bf16.mxu0 0
    %2603 = vmatpush2.bf16.msra.mxu0 0
    %2604 = vmatprep.subr.bf16.mxu0 0
    %2605 = vmatpush2.bf16.msra.mxu0 0
    %2606 = vmatprep.subr.bf16.mxu0 0
    %2607 = vmatpush2.bf16.msra.mxu0 0
    %2608 = vmatprep.subr.bf16.mxu0 0
    %2609 = vmatpush2.bf16.msra.mxu0 0
    %2610 = vmatprep.subr.bf16.mxu0 0
    %2611 = vmatpush2.bf16.msra.mxu0 0
    %2612 = vmatprep.mubr.bf16.mxu0 0
    %2613 = vmatmul.mubr.bf16.gmra.mxu0 %v2346
    %v2614 = vpop.f32.mrf.mxu0
    %v2615 = vadd.f32 %v2395, %v2614
    %v2616 = vpop.f32.mrf.mxu0
    %v2617 = vpop.f32.mrf.mxu0
    %v2618 = vadd.f32 %v2395, %v2617
    %v2619 = vpop.f32.mrf.mxu0
    %2620 = vmatprep.mubr.bf16.mxu0 0
    %2621 = vmatmul.mubr.bf16.gmra.mxu0 %v2347
    %v2622 = vpop.f32.mrf.mxu0
    %v2623 = vadd.f32 %v2395, %v2622
    %v2624 = vpop.f32.mrf.mxu0
    %v2625 = vpop.f32.mrf.mxu0
    %v2626 = vadd.f32 %v2395, %v2625
    %v2627 = vpop.f32.mrf.mxu0
    %2628 = vdwg.mxu0
    %2633 = vrot.lane.b32.xlu0 %v2562, 96
    %v2634 = vpop.permute.xlu0 %2633
    %2635 = vrot.lane.b32.xlu0 %v2566, 96
    %v2636 = vpop.permute.xlu0 %2635
    %2637 = vrot.lane.b32.xlu0 %v2572, 96
    %v2638 = vpop.permute.xlu0 %2637
    %2639 = vrot.lane.b32.xlu0 %v2576, 96
    %v2640 = vpop.permute.xlu0 %2639
    %2645 = vrot.lane.b32.xlu0 %v2562, 64
    %v2646 = vpop.permute.xlu0 %2645
    %2647 = vrot.lane.b32.xlu0 %v2566, 64
    %v2648 = vpop.permute.xlu0 %2647
    %2649 = vrot.lane.b32.xlu0 %v2572, 64
    %v2650 = vpop.permute.xlu0 %2649
    %2651 = vrot.lane.b32.xlu0 %v2576, 64
    %v2652 = vpop.permute.xlu0 %2651
    %2657 = vrot.lane.b32.xlu0 %v2562, 32
    %v2658 = vpop.permute.xlu0 %2657
    %2659 = vrot.lane.b32.xlu0 %v2566, 32
    %v2660 = vpop.permute.xlu0 %2659
    %2661 = vrot.lane.b32.xlu0 %v2572, 32
    %v2662 = vpop.permute.xlu0 %2661
    %2663 = vrot.lane.b32.xlu0 %v2576, 32
    %v2664 = vpop.permute.xlu0 %2663
    %2673 = vrot.lane.b32.xlu0 %v2564, 96
    %v2674 = vpop.permute.xlu0 %2673
    %2675 = vrot.lane.b32.xlu0 %v2568, 96
    %v2676 = vpop.permute.xlu0 %2675
    %2677 = vrot.lane.b32.xlu0 %v2574, 96
    %v2678 = vpop.permute.xlu0 %2677
    %2679 = vrot.lane.b32.xlu0 %v2578, 96
    %v2680 = vpop.permute.xlu0 %2679
    %2685 = vrot.lane.b32.xlu0 %v2564, 64
    %v2686 = vpop.permute.xlu0 %2685
    %2687 = vrot.lane.b32.xlu0 %v2568, 64
    %v2688 = vpop.permute.xlu0 %2687
    %2689 = vrot.lane.b32.xlu0 %v2574, 64
    %v2690 = vpop.permute.xlu0 %2689
    %2691 = vrot.lane.b32.xlu0 %v2578, 64
    %v2692 = vpop.permute.xlu0 %2691
    %2697 = vrot.lane.b32.xlu0 %v2564, 32
    %v2698 = vpop.permute.xlu0 %2697
    %2699 = vrot.lane.b32.xlu0 %v2568, 32
    %v2700 = vpop.permute.xlu0 %2699
    %2701 = vrot.lane.b32.xlu0 %v2574, 32
    %v2702 = vpop.permute.xlu0 %2701
    %2703 = vrot.lane.b32.xlu0 %v2578, 32
    %v2704 = vpop.permute.xlu0 %2703
    %2713 = vrot.lane.b32.xlu0 %v2615, 96
    %v2714 = vpop.permute.xlu0 %2713
    %2715 = vrot.lane.b32.xlu0 %v2618, 96
    %v2716 = vpop.permute.xlu0 %2715
    %2717 = vrot.lane.b32.xlu0 %v2623, 96
    %v2718 = vpop.permute.xlu0 %2717
    %2719 = vrot.lane.b32.xlu0 %v2626, 96
    %v2720 = vpop.permute.xlu0 %2719
    %2725 = vrot.lane.b32.xlu0 %v2615, 64
    %v2726 = vpop.permute.xlu0 %2725
    %2727 = vrot.lane.b32.xlu0 %v2618, 64
    %v2728 = vpop.permute.xlu0 %2727
    %2729 = vrot.lane.b32.xlu0 %v2623, 64
    %v2730 = vpop.permute.xlu0 %2729
    %2731 = vrot.lane.b32.xlu0 %v2626, 64
    %v2732 = vpop.permute.xlu0 %2731
    %2737 = vrot.lane.b32.xlu0 %v2615, 32
    %v2738 = vpop.permute.xlu0 %2737
    %2739 = vrot.lane.b32.xlu0 %v2618, 32
    %v2740 = vpop.permute.xlu0 %2739
    %2741 = vrot.lane.b32.xlu0 %v2623, 32
    %v2742 = vpop.permute.xlu0 %2741
    %2743 = vrot.lane.b32.xlu0 %v2626, 32
    %v2744 = vpop.permute.xlu0 %2743
    %v2749 = vpack.c.bf16 %v2566, %v2562
    %v2750 = vpack.c.bf16 %v2576, %v2572
    %v2751 = vpack.c.bf16 %v2636, %v2634
    %v2752 = vpack.c.bf16 %v2640, %v2638
    %v2753 = vpack.c.bf16 %v2648, %v2646
    %v2754 = vpack.c.bf16 %v2652, %v2650
    %v2755 = vpack.c.bf16 %v2660, %v2658
    %v2756 = vpack.c.bf16 %v2664, %v2662
    %v2757 = vpack.c.bf16 %v2568, %v2564
    %v2758 = vpack.c.bf16 %v2578, %v2574
    %v2759 = vpack.c.bf16 %v2676, %v2674
    %v2760 = vpack.c.bf16 %v2680, %v2678
    %v2761 = vpack.c.bf16 %v2688, %v2686
    %v2762 = vpack.c.bf16 %v2692, %v2690
    %v2763 = vpack.c.bf16 %v2700, %v2698
    %v2764 = vpack.c.bf16 %v2704, %v2702
    %v2766 = vsel %vm597, %v2749, 0
    %v2769 = vsel %vm597, %v2757, 0
    %2771 = vmatprep.subr.bf16.mxu0 0
    %2772 = vmatpush1.bf16.xpose.msra.mxu0 0
    %2773 = vmatprep.subr.bf16.mxu0 0
    %2774 = vmatpush1.bf16.xpose.msra.mxu0 0
    %2775 = vmatprep.subr.bf16.mxu0 0
    %2776 = vmatpush1.bf16.xpose.msra.mxu0 0
    %2777 = vmatprep.subr.bf16.mxu0 0
    %2778 = vmatpush1.bf16.xpose.msra.mxu0 0
    %2779 = vmatprep.subr.bf16.mxu0 0
    %2780 = vmatpush1.bf16.xpose.msra.mxu0 0
    %2781 = vmatprep.subr.bf16.mxu0 0
    %2782 = vmatpush1.bf16.xpose.msra.mxu0 0
    %2783 = vmatprep.subr.bf16.mxu0 0
    %2784 = vmatpush1.bf16.xpose.msra.mxu0 0
    %2785 = vmatprep.subr.bf16.mxu0 0
    %2786 = vmatpush1.bf16.xpose.msra.mxu0 %v2769
    %2787 = vmatprep.subr.bf16.mxu0 0
    %2788 = vmatpush2.bf16.xpose.msra.mxu0 0
    %2789 = vmatprep.subr.bf16.mxu0 0
    %2790 = vmatpush2.bf16.xpose.msra.mxu0 0
    %2791 = vmatprep.subr.bf16.mxu0 0
    %2792 = vmatpush2.bf16.xpose.msra.mxu0 0
    %2793 = vmatprep.subr.bf16.mxu0 0
    %2794 = vmatpush2.bf16.xpose.msra.mxu0 0
    %2795 = vmatprep.subr.bf16.mxu0 0
    %2796 = vmatpush2.bf16.xpose.msra.mxu0 0
    %2797 = vmatprep.subr.bf16.mxu0 0
    %2798 = vmatpush2.bf16.xpose.msra.mxu0 0
    %2799 = vmatprep.subr.bf16.mxu0 0
    %2800 = vmatpush2.bf16.xpose.msra.mxu0 0
    %2801 = vmatprep.subr.bf16.mxu0 0
    %2802 = vmatpush2.bf16.xpose.msra.mxu0 0
    %2803 = vmatprep.mubr.bf16.mxu0 0
    %2804 = vmatmul.mubr.bf16.gmra.mxu0 %v2766
    %v2805 = vpop.f32.mrf.mxu0
    %v2806 = vadd.f32 0.0, %v2805
    %v2807 = vpop.f32.mrf.mxu0
    %v2808 = vpop.f32.mrf.mxu0
    %v2809 = vadd.f32 0.0, %v2808
    %v2810 = vpop.f32.mrf.mxu0
    %2811 = vdwg.mxu0
    %v2813 = vsel %vm597, %v2750, 0
    %v2816 = vsel %vm597, %v2758, 0
    %2818 = vmatprep.subr.bf16.mxu0 0
    %2819 = vmatpush1.bf16.xpose.msra.mxu0 0
    %2820 = vmatprep.subr.bf16.mxu0 0
    %2821 = vmatpush1.bf16.xpose.msra.mxu0 0
    %2822 = vmatprep.subr.bf16.mxu0 0
    %2823 = vmatpush1.bf16.xpose.msra.mxu0 0
    %2824 = vmatprep.subr.bf16.mxu0 0
    %2825 = vmatpush1.bf16.xpose.msra.mxu0 0
    %2826 = vmatprep.subr.bf16.mxu0 0
    %2827 = vmatpush1.bf16.xpose.msra.mxu0 0
    %2828 = vmatprep.subr.bf16.mxu0 0
    %2829 = vmatpush1.bf16.xpose.msra.mxu0 0
    %2830 = vmatprep.subr.bf16.mxu0 0
    %2831 = vmatpush1.bf16.xpose.msra.mxu0 0
    %2832 = vmatprep.subr.bf16.mxu0 0
    %2833 = vmatpush1.bf16.xpose.msra.mxu0 %v2816
    %2834 = vmatprep.subr.bf16.mxu0 0
    %2835 = vmatpush2.bf16.xpose.msra.mxu0 0
    %2836 = vmatprep.subr.bf16.mxu0 0
    %2837 = vmatpush2.bf16.xpose.msra.mxu0 0
    %2838 = vmatprep.subr.bf16.mxu0 0
    %2839 = vmatpush2.bf16.xpose.msra.mxu0 0
    %2840 = vmatprep.subr.bf16.mxu0 0
    %2841 = vmatpush2.bf16.xpose.msra.mxu0 0
    %2842 = vmatprep.subr.bf16.mxu0 0
    %2843 = vmatpush2.bf16.xpose.msra.mxu0 0
    %2844 = vmatprep.subr.bf16.mxu0 0
    %2845 = vmatpush2.bf16.xpose.msra.mxu0 0
    %2846 = vmatprep.subr.bf16.mxu0 0
    %2847 = vmatpush2.bf16.xpose.msra.mxu0 0
    %2848 = vmatprep.subr.bf16.mxu0 0
    %2849 = vmatpush2.bf16.xpose.msra.mxu0 0
    %2850 = vmatprep.mubr.bf16.mxu0 0
    %2851 = vmatmul.mubr.bf16.gmra.mxu0 %v2813
    %v2852 = vpop.f32.mrf.mxu0
    %v2853 = vadd.f32 0.0, %v2852
    %v2854 = vpop.f32.mrf.mxu0
    %v2855 = vpop.f32.mrf.mxu0
    %v2856 = vadd.f32 0.0, %v2855
    %v2857 = vpop.f32.mrf.mxu0
    %2858 = vdwg.mxu0
    %v2860 = vsel %vm597, %v2751, 0
    %v2863 = vsel %vm597, %v2759, 0
    %2865 = vmatprep.subr.bf16.mxu0 0
    %2866 = vmatpush1.bf16.xpose.msra.mxu0 0
    %2867 = vmatprep.subr.bf16.mxu0 0
    %2868 = vmatpush1.bf16.xpose.msra.mxu0 0
    %2869 = vmatprep.subr.bf16.mxu0 0
    %2870 = vmatpush1.bf16.xpose.msra.mxu0 0
    %2871 = vmatprep.subr.bf16.mxu0 0
    %2872 = vmatpush1.bf16.xpose.msra.mxu0 0
    %2873 = vmatprep.subr.bf16.mxu0 0
    %2874 = vmatpush1.bf16.xpose.msra.mxu0 0
    %2875 = vmatprep.subr.bf16.mxu0 0
    %2876 = vmatpush1.bf16.xpose.msra.mxu0 0
    %2877 = vmatprep.subr.bf16.mxu0 0
    %2878 = vmatpush1.bf16.xpose.msra.mxu0 0
    %2879 = vmatprep.subr.bf16.mxu0 0
    %2880 = vmatpush1.bf16.xpose.msra.mxu0 %v2863
    %2881 = vmatprep.subr.bf16.mxu0 0
    %2882 = vmatpush2.bf16.xpose.msra.mxu0 0
    %2883 = vmatprep.subr.bf16.mxu0 0
    %2884 = vmatpush2.bf16.xpose.msra.mxu0 0
    %2885 = vmatprep.subr.bf16.mxu0 0
    %2886 = vmatpush2.bf16.xpose.msra.mxu0 0
    %2887 = vmatprep.subr.bf16.mxu0 0
    %2888 = vmatpush2.bf16.xpose.msra.mxu0 0
    %2889 = vmatprep.subr.bf16.mxu0 0
    %2890 = vmatpush2.bf16.xpose.msra.mxu0 0
    %2891 = vmatprep.subr.bf16.mxu0 0
    %2892 = vmatpush2.bf16.xpose.msra.mxu0 0
    %2893 = vmatprep.subr.bf16.mxu0 0
    %2894 = vmatpush2.bf16.xpose.msra.mxu0 0
    %2895 = vmatprep.subr.bf16.mxu0 0
    %2896 = vmatpush2.bf16.xpose.msra.mxu0 0
    %2897 = vmatprep.mubr.bf16.mxu0 0
    %2898 = vmatmul.mubr.bf16.gmra.mxu0 %v2860
    %v2899 = vpop.f32.mrf.mxu0
    %v2900 = vadd.f32 0.0, %v2899
    %v2901 = vpop.f32.mrf.mxu0
    %v2902 = vpop.f32.mrf.mxu0
    %v2903 = vadd.f32 0.0, %v2902
    %v2904 = vpop.f32.mrf.mxu0
    %2905 = vdwg.mxu0
    %v2907 = vsel %vm597, %v2752, 0
    %v2910 = vsel %vm597, %v2760, 0
    %2912 = vmatprep.subr.bf16.mxu0 0
    %2913 = vmatpush1.bf16.xpose.msra.mxu0 0
    %2914 = vmatprep.subr.bf16.mxu0 0
    %2915 = vmatpush1.bf16.xpose.msra.mxu0 0
    %2916 = vmatprep.subr.bf16.mxu0 0
    %2917 = vmatpush1.bf16.xpose.msra.mxu0 0
    %2918 = vmatprep.subr.bf16.mxu0 0
    %2919 = vmatpush1.bf16.xpose.msra.mxu0 0
    %2920 = vmatprep.subr.bf16.mxu0 0
    %2921 = vmatpush1.bf16.xpose.msra.mxu0 0
    %2922 = vmatprep.subr.bf16.mxu0 0
    %2923 = vmatpush1.bf16.xpose.msra.mxu0 0
    %2924 = vmatprep.subr.bf16.mxu0 0
    %2925 = vmatpush1.bf16.xpose.msra.mxu0 0
    %2926 = vmatprep.subr.bf16.mxu0 0
    %2927 = vmatpush1.bf16.xpose.msra.mxu0 %v2910
    %2928 = vmatprep.subr.bf16.mxu0 0
    %2929 = vmatpush2.bf16.xpose.msra.mxu0 0
    %2930 = vmatprep.subr.bf16.mxu0 0
    %2931 = vmatpush2.bf16.xpose.msra.mxu0 0
    %2932 = vmatprep.subr.bf16.mxu0 0
    %2933 = vmatpush2.bf16.xpose.msra.mxu0 0
    %2934 = vmatprep.subr.bf16.mxu0 0
    %2935 = vmatpush2.bf16.xpose.msra.mxu0 0
    %2936 = vmatprep.subr.bf16.mxu0 0
    %2937 = vmatpush2.bf16.xpose.msra.mxu0 0
    %2938 = vmatprep.subr.bf16.mxu0 0
    %2939 = vmatpush2.bf16.xpose.msra.mxu0 0
    %2940 = vmatprep.subr.bf16.mxu0 0
    %2941 = vmatpush2.bf16.xpose.msra.mxu0 0
    %2942 = vmatprep.subr.bf16.mxu0 0
    %2943 = vmatpush2.bf16.xpose.msra.mxu0 0
    %2944 = vmatprep.mubr.bf16.mxu0 0
    %2945 = vmatmul.mubr.bf16.gmra.mxu0 %v2907
    %v2946 = vpop.f32.mrf.mxu0
    %v2947 = vadd.f32 0.0, %v2946
    %v2948 = vpop.f32.mrf.mxu0
    %v2949 = vpop.f32.mrf.mxu0
    %v2950 = vadd.f32 0.0, %v2949
    %v2951 = vpop.f32.mrf.mxu0
    %2952 = vdwg.mxu0
    %v2954 = vsel %vm597, %v2753, 0
    %v2957 = vsel %vm597, %v2761, 0
    %2959 = vmatprep.subr.bf16.mxu0 0
    %2960 = vmatpush1.bf16.xpose.msra.mxu0 0
    %2961 = vmatprep.subr.bf16.mxu0 0
    %2962 = vmatpush1.bf16.xpose.msra.mxu0 0
    %2963 = vmatprep.subr.bf16.mxu0 0
    %2964 = vmatpush1.bf16.xpose.msra.mxu0 0
    %2965 = vmatprep.subr.bf16.mxu0 0
    %2966 = vmatpush1.bf16.xpose.msra.mxu0 0
    %2967 = vmatprep.subr.bf16.mxu0 0
    %2968 = vmatpush1.bf16.xpose.msra.mxu0 0
    %2969 = vmatprep.subr.bf16.mxu0 0
    %2970 = vmatpush1.bf16.xpose.msra.mxu0 0
    %2971 = vmatprep.subr.bf16.mxu0 0
    %2972 = vmatpush1.bf16.xpose.msra.mxu0 0
    %2973 = vmatprep.subr.bf16.mxu0 0
    %2974 = vmatpush1.bf16.xpose.msra.mxu0 %v2957
    %2975 = vmatprep.subr.bf16.mxu0 0
    %2976 = vmatpush2.bf16.xpose.msra.mxu0 0
    %2977 = vmatprep.subr.bf16.mxu0 0
    %2978 = vmatpush2.bf16.xpose.msra.mxu0 0
    %2979 = vmatprep.subr.bf16.mxu0 0
    %2980 = vmatpush2.bf16.xpose.msra.mxu0 0
    %2981 = vmatprep.subr.bf16.mxu0 0
    %2982 = vmatpush2.bf16.xpose.msra.mxu0 0
    %2983 = vmatprep.subr.bf16.mxu0 0
    %2984 = vmatpush2.bf16.xpose.msra.mxu0 0
    %2985 = vmatprep.subr.bf16.mxu0 0
    %2986 = vmatpush2.bf16.xpose.msra.mxu0 0
    %2987 = vmatprep.subr.bf16.mxu0 0
    %2988 = vmatpush2.bf16.xpose.msra.mxu0 0
    %2989 = vmatprep.subr.bf16.mxu0 0
    %2990 = vmatpush2.bf16.xpose.msra.mxu0 0
    %2991 = vmatprep.mubr.bf16.mxu0 0
    %2992 = vmatmul.mubr.bf16.gmra.mxu0 %v2954
    %v2993 = vpop.f32.mrf.mxu0
    %v2994 = vadd.f32 0.0, %v2993
    %v2995 = vpop.f32.mrf.mxu0
    %v2996 = vpop.f32.mrf.mxu0
    %v2997 = vadd.f32 0.0, %v2996
    %v2998 = vpop.f32.mrf.mxu0
    %2999 = vdwg.mxu0
    %v3001 = vsel %vm597, %v2754, 0
    %v3004 = vsel %vm597, %v2762, 0
    %3006 = vmatprep.subr.bf16.mxu0 0
    %3007 = vmatpush1.bf16.xpose.msra.mxu0 0
    %3008 = vmatprep.subr.bf16.mxu0 0
    %3009 = vmatpush1.bf16.xpose.msra.mxu0 0
    %3010 = vmatprep.subr.bf16.mxu0 0
    %3011 = vmatpush1.bf16.xpose.msra.mxu0 0
    %3012 = vmatprep.subr.bf16.mxu0 0
    %3013 = vmatpush1.bf16.xpose.msra.mxu0 0
    %3014 = vmatprep.subr.bf16.mxu0 0
    %3015 = vmatpush1.bf16.xpose.msra.mxu0 0
    %3016 = vmatprep.subr.bf16.mxu0 0
    %3017 = vmatpush1.bf16.xpose.msra.mxu0 0
    %3018 = vmatprep.subr.bf16.mxu0 0
    %3019 = vmatpush1.bf16.xpose.msra.mxu0 0
    %3020 = vmatprep.subr.bf16.mxu0 0
    %3021 = vmatpush1.bf16.xpose.msra.mxu0 %v3004
    %3022 = vmatprep.subr.bf16.mxu0 0
    %3023 = vmatpush2.bf16.xpose.msra.mxu0 0
    %3024 = vmatprep.subr.bf16.mxu0 0
    %3025 = vmatpush2.bf16.xpose.msra.mxu0 0
    %3026 = vmatprep.subr.bf16.mxu0 0
    %3027 = vmatpush2.bf16.xpose.msra.mxu0 0
    %3028 = vmatprep.subr.bf16.mxu0 0
    %3029 = vmatpush2.bf16.xpose.msra.mxu0 0
    %3030 = vmatprep.subr.bf16.mxu0 0
    %3031 = vmatpush2.bf16.xpose.msra.mxu0 0
    %3032 = vmatprep.subr.bf16.mxu0 0
    %3033 = vmatpush2.bf16.xpose.msra.mxu0 0
    %3034 = vmatprep.subr.bf16.mxu0 0
    %3035 = vmatpush2.bf16.xpose.msra.mxu0 0
    %3036 = vmatprep.subr.bf16.mxu0 0
    %3037 = vmatpush2.bf16.xpose.msra.mxu0 0
    %3038 = vmatprep.mubr.bf16.mxu0 0
    %3039 = vmatmul.mubr.bf16.gmra.mxu0 %v3001
    %v3040 = vpop.f32.mrf.mxu0
    %v3041 = vadd.f32 0.0, %v3040
    %v3042 = vpop.f32.mrf.mxu0
    %v3043 = vpop.f32.mrf.mxu0
    %v3044 = vadd.f32 0.0, %v3043
    %v3045 = vpop.f32.mrf.mxu0
    %3046 = vdwg.mxu0
    %v3048 = vsel %vm597, %v2755, 0
    %v3051 = vsel %vm597, %v2763, 0
    %3053 = vmatprep.subr.bf16.mxu0 0
    %3054 = vmatpush1.bf16.xpose.msra.mxu0 0
    %3055 = vmatprep.subr.bf16.mxu0 0
    %3056 = vmatpush1.bf16.xpose.msra.mxu0 0
    %3057 = vmatprep.subr.bf16.mxu0 0
    %3058 = vmatpush1.bf16.xpose.msra.mxu0 0
    %3059 = vmatprep.subr.bf16.mxu0 0
    %3060 = vmatpush1.bf16.xpose.msra.mxu0 0
    %3061 = vmatprep.subr.bf16.mxu0 0
    %3062 = vmatpush1.bf16.xpose.msra.mxu0 0
    %3063 = vmatprep.subr.bf16.mxu0 0
    %3064 = vmatpush1.bf16.xpose.msra.mxu0 0
    %3065 = vmatprep.subr.bf16.mxu0 0
    %3066 = vmatpush1.bf16.xpose.msra.mxu0 0
    %3067 = vmatprep.subr.bf16.mxu0 0
    %3068 = vmatpush1.bf16.xpose.msra.mxu0 %v3051
    %3069 = vmatprep.subr.bf16.mxu0 0
    %3070 = vmatpush2.bf16.xpose.msra.mxu0 0
    %3071 = vmatprep.subr.bf16.mxu0 0
    %3072 = vmatpush2.bf16.xpose.msra.mxu0 0
    %3073 = vmatprep.subr.bf16.mxu0 0
    %3074 = vmatpush2.bf16.xpose.msra.mxu0 0
    %3075 = vmatprep.subr.bf16.mxu0 0
    %3076 = vmatpush2.bf16.xpose.msra.mxu0 0
    %3077 = vmatprep.subr.bf16.mxu0 0
    %3078 = vmatpush2.bf16.xpose.msra.mxu0 0
    %3079 = vmatprep.subr.bf16.mxu0 0
    %3080 = vmatpush2.bf16.xpose.msra.mxu0 0
    %3081 = vmatprep.subr.bf16.mxu0 0
    %3082 = vmatpush2.bf16.xpose.msra.mxu0 0
    %3083 = vmatprep.subr.bf16.mxu0 0
    %3084 = vmatpush2.bf16.xpose.msra.mxu0 0
    %3085 = vmatprep.mubr.bf16.mxu0 0
    %3086 = vmatmul.mubr.bf16.gmra.mxu0 %v3048
    %v3087 = vpop.f32.mrf.mxu0
    %v3088 = vadd.f32 0.0, %v3087
    %v3089 = vpop.f32.mrf.mxu0
    %v3090 = vpop.f32.mrf.mxu0
    %v3091 = vadd.f32 0.0, %v3090
    %v3092 = vpop.f32.mrf.mxu0
    %3093 = vdwg.mxu0
    %v3095 = vsel %vm597, %v2756, 0
    %v3098 = vsel %vm597, %v2764, 0
    %3100 = vmatprep.subr.bf16.mxu0 0
    %3101 = vmatpush1.bf16.xpose.msra.mxu0 0
    %3102 = vmatprep.subr.bf16.mxu0 0
    %3103 = vmatpush1.bf16.xpose.msra.mxu0 0
    %3104 = vmatprep.subr.bf16.mxu0 0
    %3105 = vmatpush1.bf16.xpose.msra.mxu0 0
    %3106 = vmatprep.subr.bf16.mxu0 0
    %3107 = vmatpush1.bf16.xpose.msra.mxu0 0
    %3108 = vmatprep.subr.bf16.mxu0 0
    %3109 = vmatpush1.bf16.xpose.msra.mxu0 0
    %3110 = vmatprep.subr.bf16.mxu0 0
    %3111 = vmatpush1.bf16.xpose.msra.mxu0 0
    %3112 = vmatprep.subr.bf16.mxu0 0
    %3113 = vmatpush1.bf16.xpose.msra.mxu0 0
    %3114 = vmatprep.subr.bf16.mxu0 0
    %3115 = vmatpush1.bf16.xpose.msra.mxu0 %v3098
    %3116 = vmatprep.subr.bf16.mxu0 0
    %3117 = vmatpush2.bf16.xpose.msra.mxu0 0
    %3118 = vmatprep.subr.bf16.mxu0 0
    %3119 = vmatpush2.bf16.xpose.msra.mxu0 0
    %3120 = vmatprep.subr.bf16.mxu0 0
    %3121 = vmatpush2.bf16.xpose.msra.mxu0 0
    %3122 = vmatprep.subr.bf16.mxu0 0
    %3123 = vmatpush2.bf16.xpose.msra.mxu0 0
    %3124 = vmatprep.subr.bf16.mxu0 0
    %3125 = vmatpush2.bf16.xpose.msra.mxu0 0
    %3126 = vmatprep.subr.bf16.mxu0 0
    %3127 = vmatpush2.bf16.xpose.msra.mxu0 0
    %3128 = vmatprep.subr.bf16.mxu0 0
    %3129 = vmatpush2.bf16.xpose.msra.mxu0 0
    %3130 = vmatprep.subr.bf16.mxu0 0
    %3131 = vmatpush2.bf16.xpose.msra.mxu0 0
    %3132 = vmatprep.mubr.bf16.mxu0 0
    %3133 = vmatmul.mubr.bf16.gmra.mxu0 %v3095
    %v3134 = vpop.f32.mrf.mxu0
    %v3135 = vadd.f32 0.0, %v3134
    %v3136 = vpop.f32.mrf.mxu0
    %v3137 = vpop.f32.mrf.mxu0
    %v3138 = vadd.f32 0.0, %v3137
    %v3139 = vpop.f32.mrf.mxu0
    %3140 = vdwg.mxu0
    %v3141 = vmul.f32 %v2806, 0.17677669
    %v3142 = vmul.f32 %v2809, 0.17677669
    %v3143 = vmul.f32 %v2853, 0.17677669
    %v3144 = vmul.f32 %v2856, 0.17677669
    %v3145 = vmul.f32 %v2900, 0.17677669
    %v3146 = vmul.f32 %v2903, 0.17677669
    %v3147 = vmul.f32 %v2947, 0.17677669
    %v3148 = vmul.f32 %v2950, 0.17677669
    %v3149 = vmul.f32 %v2994, 0.17677669
    %v3150 = vmul.f32 %v2997, 0.17677669
    %v3151 = vmul.f32 %v3041, 0.17677669
    %v3152 = vmul.f32 %v3044, 0.17677669
    %v3153 = vmul.f32 %v3088, 0.17677669
    %v3154 = vmul.f32 %v3091, 0.17677669
    %v3155 = vmul.f32 %v3135, 0.17677669
    %v3156 = vmul.f32 %v3138, 0.17677669
    %v3157 = vadd.f32 %v3141, %v1001
    %v3158 = vadd.f32 %v3142, %v1001
    %v3159 = vadd.f32 %v3143, %v1005
    %v3160 = vadd.f32 %v3144, %v1005
    %v3161 = vadd.f32 %v3145, %v1009
    %v3162 = vadd.f32 %v3146, %v1009
    %v3163 = vadd.f32 %v3147, %v1013
    %v3164 = vadd.f32 %v3148, %v1013
    %v3165 = vadd.f32 %v3149, %v1017
    %v3166 = vadd.f32 %v3150, %v1017
    %v3167 = vadd.f32 %v3151, %v1021
    %v3168 = vadd.f32 %v3152, %v1021
    %v3169 = vadd.f32 %v3153, %v1025
    %v3170 = vadd.f32 %v3154, %v1025
    %v3171 = vadd.f32 %v3155, %v1029
    %v3172 = vadd.f32 %v3156, %v1029
    %v3173 = vsel %vm1054, %v3157, -inf
    %3174 = vmax.xlane.f32.xlu0 %v3173
    %v3175 = vpop.xlane.xlu0 %3174
    %v3176 = vsel %vm1054, %v3158, -inf
    %3177 = vmax.xlane.f32.xlu0 %v3176
    %v3178 = vpop.xlane.xlu0 %3177
    %v3179 = vsel %vm1054, %v3159, -inf
    %3180 = vmax.xlane.f32.xlu0 %v3179
    %v3181 = vpop.xlane.xlu0 %3180
    %v3182 = vsel %vm1054, %v3160, -inf
    %3183 = vmax.xlane.f32.xlu0 %v3182
    %v3184 = vpop.xlane.xlu0 %3183
    %v3185 = vsel %vm1054, %v3161, -inf
    %3186 = vmax.xlane.f32.xlu0 %v3185
    %v3187 = vpop.xlane.xlu0 %3186
    %v3188 = vsel %vm1054, %v3162, -inf
    %3189 = vmax.xlane.f32.xlu0 %v3188
    %v3190 = vpop.xlane.xlu0 %3189
    %v3191 = vsel %vm1054, %v3163, -inf
    %3192 = vmax.xlane.f32.xlu0 %v3191
    %v3193 = vpop.xlane.xlu0 %3192
    %v3194 = vsel %vm1054, %v3164, -inf
    %3195 = vmax.xlane.f32.xlu0 %v3194
    %v3196 = vpop.xlane.xlu0 %3195
    %v3197 = vsel %vm1054, %v3165, -inf
    %3198 = vmax.xlane.f32.xlu0 %v3197
    %v3199 = vpop.xlane.xlu0 %3198
    %v3200 = vsel %vm1054, %v3166, -inf
    %3201 = vmax.xlane.f32.xlu0 %v3200
    %v3202 = vpop.xlane.xlu0 %3201
    %v3203 = vsel %vm1054, %v3167, -inf
    %3204 = vmax.xlane.f32.xlu0 %v3203
    %v3205 = vpop.xlane.xlu0 %3204
    %v3206 = vsel %vm1054, %v3168, -inf
    %3207 = vmax.xlane.f32.xlu0 %v3206
    %v3208 = vpop.xlane.xlu0 %3207
    %v3209 = vsel %vm1054, %v3169, -inf
    %3210 = vmax.xlane.f32.xlu0 %v3209
    %v3211 = vpop.xlane.xlu0 %3210
    %v3212 = vsel %vm1054, %v3170, -inf
    %3213 = vmax.xlane.f32.xlu0 %v3212
    %v3214 = vpop.xlane.xlu0 %3213
    %v3215 = vsel %vm1054, %v3171, -inf
    %3216 = vmax.xlane.f32.xlu0 %v3215
    %v3217 = vpop.xlane.xlu0 %3216
    %v3218 = vsel %vm1054, %v3172, -inf
    %3219 = vmax.xlane.f32.xlu0 %v3218
    %v3220 = vpop.xlane.xlu0 %3219
    %v3221 = vsub.f32 %v3157, %v3175
    %v3222 = vsub.f32 %v3158, %v3178
    %v3223 = vsub.f32 %v3159, %v3181
    %v3224 = vsub.f32 %v3160, %v3184
    %v3225 = vsub.f32 %v3161, %v3187
    %v3226 = vsub.f32 %v3162, %v3190
    %v3227 = vsub.f32 %v3163, %v3193
    %v3228 = vsub.f32 %v3164, %v3196
    %v3229 = vsub.f32 %v3165, %v3199
    %v3230 = vsub.f32 %v3166, %v3202
    %v3231 = vsub.f32 %v3167, %v3205
    %v3232 = vsub.f32 %v3168, %v3208
    %v3233 = vsub.f32 %v3169, %v3211
    %v3234 = vsub.f32 %v3170, %v3214
    %v3235 = vsub.f32 %v3171, %v3217
    %v3236 = vsub.f32 %v3172, %v3220
    %v3237 = vmul.f32 %v3221, 1.442695
    %v3238 = vpow.pop %v3237
    %v3239 = vmul.f32 %v3222, 1.442695
    %v3240 = vpow.pop %v3239
    %v3241 = vmul.f32 %v3223, 1.442695
    %v3242 = vpow.pop %v3241
    %v3243 = vmul.f32 %v3224, 1.442695
    %v3244 = vpow.pop %v3243
    %v3245 = vmul.f32 %v3225, 1.442695
    %v3246 = vpow.pop %v3245
    %v3247 = vmul.f32 %v3226, 1.442695
    %v3248 = vpow.pop %v3247
    %v3249 = vmul.f32 %v3227, 1.442695
    %v3250 = vpow.pop %v3249
    %v3251 = vmul.f32 %v3228, 1.442695
    %v3252 = vpow.pop %v3251
    %v3253 = vmul.f32 %v3229, 1.442695
    %v3254 = vpow.pop %v3253
    %v3255 = vmul.f32 %v3230, 1.442695
    %v3256 = vpow.pop %v3255
    %v3257 = vmul.f32 %v3231, 1.442695
    %v3258 = vpow.pop %v3257
    %v3259 = vmul.f32 %v3232, 1.442695
    %v3260 = vpow.pop %v3259
    %v3261 = vmul.f32 %v3233, 1.442695
    %v3262 = vpow.pop %v3261
    %v3263 = vmul.f32 %v3234, 1.442695
    %v3264 = vpow.pop %v3263
    %v3265 = vmul.f32 %v3235, 1.442695
    %v3266 = vpow.pop %v3265
    %v3267 = vmul.f32 %v3236, 1.442695
    %v3268 = vpow.pop %v3267
    %v3269 = vsel %vm1054, %v3238, 0.0
    %3270 = vadd.xlane.f32.xlu0 %v3269
    %v3271 = vpop.xlane.xlu0 %3270
    %v3272 = vsel %vm1054, %v3240, 0.0
    %3273 = vadd.xlane.f32.xlu0 %v3272
    %v3274 = vpop.xlane.xlu0 %3273
    %v3275 = vsel %vm1054, %v3242, 0.0
    %3276 = vadd.xlane.f32.xlu0 %v3275
    %v3277 = vpop.xlane.xlu0 %3276
    %v3278 = vsel %vm1054, %v3244, 0.0
    %3279 = vadd.xlane.f32.xlu0 %v3278
    %v3280 = vpop.xlane.xlu0 %3279
    %v3281 = vsel %vm1054, %v3246, 0.0
    %3282 = vadd.xlane.f32.xlu0 %v3281
    %v3283 = vpop.xlane.xlu0 %3282
    %v3284 = vsel %vm1054, %v3248, 0.0
    %3285 = vadd.xlane.f32.xlu0 %v3284
    %v3286 = vpop.xlane.xlu0 %3285
    %v3287 = vsel %vm1054, %v3250, 0.0
    %3288 = vadd.xlane.f32.xlu0 %v3287
    %v3289 = vpop.xlane.xlu0 %3288
    %v3290 = vsel %vm1054, %v3252, 0.0
    %3291 = vadd.xlane.f32.xlu0 %v3290
    %v3292 = vpop.xlane.xlu0 %3291
    %v3293 = vsel %vm1054, %v3254, 0.0
    %3294 = vadd.xlane.f32.xlu0 %v3293
    %v3295 = vpop.xlane.xlu0 %3294
    %v3296 = vsel %vm1054, %v3256, 0.0
    %3297 = vadd.xlane.f32.xlu0 %v3296
    %v3298 = vpop.xlane.xlu0 %3297
    %v3299 = vsel %vm1054, %v3258, 0.0
    %3300 = vadd.xlane.f32.xlu0 %v3299
    %v3301 = vpop.xlane.xlu0 %3300
    %v3302 = vsel %vm1054, %v3260, 0.0
    %3303 = vadd.xlane.f32.xlu0 %v3302
    %v3304 = vpop.xlane.xlu0 %3303
    %v3305 = vsel %vm1054, %v3262, 0.0
    %3306 = vadd.xlane.f32.xlu0 %v3305
    %v3307 = vpop.xlane.xlu0 %3306
    %v3308 = vsel %vm1054, %v3264, 0.0
    %3309 = vadd.xlane.f32.xlu0 %v3308
    %v3310 = vpop.xlane.xlu0 %3309
    %v3311 = vsel %vm1054, %v3266, 0.0
    %3312 = vadd.xlane.f32.xlu0 %v3311
    %v3313 = vpop.xlane.xlu0 %3312
    %v3314 = vsel %vm1054, %v3268, 0.0
    %3315 = vadd.xlane.f32.xlu0 %v3314
    %v3316 = vpop.xlane.xlu0 %3315
    %v3317 = vrcp.pop %v3271
    %v3318 = vrcp.pop %v3274
    %v3319 = vrcp.pop %v3277
    %v3320 = vrcp.pop %v3280
    %v3321 = vrcp.pop %v3283
    %v3322 = vrcp.pop %v3286
    %v3323 = vrcp.pop %v3289
    %v3324 = vrcp.pop %v3292
    %v3325 = vrcp.pop %v3295
    %v3326 = vrcp.pop %v3298
    %v3327 = vrcp.pop %v3301
    %v3328 = vrcp.pop %v3304
    %v3329 = vrcp.pop %v3307
    %v3330 = vrcp.pop %v3310
    %v3331 = vrcp.pop %v3313
    %v3332 = vrcp.pop %v3316
    %v3333 = vmul.f32 %v3238, %v3317
    %v3334 = vmul.f32 %v3240, %v3318
    %v3335 = vmul.f32 %v3242, %v3319
    %v3336 = vmul.f32 %v3244, %v3320
    %v3337 = vmul.f32 %v3246, %v3321
    %v3338 = vmul.f32 %v3248, %v3322
    %v3339 = vmul.f32 %v3250, %v3323
    %v3340 = vmul.f32 %v3252, %v3324
    %v3341 = vmul.f32 %v3254, %v3325
    %v3342 = vmul.f32 %v3256, %v3326
    %v3343 = vmul.f32 %v3258, %v3327
    %v3344 = vmul.f32 %v3260, %v3328
    %v3345 = vmul.f32 %v3262, %v3329
    %v3346 = vmul.f32 %v3264, %v3330
    %v3347 = vmul.f32 %v3266, %v3331
    %v3348 = vmul.f32 %v3268, %v3332
    %v3349 = vpack.c.bf16 %v3334, %v3333
    %v3350 = vpack.c.bf16 %v3336, %v3335
    %v3351 = vpack.c.bf16 %v3338, %v3337
    %v3352 = vpack.c.bf16 %v3340, %v3339
    %v3353 = vpack.c.bf16 %v3342, %v3341
    %v3354 = vpack.c.bf16 %v3344, %v3343
    %v3355 = vpack.c.bf16 %v3346, %v3345
    %v3356 = vpack.c.bf16 %v3348, %v3347
    %v3357 = vpack.c.bf16 %v2618, %v2615
    %v3358 = vpack.c.bf16 %v2626, %v2623
    %v3359 = vpack.c.bf16 %v2716, %v2714
    %v3360 = vpack.c.bf16 %v2720, %v2718
    %v3361 = vpack.c.bf16 %v2728, %v2726
    %v3362 = vpack.c.bf16 %v2732, %v2730
    %v3363 = vpack.c.bf16 %v2740, %v2738
    %v3364 = vpack.c.bf16 %v2744, %v2742
    %v3366 = vsel %vm1054, %v3349, 0
    %3368 = vmatprep.subr.bf16.mxu0 0
    %3369 = vmatpush1.bf16.msra.mxu0 0
    %3370 = vmatprep.subr.bf16.mxu0 0
    %3371 = vmatpush1.bf16.msra.mxu0 0
    %3372 = vmatprep.subr.bf16.mxu0 0
    %3373 = vmatpush1.bf16.msra.mxu0 0
    %3374 = vmatprep.subr.bf16.mxu0 0
    %3375 = vmatpush1.bf16.msra.mxu0 0
    %3376 = vmatprep.subr.bf16.mxu0 0
    %3377 = vmatpush1.bf16.msra.mxu0 0
    %3378 = vmatprep.subr.bf16.mxu0 0
    %3379 = vmatpush1.bf16.msra.mxu0 0
    %3380 = vmatprep.subr.bf16.mxu0 0
    %3381 = vmatpush1.bf16.msra.mxu0 0
    %3382 = vmatprep.subr.bf16.mxu0 0
    %3383 = vmatpush1.bf16.msra.mxu0 %v3357
    %3384 = vmatprep.subr.bf16.mxu0 0
    %3385 = vmatpush2.bf16.msra.mxu0 0
    %3386 = vmatprep.subr.bf16.mxu0 0
    %3387 = vmatpush2.bf16.msra.mxu0 0
    %3388 = vmatprep.subr.bf16.mxu0 0
    %3389 = vmatpush2.bf16.msra.mxu0 0
    %3390 = vmatprep.subr.bf16.mxu0 0
    %3391 = vmatpush2.bf16.msra.mxu0 0
    %3392 = vmatprep.subr.bf16.mxu0 0
    %3393 = vmatpush2.bf16.msra.mxu0 0
    %3394 = vmatprep.subr.bf16.mxu0 0
    %3395 = vmatpush2.bf16.msra.mxu0 0
    %3396 = vmatprep.subr.bf16.mxu0 0
    %3397 = vmatpush2.bf16.msra.mxu0 0
    %3398 = vmatprep.subr.bf16.mxu0 0
    %3399 = vmatpush2.bf16.msra.mxu0 0
    %3400 = vmatprep.mubr.bf16.mxu0 0
    %3401 = vmatmul.mubr.bf16.gmra.mxu0 %v3366
    %v3402 = vpop.f32.mrf.mxu0
    %v3403 = vadd.f32 0.0, %v3402
    %v3404 = vpop.f32.mrf.mxu0
    %v3405 = vpop.f32.mrf.mxu0
    %v3406 = vadd.f32 0.0, %v3405
    %v3407 = vpop.f32.mrf.mxu0
    %3408 = vdwg.mxu0
    %v3410 = vsel %vm1054, %v3350, 0
    %3412 = vmatprep.subr.bf16.mxu0 0
    %3413 = vmatpush1.bf16.msra.mxu0 0
    %3414 = vmatprep.subr.bf16.mxu0 0
    %3415 = vmatpush1.bf16.msra.mxu0 0
    %3416 = vmatprep.subr.bf16.mxu0 0
    %3417 = vmatpush1.bf16.msra.mxu0 0
    %3418 = vmatprep.subr.bf16.mxu0 0
    %3419 = vmatpush1.bf16.msra.mxu0 0
    %3420 = vmatprep.subr.bf16.mxu0 0
    %3421 = vmatpush1.bf16.msra.mxu0 0
    %3422 = vmatprep.subr.bf16.mxu0 0
    %3423 = vmatpush1.bf16.msra.mxu0 0
    %3424 = vmatprep.subr.bf16.mxu0 0
    %3425 = vmatpush1.bf16.msra.mxu0 0
    %3426 = vmatprep.subr.bf16.mxu0 0
    %3427 = vmatpush1.bf16.msra.mxu0 %v3358
    %3428 = vmatprep.subr.bf16.mxu0 0
    %3429 = vmatpush2.bf16.msra.mxu0 0
    %3430 = vmatprep.subr.bf16.mxu0 0
    %3431 = vmatpush2.bf16.msra.mxu0 0
    %3432 = vmatprep.subr.bf16.mxu0 0
    %3433 = vmatpush2.bf16.msra.mxu0 0
    %3434 = vmatprep.subr.bf16.mxu0 0
    %3435 = vmatpush2.bf16.msra.mxu0 0
    %3436 = vmatprep.subr.bf16.mxu0 0
    %3437 = vmatpush2.bf16.msra.mxu0 0
    %3438 = vmatprep.subr.bf16.mxu0 0
    %3439 = vmatpush2.bf16.msra.mxu0 0
    %3440 = vmatprep.subr.bf16.mxu0 0
    %3441 = vmatpush2.bf16.msra.mxu0 0
    %3442 = vmatprep.subr.bf16.mxu0 0
    %3443 = vmatpush2.bf16.msra.mxu0 0
    %3444 = vmatprep.mubr.bf16.mxu0 0
    %3445 = vmatmul.mubr.bf16.gmra.mxu0 %v3410
    %v3446 = vpop.f32.mrf.mxu0
    %v3447 = vadd.f32 0.0, %v3446
    %v3448 = vpop.f32.mrf.mxu0
    %v3449 = vpop.f32.mrf.mxu0
    %v3450 = vadd.f32 0.0, %v3449
    %v3451 = vpop.f32.mrf.mxu0
    %3452 = vdwg.mxu0
    %v3454 = vsel %vm1054, %v3351, 0
    %3456 = vmatprep.subr.bf16.mxu0 0
    %3457 = vmatpush1.bf16.msra.mxu0 0
    %3458 = vmatprep.subr.bf16.mxu0 0
    %3459 = vmatpush1.bf16.msra.mxu0 0
    %3460 = vmatprep.subr.bf16.mxu0 0
    %3461 = vmatpush1.bf16.msra.mxu0 0
    %3462 = vmatprep.subr.bf16.mxu0 0
    %3463 = vmatpush1.bf16.msra.mxu0 0
    %3464 = vmatprep.subr.bf16.mxu0 0
    %3465 = vmatpush1.bf16.msra.mxu0 0
    %3466 = vmatprep.subr.bf16.mxu0 0
    %3467 = vmatpush1.bf16.msra.mxu0 0
    %3468 = vmatprep.subr.bf16.mxu0 0
    %3469 = vmatpush1.bf16.msra.mxu0 0
    %3470 = vmatprep.subr.bf16.mxu0 0
    %3471 = vmatpush1.bf16.msra.mxu0 %v3359
    %3472 = vmatprep.subr.bf16.mxu0 0
    %3473 = vmatpush2.bf16.msra.mxu0 0
    %3474 = vmatprep.subr.bf16.mxu0 0
    %3475 = vmatpush2.bf16.msra.mxu0 0
    %3476 = vmatprep.subr.bf16.mxu0 0
    %3477 = vmatpush2.bf16.msra.mxu0 0
    %3478 = vmatprep.subr.bf16.mxu0 0
    %3479 = vmatpush2.bf16.msra.mxu0 0
    %3480 = vmatprep.subr.bf16.mxu0 0
    %3481 = vmatpush2.bf16.msra.mxu0 0
    %3482 = vmatprep.subr.bf16.mxu0 0
    %3483 = vmatpush2.bf16.msra.mxu0 0
    %3484 = vmatprep.subr.bf16.mxu0 0
    %3485 = vmatpush2.bf16.msra.mxu0 0
    %3486 = vmatprep.subr.bf16.mxu0 0
    %3487 = vmatpush2.bf16.msra.mxu0 0
    %3488 = vmatprep.mubr.bf16.mxu0 0
    %3489 = vmatmul.mubr.bf16.gmra.mxu0 %v3454
    %v3490 = vpop.f32.mrf.mxu0
    %v3491 = vadd.f32 0.0, %v3490
    %v3492 = vpop.f32.mrf.mxu0
    %v3493 = vpop.f32.mrf.mxu0
    %v3494 = vadd.f32 0.0, %v3493
    %v3495 = vpop.f32.mrf.mxu0
    %3496 = vdwg.mxu0
    %v3498 = vsel %vm1054, %v3352, 0
    %3500 = vmatprep.subr.bf16.mxu0 0
    %3501 = vmatpush1.bf16.msra.mxu0 0
    %3502 = vmatprep.subr.bf16.mxu0 0
    %3503 = vmatpush1.bf16.msra.mxu0 0
    %3504 = vmatprep.subr.bf16.mxu0 0
    %3505 = vmatpush1.bf16.msra.mxu0 0
    %3506 = vmatprep.subr.bf16.mxu0 0
    %3507 = vmatpush1.bf16.msra.mxu0 0
    %3508 = vmatprep.subr.bf16.mxu0 0
    %3509 = vmatpush1.bf16.msra.mxu0 0
    %3510 = vmatprep.subr.bf16.mxu0 0
    %3511 = vmatpush1.bf16.msra.mxu0 0
    %3512 = vmatprep.subr.bf16.mxu0 0
    %3513 = vmatpush1.bf16.msra.mxu0 0
    %3514 = vmatprep.subr.bf16.mxu0 0
    %3515 = vmatpush1.bf16.msra.mxu0 %v3360
    %3516 = vmatprep.subr.bf16.mxu0 0
    %3517 = vmatpush2.bf16.msra.mxu0 0
    %3518 = vmatprep.subr.bf16.mxu0 0
    %3519 = vmatpush2.bf16.msra.mxu0 0
    %3520 = vmatprep.subr.bf16.mxu0 0
    %3521 = vmatpush2.bf16.msra.mxu0 0
    %3522 = vmatprep.subr.bf16.mxu0 0
    %3523 = vmatpush2.bf16.msra.mxu0 0
    %3524 = vmatprep.subr.bf16.mxu0 0
    %3525 = vmatpush2.bf16.msra.mxu0 0
    %3526 = vmatprep.subr.bf16.mxu0 0
    %3527 = vmatpush2.bf16.msra.mxu0 0
    %3528 = vmatprep.subr.bf16.mxu0 0
    %3529 = vmatpush2.bf16.msra.mxu0 0
    %3530 = vmatprep.subr.bf16.mxu0 0
    %3531 = vmatpush2.bf16.msra.mxu0 0
    %3532 = vmatprep.mubr.bf16.mxu0 0
    %3533 = vmatmul.mubr.bf16.gmra.mxu0 %v3498
    %v3534 = vpop.f32.mrf.mxu0
    %v3535 = vadd.f32 0.0, %v3534
    %v3536 = vpop.f32.mrf.mxu0
    %v3537 = vpop.f32.mrf.mxu0
    %v3538 = vadd.f32 0.0, %v3537
    %v3539 = vpop.f32.mrf.mxu0
    %3540 = vdwg.mxu0
    %v3542 = vsel %vm1054, %v3353, 0
    %3544 = vmatprep.subr.bf16.mxu0 0
    %3545 = vmatpush1.bf16.msra.mxu0 0
    %3546 = vmatprep.subr.bf16.mxu0 0
    %3547 = vmatpush1.bf16.msra.mxu0 0
    %3548 = vmatprep.subr.bf16.mxu0 0
    %3549 = vmatpush1.bf16.msra.mxu0 0
    %3550 = vmatprep.subr.bf16.mxu0 0
    %3551 = vmatpush1.bf16.msra.mxu0 0
    %3552 = vmatprep.subr.bf16.mxu0 0
    %3553 = vmatpush1.bf16.msra.mxu0 0
    %3554 = vmatprep.subr.bf16.mxu0 0
    %3555 = vmatpush1.bf16.msra.mxu0 0
    %3556 = vmatprep.subr.bf16.mxu0 0
    %3557 = vmatpush1.bf16.msra.mxu0 0
    %3558 = vmatprep.subr.bf16.mxu0 0
    %3559 = vmatpush1.bf16.msra.mxu0 %v3361
    %3560 = vmatprep.subr.bf16.mxu0 0
    %3561 = vmatpush2.bf16.msra.mxu0 0
    %3562 = vmatprep.subr.bf16.mxu0 0
    %3563 = vmatpush2.bf16.msra.mxu0 0
    %3564 = vmatprep.subr.bf16.mxu0 0
    %3565 = vmatpush2.bf16.msra.mxu0 0
    %3566 = vmatprep.subr.bf16.mxu0 0
    %3567 = vmatpush2.bf16.msra.mxu0 0
    %3568 = vmatprep.subr.bf16.mxu0 0
    %3569 = vmatpush2.bf16.msra.mxu0 0
    %3570 = vmatprep.subr.bf16.mxu0 0
    %3571 = vmatpush2.bf16.msra.mxu0 0
    %3572 = vmatprep.subr.bf16.mxu0 0
    %3573 = vmatpush2.bf16.msra.mxu0 0
    %3574 = vmatprep.subr.bf16.mxu0 0
    %3575 = vmatpush2.bf16.msra.mxu0 0
    %3576 = vmatprep.mubr.bf16.mxu0 0
    %3577 = vmatmul.mubr.bf16.gmra.mxu0 %v3542
    %v3578 = vpop.f32.mrf.mxu0
    %v3579 = vadd.f32 0.0, %v3578
    %v3580 = vpop.f32.mrf.mxu0
    %v3581 = vpop.f32.mrf.mxu0
    %v3582 = vadd.f32 0.0, %v3581
    %v3583 = vpop.f32.mrf.mxu0
    %3584 = vdwg.mxu0
    %v3586 = vsel %vm1054, %v3354, 0
    %3588 = vmatprep.subr.bf16.mxu0 0
    %3589 = vmatpush1.bf16.msra.mxu0 0
    %3590 = vmatprep.subr.bf16.mxu0 0
    %3591 = vmatpush1.bf16.msra.mxu0 0
    %3592 = vmatprep.subr.bf16.mxu0 0
    %3593 = vmatpush1.bf16.msra.mxu0 0
    %3594 = vmatprep.subr.bf16.mxu0 0
    %3595 = vmatpush1.bf16.msra.mxu0 0
    %3596 = vmatprep.subr.bf16.mxu0 0
    %3597 = vmatpush1.bf16.msra.mxu0 0
    %3598 = vmatprep.subr.bf16.mxu0 0
    %3599 = vmatpush1.bf16.msra.mxu0 0
    %3600 = vmatprep.subr.bf16.mxu0 0
    %3601 = vmatpush1.bf16.msra.mxu0 0
    %3602 = vmatprep.subr.bf16.mxu0 0
    %3603 = vmatpush1.bf16.msra.mxu0 %v3362
    %3604 = vmatprep.subr.bf16.mxu0 0
    %3605 = vmatpush2.bf16.msra.mxu0 0
    %3606 = vmatprep.subr.bf16.mxu0 0
    %3607 = vmatpush2.bf16.msra.mxu0 0
    %3608 = vmatprep.subr.bf16.mxu0 0
    %3609 = vmatpush2.bf16.msra.mxu0 0
    %3610 = vmatprep.subr.bf16.mxu0 0
    %3611 = vmatpush2.bf16.msra.mxu0 0
    %3612 = vmatprep.subr.bf16.mxu0 0
    %3613 = vmatpush2.bf16.msra.mxu0 0
    %3614 = vmatprep.subr.bf16.mxu0 0
    %3615 = vmatpush2.bf16.msra.mxu0 0
    %3616 = vmatprep.subr.bf16.mxu0 0
    %3617 = vmatpush2.bf16.msra.mxu0 0
    %3618 = vmatprep.subr.bf16.mxu0 0
    %3619 = vmatpush2.bf16.msra.mxu0 0
    %3620 = vmatprep.mubr.bf16.mxu0 0
    %3621 = vmatmul.mubr.bf16.gmra.mxu0 %v3586
    %v3622 = vpop.f32.mrf.mxu0
    %v3623 = vadd.f32 0.0, %v3622
    %v3624 = vpop.f32.mrf.mxu0
    %v3625 = vpop.f32.mrf.mxu0
    %v3626 = vadd.f32 0.0, %v3625
    %v3627 = vpop.f32.mrf.mxu0
    %3628 = vdwg.mxu0
    %v3630 = vsel %vm1054, %v3355, 0
    %3632 = vmatprep.subr.bf16.mxu0 0
    %3633 = vmatpush1.bf16.msra.mxu0 0
    %3634 = vmatprep.subr.bf16.mxu0 0
    %3635 = vmatpush1.bf16.msra.mxu0 0
    %3636 = vmatprep.subr.bf16.mxu0 0
    %3637 = vmatpush1.bf16.msra.mxu0 0
    %3638 = vmatprep.subr.bf16.mxu0 0
    %3639 = vmatpush1.bf16.msra.mxu0 0
    %3640 = vmatprep.subr.bf16.mxu0 0
    %3641 = vmatpush1.bf16.msra.mxu0 0
    %3642 = vmatprep.subr.bf16.mxu0 0
    %3643 = vmatpush1.bf16.msra.mxu0 0
    %3644 = vmatprep.subr.bf16.mxu0 0
    %3645 = vmatpush1.bf16.msra.mxu0 0
    %3646 = vmatprep.subr.bf16.mxu0 0
    %3647 = vmatpush1.bf16.msra.mxu0 %v3363
    %3648 = vmatprep.subr.bf16.mxu0 0
    %3649 = vmatpush2.bf16.msra.mxu0 0
    %3650 = vmatprep.subr.bf16.mxu0 0
    %3651 = vmatpush2.bf16.msra.mxu0 0
    %3652 = vmatprep.subr.bf16.mxu0 0
    %3653 = vmatpush2.bf16.msra.mxu0 0
    %3654 = vmatprep.subr.bf16.mxu0 0
    %3655 = vmatpush2.bf16.msra.mxu0 0
    %3656 = vmatprep.subr.bf16.mxu0 0
    %3657 = vmatpush2.bf16.msra.mxu0 0
    %3658 = vmatprep.subr.bf16.mxu0 0
    %3659 = vmatpush2.bf16.msra.mxu0 0
    %3660 = vmatprep.subr.bf16.mxu0 0
    %3661 = vmatpush2.bf16.msra.mxu0 0
    %3662 = vmatprep.subr.bf16.mxu0 0
    %3663 = vmatpush2.bf16.msra.mxu0 0
    %3664 = vmatprep.mubr.bf16.mxu0 0
    %3665 = vmatmul.mubr.bf16.gmra.mxu0 %v3630
    %v3666 = vpop.f32.mrf.mxu0
    %v3667 = vadd.f32 0.0, %v3666
    %v3668 = vpop.f32.mrf.mxu0
    %v3669 = vpop.f32.mrf.mxu0
    %v3670 = vadd.f32 0.0, %v3669
    %v3671 = vpop.f32.mrf.mxu0
    %3672 = vdwg.mxu0
    %v3674 = vsel %vm1054, %v3356, 0
    %3676 = vmatprep.subr.bf16.mxu0 0
    %3677 = vmatpush1.bf16.msra.mxu0 0
    %3678 = vmatprep.subr.bf16.mxu0 0
    %3679 = vmatpush1.bf16.msra.mxu0 0
    %3680 = vmatprep.subr.bf16.mxu0 0
    %3681 = vmatpush1.bf16.msra.mxu0 0
    %3682 = vmatprep.subr.bf16.mxu0 0
    %3683 = vmatpush1.bf16.msra.mxu0 0
    %3684 = vmatprep.subr.bf16.mxu0 0
    %3685 = vmatpush1.bf16.msra.mxu0 0
    %3686 = vmatprep.subr.bf16.mxu0 0
    %3687 = vmatpush1.bf16.msra.mxu0 0
    %3688 = vmatprep.subr.bf16.mxu0 0
    %3689 = vmatpush1.bf16.msra.mxu0 0
    %3690 = vmatprep.subr.bf16.mxu0 0
    %3691 = vmatpush1.bf16.msra.mxu0 %v3364
    %3692 = vmatprep.subr.bf16.mxu0 0
    %3693 = vmatpush2.bf16.msra.mxu0 0
    %3694 = vmatprep.subr.bf16.mxu0 0
    %3695 = vmatpush2.bf16.msra.mxu0 0
    %3696 = vmatprep.subr.bf16.mxu0 0
    %3697 = vmatpush2.bf16.msra.mxu0 0
    %3698 = vmatprep.subr.bf16.mxu0 0
    %3699 = vmatpush2.bf16.msra.mxu0 0
    %3700 = vmatprep.subr.bf16.mxu0 0
    %3701 = vmatpush2.bf16.msra.mxu0 0
    %3702 = vmatprep.subr.bf16.mxu0 0
    %3703 = vmatpush2.bf16.msra.mxu0 0
    %3704 = vmatprep.subr.bf16.mxu0 0
    %3705 = vmatpush2.bf16.msra.mxu0 0
    %3706 = vmatprep.subr.bf16.mxu0 0
    %3707 = vmatpush2.bf16.msra.mxu0 0
    %3708 = vmatprep.mubr.bf16.mxu0 0
    %3709 = vmatmul.mubr.bf16.gmra.mxu0 %v3674
    %v3710 = vpop.f32.mrf.mxu0
    %v3711 = vadd.f32 0.0, %v3710
    %v3712 = vpop.f32.mrf.mxu0
    %v3713 = vpop.f32.mrf.mxu0
    %v3714 = vadd.f32 0.0, %v3713
    %v3715 = vpop.f32.mrf.mxu0
    %3716 = vdwg.mxu0
    %3721 = vrot.lane.b32.xlu0 %v3491, 32
    %v3722 = vpop.permute.xlu0 %3721
    %3723 = vrot.lane.b32.xlu0 %v3494, 32
    %v3724 = vpop.permute.xlu0 %3723
    %3725 = vrot.lane.b32.xlu0 %v3535, 32
    %v3726 = vpop.permute.xlu0 %3725
    %3727 = vrot.lane.b32.xlu0 %v3538, 32
    %v3728 = vpop.permute.xlu0 %3727
    %3737 = vrot.lane.b32.xlu0 %v3579, 64
    %v3738 = vpop.permute.xlu0 %3737
    %3739 = vrot.lane.b32.xlu0 %v3582, 64
    %v3740 = vpop.permute.xlu0 %3739
    %3741 = vrot.lane.b32.xlu0 %v3623, 64
    %v3742 = vpop.permute.xlu0 %3741
    %3743 = vrot.lane.b32.xlu0 %v3626, 64
    %v3744 = vpop.permute.xlu0 %3743
    %3753 = vrot.lane.b32.xlu0 %v3667, 96
    %v3754 = vpop.permute.xlu0 %3753
    %3755 = vrot.lane.b32.xlu0 %v3670, 96
    %v3756 = vpop.permute.xlu0 %3755
    %3757 = vrot.lane.b32.xlu0 %v3711, 96
    %v3758 = vpop.permute.xlu0 %3757
    %3759 = vrot.lane.b32.xlu0 %v3714, 96
    %v3760 = vpop.permute.xlu0 %3759
    %v3765 = vsel %vm597, %v3403, %v3722
    %v3766 = vsel %vm597, %v3406, %v3724
    %v3767 = vsel %vm597, %v3447, %v3726
    %v3768 = vsel %vm597, %v3450, %v3728
    %v3769 = vsel %vm1651, %v3765, %v3738
    %v3770 = vsel %vm1651, %v3766, %v3740
    %v3771 = vsel %vm1651, %v3767, %v3742
    %v3772 = vsel %vm1651, %v3768, %v3744
    %v3773 = vsel %vm1656, %v3769, %v3754
    %v3774 = vsel %vm1656, %v3770, %v3756
    %v3775 = vsel %vm1656, %v3771, %v3758
    %v3776 = vsel %vm1656, %v3772, %v3760
    %v3777 = vpack.c.bf16 %v3774, %v3773
    %v3778 = vpack.c.bf16 %v3776, %v3775
    %s3779 = scalar_lea.vmem [#allocation2], 64
    %v3780 = vld [vmem:[%s3779] sm:$0xf]
    %v3781 = vld [vmem:[%s3779 + $0x4] sm:$0xf]
    %v3782 = vld [vmem:[%s3779 + $0x8] sm:$0xf]
    %v3783 = vld [vmem:[%s3779 + $0xc] sm:$0xf]
    %v3784 = vld [vmem:[%s3779 + $0x10] sm:$0xf]
    %v3785 = vld [vmem:[%s3779 + $0x14] sm:$0xf]
    %v3786 = vld [vmem:[%s3779 + $0x18] sm:$0xf]
    %v3787 = vld [vmem:[%s3779 + $0x1c] sm:$0xf]
    %v3788 = vld [vmem:[%s3779 + $0x20] sm:$0xf]
    %v3789 = vld [vmem:[%s3779 + $0x24] sm:$0xf]
    %v3790 = vld [vmem:[%s3779 + $0x28] sm:$0xf]
    %v3791 = vld [vmem:[%s3779 + $0x2c] sm:$0xf]
    %v3792 = vld [vmem:[%s3779 + $0x30] sm:$0xf]
    %v3793 = vld [vmem:[%s3779 + $0x34] sm:$0xf]
    %v3794 = vld [vmem:[%s3779 + $0x38] sm:$0xf]
    %v3795 = vld [vmem:[%s3779 + $0x3c] sm:$0xf]
    %s3796 = scalar_lea.vmem %s7, 1
    %v3797 = vld [vmem:[%s3796] sm:$0x1]
    %v3799 = vlaneseq
    %v3800 = vshrl.u32 %v3799, 7
    %v3801 = vsub.s32 0, %v3800
    %v3802 = vrot.slane %v3797, %v3801
    %v3820 = vunpack.c.l.b16 %v3780
    %v3821 = vunpack.c.l.b16 %v3781
    %v3822 = vunpack.c.l.b16 %v3782
    %v3823 = vunpack.c.l.b16 %v3783
    %v3824 = vunpack.c.l.b16 %v3784
    %v3825 = vunpack.c.l.b16 %v3785
    %v3826 = vunpack.c.l.b16 %v3786
    %v3827 = vunpack.c.l.b16 %v3787
    %v3828 = vunpack.c.l.b16 %v3788
    %v3829 = vunpack.c.l.b16 %v3789
    %v3830 = vunpack.c.l.b16 %v3790
    %v3831 = vunpack.c.l.b16 %v3791
    %v3832 = vunpack.c.l.b16 %v3792
    %v3833 = vunpack.c.l.b16 %v3793
    %v3834 = vunpack.c.l.b16 %v3794
    %v3835 = vunpack.c.l.b16 %v3795
    %v3836 = vpack.c.b16 %v3821, %v3820
    %v3837 = vpack.c.b16 %v3823, %v3822
    %v3838 = vpack.c.b16 %v3825, %v3824
    %v3839 = vpack.c.b16 %v3827, %v3826
    %v3840 = vpack.c.b16 %v3829, %v3828
    %v3841 = vpack.c.b16 %v3831, %v3830
    %v3842 = vpack.c.b16 %v3833, %v3832
    %v3843 = vpack.c.b16 %v3835, %v3834
    %3852 = vmatprep.subr.bf16.mxu0 0
    %3853 = vmatpush1.bf16.msra.mxu0 %v3843
    %3854 = vmatprep.subr.bf16.mxu0 0
    %3855 = vmatpush1.bf16.msra.mxu0 %v3842
    %3856 = vmatprep.subr.bf16.mxu0 0
    %3857 = vmatpush1.bf16.msra.mxu0 %v3841
    %3858 = vmatprep.subr.bf16.mxu0 0
    %3859 = vmatpush1.bf16.msra.mxu0 %v3840
    %3860 = vmatprep.subr.bf16.mxu0 0
    %3861 = vmatpush1.bf16.msra.mxu0 %v3839
    %3862 = vmatprep.subr.bf16.mxu0 0
    %3863 = vmatpush1.bf16.msra.mxu0 %v3838
    %3864 = vmatprep.subr.bf16.mxu0 0
    %3865 = vmatpush1.bf16.msra.mxu0 %v3837
    %3866 = vmatprep.subr.bf16.mxu0 0
    %3867 = vmatpush1.bf16.msra.mxu0 %v3836
    %3868 = vmatprep.subr.bf16.mxu0 0
    %3869 = vmatpush2.bf16.msra.mxu0 0
    %3870 = vmatprep.subr.bf16.mxu0 0
    %3871 = vmatpush2.bf16.msra.mxu0 0
    %3872 = vmatprep.subr.bf16.mxu0 0
    %3873 = vmatpush2.bf16.msra.mxu0 0
    %3874 = vmatprep.subr.bf16.mxu0 0
    %3875 = vmatpush2.bf16.msra.mxu0 0
    %3876 = vmatprep.subr.bf16.mxu0 0
    %3877 = vmatpush2.bf16.msra.mxu0 0
    %3878 = vmatprep.subr.bf16.mxu0 0
    %3879 = vmatpush2.bf16.msra.mxu0 0
    %3880 = vmatprep.subr.bf16.mxu0 0
    %3881 = vmatpush2.bf16.msra.mxu0 0
    %3882 = vmatprep.subr.bf16.mxu0 0
    %3883 = vmatpush2.bf16.msra.mxu0 0
    %3884 = vmatprep.mubr.bf16.mxu0 0
    %3885 = vmatmul.mubr.bf16.gmra.mxu0 %v3777
    %v3886 = vpop.f32.mrf.mxu0
    %v3887 = vadd.f32 %v3802, %v3886
    %v3888 = vpop.f32.mrf.mxu0
    %v3889 = vpop.f32.mrf.mxu0
    %v3890 = vadd.f32 %v3802, %v3889
    %v3891 = vpop.f32.mrf.mxu0
    %3892 = vmatprep.mubr.bf16.mxu0 0
    %3893 = vmatmul.mubr.bf16.gmra.mxu0 %v3778
    %v3894 = vpop.f32.mrf.mxu0
    %v3895 = vadd.f32 %v3802, %v3894
    %v3896 = vpop.f32.mrf.mxu0
    %v3897 = vpop.f32.mrf.mxu0
    %v3898 = vadd.f32 %v3802, %v3897
    %v3899 = vpop.f32.mrf.mxu0
    %3900 = vdwg.mxu0
    %v3901 = vadd.f32 %v2342, %v3887
    %v3902 = vadd.f32 %v2343, %v3890
    %v3903 = vadd.f32 %v2344, %v3895
    %v3904 = vadd.f32 %v2345, %v3898
    %s3905 = scalar_lea.vmem %s8, 1
    %v3906 = vld [vmem:[%s3905] sm:$0x1]
    %s3907 = scalar_lea.vmem %s9, 1
    %v3908 = vld [vmem:[%s3907] sm:$0x1]
    %3909 = vadd.xlane.f32.xlu0 %v3901
    %v3910 = vpop.xlane.xlu0 %3909
    %3911 = vadd.xlane.f32.xlu0 %v3902
    %v3912 = vpop.xlane.xlu0 %3911
    %3913 = vadd.xlane.f32.xlu0 %v3903
    %v3914 = vpop.xlane.xlu0 %3913
    %3915 = vadd.xlane.f32.xlu0 %v3904
    %v3916 = vpop.xlane.xlu0 %3915
    %v3917 = vmul.f32 %v3910, %v115
    %v3918 = vmul.f32 %v3912, %v115
    %v3919 = vmul.f32 %v3914, %v115
    %v3920 = vmul.f32 %v3916, %v115
    %v3921 = vsub.f32 %v3901, %v3917
    %v3922 = vsub.f32 %v3902, %v3918
    %v3923 = vsub.f32 %v3903, %v3919
    %v3924 = vsub.f32 %v3904, %v3920
    %v3925 = vmul.f32 %v3921, %v3921
    %v3926 = vmul.f32 %v3922, %v3922
    %v3927 = vmul.f32 %v3923, %v3923
    %v3928 = vmul.f32 %v3924, %v3924
    %3929 = vadd.xlane.f32.xlu0 %v3925
    %v3930 = vpop.xlane.xlu0 %3929
    %3931 = vadd.xlane.f32.xlu0 %v3926
    %v3932 = vpop.xlane.xlu0 %3931
    %3933 = vadd.xlane.f32.xlu0 %v3927
    %v3934 = vpop.xlane.xlu0 %3933
    %3935 = vadd.xlane.f32.xlu0 %v3928
    %v3936 = vpop.xlane.xlu0 %3935
    %v3937 = vmul.f32 %v3930, %v115
    %v3938 = vmul.f32 %v3932, %v115
    %v3939 = vmul.f32 %v3934, %v115
    %v3940 = vmul.f32 %v3936, %v115
    %v3941 = vadd.f32 %v3937, 1e-12
    %v3942 = vadd.f32 %v3938, 1e-12
    %v3943 = vadd.f32 %v3939, 1e-12
    %v3944 = vadd.f32 %v3940, 1e-12
    %v3945 = vrsqrt.pop %v3941
    %v3946 = vrsqrt.pop %v3942
    %v3947 = vrsqrt.pop %v3943
    %v3948 = vrsqrt.pop %v3944
    %v3949 = vmul.f32 %v3921, %v3945
    %v3950 = vmul.f32 %v3922, %v3946
    %v3951 = vmul.f32 %v3923, %v3947
    %v3952 = vmul.f32 %v3924, %v3948
    %v3954 = vlaneseq
    %v3955 = vshrl.u32 %v3954, 7
    %v3956 = vsub.s32 0, %v3955
    %v3957 = vrot.slane %v3906, %v3956
    %v3959 = vmul.f32 %v3949, %v3957
    %v3960 = vmul.f32 %v3950, %v3957
    %v3961 = vmul.f32 %v3951, %v3957
    %v3962 = vmul.f32 %v3952, %v3957
    %v3964 = vlaneseq
    %v3965 = vshrl.u32 %v3964, 7
    %v3966 = vsub.s32 0, %v3965
    %v3967 = vrot.slane %v3908, %v3966
    %v3969 = vadd.f32 %v3959, %v3967
    %v3970 = vadd.f32 %v3960, %v3967
    %v3971 = vadd.f32 %v3961, %v3967
    %v3972 = vadd.f32 %v3962, %v3967
    %v3973 = vpack.c.bf16 %v3970, %v3969
    %v3974 = vpack.c.bf16 %v3972, %v3971
    %s3975 = scalar_lea.vmem [#allocation4], 128
    %v3976 = vld [vmem:[%s3975] sm:$0xff]
    %v3977 = vld [vmem:[%s3975 + $0x8] sm:$0xff]
    %v3978 = vld [vmem:[%s3975 + $0x10] sm:$0xff]
    %v3979 = vld [vmem:[%s3975 + $0x18] sm:$0xff]
    %v3980 = vld [vmem:[%s3975 + $0x20] sm:$0xff]
    %v3981 = vld [vmem:[%s3975 + $0x28] sm:$0xff]
    %v3982 = vld [vmem:[%s3975 + $0x30] sm:$0xff]
    %v3983 = vld [vmem:[%s3975 + $0x38] sm:$0xff]
    %v3984 = vld [vmem:[%s3975 + $0x40] sm:$0xff]
    %v3985 = vld [vmem:[%s3975 + $0x48] sm:$0xff]
    %v3986 = vld [vmem:[%s3975 + $0x50] sm:$0xff]
    %v3987 = vld [vmem:[%s3975 + $0x58] sm:$0xff]
    %v3988 = vld [vmem:[%s3975 + $0x60] sm:$0xff]
    %v3989 = vld [vmem:[%s3975 + $0x68] sm:$0xff]
    %v3990 = vld [vmem:[%s3975 + $0x70] sm:$0xff]
    %v3991 = vld [vmem:[%s3975 + $0x78] sm:$0xff]
    %s3992 = scalar_lea.vmem %s11, 2
    %v3993 = vld [vmem:[%s3992] sm:$0x3]
    %v3995 = vlaneseq
    %v3996 = vshrl.u32 %v3995, 7
    %v3997 = vsub.s32 0, %v3996
    %v3998 = vrot.slane %v3993, %v3997
    %v3999 = vlaneseq
    %v4000 = vshrl.u32 %v3999, 7
    %v4001 = vsub.s32 1, %v4000
    %v4002 = vrot.slane %v3993, %v4001
    %v4021 = vunpack.c.l.b16 %v3976
    %v4022 = vunpack.c.h.b16 %v3976
    %v4023 = vunpack.c.l.b16 %v3977
    %v4024 = vunpack.c.h.b16 %v3977
    %v4025 = vunpack.c.l.b16 %v3978
    %v4026 = vunpack.c.h.b16 %v3978
    %v4027 = vunpack.c.l.b16 %v3979
    %v4028 = vunpack.c.h.b16 %v3979
    %v4029 = vunpack.c.l.b16 %v3980
    %v4030 = vunpack.c.h.b16 %v3980
    %v4031 = vunpack.c.l.b16 %v3981
    %v4032 = vunpack.c.h.b16 %v3981
    %v4033 = vunpack.c.l.b16 %v3982
    %v4034 = vunpack.c.h.b16 %v3982
    %v4035 = vunpack.c.l.b16 %v3983
    %v4036 = vunpack.c.h.b16 %v3983
    %v4037 = vunpack.c.l.b16 %v3984
    %v4038 = vunpack.c.h.b16 %v3984
    %v4039 = vunpack.c.l.b16 %v3985
    %v4040 = vunpack.c.h.b16 %v3985
    %v4041 = vunpack.c.l.b16 %v3986
    %v4042 = vunpack.c.h.b16 %v3986
    %v4043 = vunpack.c.l.b16 %v3987
    %v4044 = vunpack.c.h.b16 %v3987
    %v4045 = vunpack.c.l.b16 %v3988
    %v4046 = vunpack.c.h.b16 %v3988
    %v4047 = vunpack.c.l.b16 %v3989
    %v4048 = vunpack.c.h.b16 %v3989
    %v4049 = vunpack.c.l.b16 %v3990
    %v4050 = vunpack.c.h.b16 %v3990
    %v4051 = vunpack.c.l.b16 %v3991
    %v4052 = vunpack.c.h.b16 %v3991
    %v4053 = vpack.c.b16 %v4023, %v4021
    %v4054 = vpack.c.b16 %v4024, %v4022
    %v4055 = vpack.c.b16 %v4027, %v4025
    %v4056 = vpack.c.b16 %v4028, %v4026
    %v4057 = vpack.c.b16 %v4031, %v4029
    %v4058 = vpack.c.b16 %v4032, %v4030
    %v4059 = vpack.c.b16 %v4035, %v4033
    %v4060 = vpack.c.b16 %v4036, %v4034
    %v4061 = vpack.c.b16 %v4039, %v4037
    %v4062 = vpack.c.b16 %v4040, %v4038
    %v4063 = vpack.c.b16 %v4043, %v4041
    %v4064 = vpack.c.b16 %v4044, %v4042
    %v4065 = vpack.c.b16 %v4047, %v4045
    %v4066 = vpack.c.b16 %v4048, %v4046
    %v4067 = vpack.c.b16 %v4051, %v4049
    %v4068 = vpack.c.b16 %v4052, %v4050
    %4085 = vmatprep.subr.bf16.mxu0 %v4068
    %4086 = vmatpush1.bf16.msra.mxu0 %v4067
    %4087 = vmatprep.subr.bf16.mxu0 %v4066
    %4088 = vmatpush1.bf16.msra.mxu0 %v4065
    %4089 = vmatprep.subr.bf16.mxu0 %v4064
    %4090 = vmatpush1.bf16.msra.mxu0 %v4063
    %4091 = vmatprep.subr.bf16.mxu0 %v4062
    %4092 = vmatpush1.bf16.msra.mxu0 %v4061
    %4093 = vmatprep.subr.bf16.mxu0 %v4060
    %4094 = vmatpush1.bf16.msra.mxu0 %v4059
    %4095 = vmatprep.subr.bf16.mxu0 %v4058
    %4096 = vmatpush1.bf16.msra.mxu0 %v4057
    %4097 = vmatprep.subr.bf16.mxu0 %v4056
    %4098 = vmatpush1.bf16.msra.mxu0 %v4055
    %4099 = vmatprep.subr.bf16.mxu0 %v4054
    %4100 = vmatpush1.bf16.msra.mxu0 %v4053
    %4101 = vmatprep.subr.bf16.mxu0 0
    %4102 = vmatpush2.bf16.msra.mxu0 0
    %4103 = vmatprep.subr.bf16.mxu0 0
    %4104 = vmatpush2.bf16.msra.mxu0 0
    %4105 = vmatprep.subr.bf16.mxu0 0
    %4106 = vmatpush2.bf16.msra.mxu0 0
    %4107 = vmatprep.subr.bf16.mxu0 0
    %4108 = vmatpush2.bf16.msra.mxu0 0
    %4109 = vmatprep.subr.bf16.mxu0 0
    %4110 = vmatpush2.bf16.msra.mxu0 0
    %4111 = vmatprep.subr.bf16.mxu0 0
    %4112 = vmatpush2.bf16.msra.mxu0 0
    %4113 = vmatprep.subr.bf16.mxu0 0
    %4114 = vmatpush2.bf16.msra.mxu0 0
    %4115 = vmatprep.subr.bf16.mxu0 0
    %4116 = vmatpush2.bf16.msra.mxu0 0
    %4117 = vmatprep.mubr.bf16.mxu0 0
    %4118 = vmatmul.mubr.bf16.gmra.mxu0 %v3973
    %v4119 = vpop.f32.mrf.mxu0
    %v4120 = vadd.f32 %v3998, %v4119
    %v4121 = vpop.f32.mrf.mxu0
    %v4122 = vadd.f32 %v4002, %v4121
    %v4123 = vpop.f32.mrf.mxu0
    %v4124 = vadd.f32 %v3998, %v4123
    %v4125 = vpop.f32.mrf.mxu0
    %v4126 = vadd.f32 %v4002, %v4125
    %4127 = vmatprep.mubr.bf16.mxu0 0
    %4128 = vmatmul.mubr.bf16.gmra.mxu0 %v3974
    %v4129 = vpop.f32.mrf.mxu0
    %v4130 = vadd.f32 %v3998, %v4129
    %v4131 = vpop.f32.mrf.mxu0
    %v4132 = vadd.f32 %v4002, %v4131
    %v4133 = vpop.f32.mrf.mxu0
    %v4134 = vadd.f32 %v3998, %v4133
    %v4135 = vpop.f32.mrf.mxu0
    %v4136 = vadd.f32 %v4002, %v4135
    %4137 = vdwg.mxu0
    %v4138 = vmul.f32 %v4120, %v4120
    %v4139 = vmul.f32 %v4122, %v4122
    %v4140 = vmul.f32 %v4124, %v4124
    %v4141 = vmul.f32 %v4126, %v4126
    %v4142 = vmul.f32 %v4130, %v4130
    %v4143 = vmul.f32 %v4132, %v4132
    %v4144 = vmul.f32 %v4134, %v4134
    %v4145 = vmul.f32 %v4136, %v4136
    %v4146 = vmul.f32 %v4120, %v4138
    %v4147 = vmul.f32 %v4122, %v4139
    %v4148 = vmul.f32 %v4124, %v4140
    %v4149 = vmul.f32 %v4126, %v4141
    %v4150 = vmul.f32 %v4130, %v4142
    %v4151 = vmul.f32 %v4132, %v4143
    %v4152 = vmul.f32 %v4134, %v4144
    %v4153 = vmul.f32 %v4136, %v4145
    %v4154 = vmul.f32 %v4146, 0.044715
    %v4155 = vmul.f32 %v4147, 0.044715
    %v4156 = vmul.f32 %v4148, 0.044715
    %v4157 = vmul.f32 %v4149, 0.044715
    %v4158 = vmul.f32 %v4150, 0.044715
    %v4159 = vmul.f32 %v4151, 0.044715
    %v4160 = vmul.f32 %v4152, 0.044715
    %v4161 = vmul.f32 %v4153, 0.044715
    %v4162 = vadd.f32 %v4120, %v4154
    %v4163 = vadd.f32 %v4122, %v4155
    %v4164 = vadd.f32 %v4124, %v4156
    %v4165 = vadd.f32 %v4126, %v4157
    %v4166 = vadd.f32 %v4130, %v4158
    %v4167 = vadd.f32 %v4132, %v4159
    %v4168 = vadd.f32 %v4134, %v4160
    %v4169 = vadd.f32 %v4136, %v4161
    %v4170 = vmul.f32 %v4162, 0.7978846
    %v4171 = vmul.f32 %v4163, 0.7978846
    %v4172 = vmul.f32 %v4164, 0.7978846
    %v4173 = vmul.f32 %v4165, 0.7978846
    %v4174 = vmul.f32 %v4166, 0.7978846
    %v4175 = vmul.f32 %v4167, 0.7978846
    %v4176 = vmul.f32 %v4168, 0.7978846
    %v4177 = vmul.f32 %v4169, 0.7978846
    %v4178 = vtanh.pop %v4170
    %v4179 = vtanh.pop %v4171
    %v4180 = vtanh.pop %v4172
    %v4181 = vtanh.pop %v4173
    %v4182 = vtanh.pop %v4174
    %v4183 = vtanh.pop %v4175
    %v4184 = vtanh.pop %v4176
    %v4185 = vtanh.pop %v4177
    %v4186 = vadd.f32 %v4178, 1.0
    %v4187 = vadd.f32 %v4179, 1.0
    %v4188 = vadd.f32 %v4180, 1.0
    %v4189 = vadd.f32 %v4181, 1.0
    %v4190 = vadd.f32 %v4182, 1.0
    %v4191 = vadd.f32 %v4183, 1.0
    %v4192 = vadd.f32 %v4184, 1.0
    %v4193 = vadd.f32 %v4185, 1.0
    %v4194 = vmul.f32 %v4186, 0.5
    %v4195 = vmul.f32 %v4187, 0.5
    %v4196 = vmul.f32 %v4188, 0.5
    %v4197 = vmul.f32 %v4189, 0.5
    %v4198 = vmul.f32 %v4190, 0.5
    %v4199 = vmul.f32 %v4191, 0.5
    %v4200 = vmul.f32 %v4192, 0.5
    %v4201 = vmul.f32 %v4193, 0.5
    %v4202 = vmul.f32 %v4120, %v4194
    %v4203 = vmul.f32 %v4122, %v4195
    %v4204 = vmul.f32 %v4124, %v4196
    %v4205 = vmul.f32 %v4126, %v4197
    %v4206 = vmul.f32 %v4130, %v4198
    %v4207 = vmul.f32 %v4132, %v4199
    %v4208 = vmul.f32 %v4134, %v4200
    %v4209 = vmul.f32 %v4136, %v4201
    %v4210 = vpack.c.bf16 %v4204, %v4202
    %v4211 = vpack.c.bf16 %v4205, %v4203
    %v4212 = vpack.c.bf16 %v4208, %v4206
    %v4213 = vpack.c.bf16 %v4209, %v4207
    %s4214 = scalar_lea.vmem [#allocation6], 128
    %v4215 = vld [vmem:[%s4214] sm:$0xf]
    %v4216 = vld [vmem:[%s4214 + $0x4] sm:$0xf]
    %v4217 = vld [vmem:[%s4214 + $0x8] sm:$0xf]
    %v4218 = vld [vmem:[%s4214 + $0xc] sm:$0xf]
    %v4219 = vld [vmem:[%s4214 + $0x10] sm:$0xf]
    %v4220 = vld [vmem:[%s4214 + $0x14] sm:$0xf]
    %v4221 = vld [vmem:[%s4214 + $0x18] sm:$0xf]
    %v4222 = vld [vmem:[%s4214 + $0x1c] sm:$0xf]
    %v4223 = vld [vmem:[%s4214 + $0x20] sm:$0xf]
    %v4224 = vld [vmem:[%s4214 + $0x24] sm:$0xf]
    %v4225 = vld [vmem:[%s4214 + $0x28] sm:$0xf]
    %v4226 = vld [vmem:[%s4214 + $0x2c] sm:$0xf]
    %v4227 = vld [vmem:[%s4214 + $0x30] sm:$0xf]
    %v4228 = vld [vmem:[%s4214 + $0x34] sm:$0xf]
    %v4229 = vld [vmem:[%s4214 + $0x38] sm:$0xf]
    %v4230 = vld [vmem:[%s4214 + $0x3c] sm:$0xf]
    %v4231 = vld [vmem:[%s4214 + $0x40] sm:$0xf]
    %v4232 = vld [vmem:[%s4214 + $0x44] sm:$0xf]
    %v4233 = vld [vmem:[%s4214 + $0x48] sm:$0xf]
    %v4234 = vld [vmem:[%s4214 + $0x4c] sm:$0xf]
    %v4235 = vld [vmem:[%s4214 + $0x50] sm:$0xf]
    %v4236 = vld [vmem:[%s4214 + $0x54] sm:$0xf]
    %v4237 = vld [vmem:[%s4214 + $0x58] sm:$0xf]
    %v4238 = vld [vmem:[%s4214 + $0x5c] sm:$0xf]
    %v4239 = vld [vmem:[%s4214 + $0x60] sm:$0xf]
    %v4240 = vld [vmem:[%s4214 + $0x64] sm:$0xf]
    %v4241 = vld [vmem:[%s4214 + $0x68] sm:$0xf]
    %v4242 = vld [vmem:[%s4214 + $0x6c] sm:$0xf]
    %v4243 = vld [vmem:[%s4214 + $0x70] sm:$0xf]
    %v4244 = vld [vmem:[%s4214 + $0x74] sm:$0xf]
    %v4245 = vld [vmem:[%s4214 + $0x78] sm:$0xf]
    %v4246 = vld [vmem:[%s4214 + $0x7c] sm:$0xf]
    %s4247 = scalar_lea.vmem %s13, 1
    %v4248 = vld [vmem:[%s4247] sm:$0x1]
    %v4250 = vlaneseq
    %v4251 = vshrl.u32 %v4250, 7
    %v4252 = vsub.s32 0, %v4251
    %v4253 = vrot.slane %v4248, %v4252
    %v4287 = vunpack.c.l.b16 %v4215
    %v4288 = vunpack.c.l.b16 %v4216
    %v4289 = vunpack.c.l.b16 %v4217
    %v4290 = vunpack.c.l.b16 %v4218
    %v4291 = vunpack.c.l.b16 %v4219
    %v4292 = vunpack.c.l.b16 %v4220
    %v4293 = vunpack.c.l.b16 %v4221
    %v4294 = vunpack.c.l.b16 %v4222
    %v4295 = vunpack.c.l.b16 %v4223
    %v4296 = vunpack.c.l.b16 %v4224
    %v4297 = vunpack.c.l.b16 %v4225
    %v4298 = vunpack.c.l.b16 %v4226
    %v4299 = vunpack.c.l.b16 %v4227
    %v4300 = vunpack.c.l.b16 %v4228
    %v4301 = vunpack.c.l.b16 %v4229
    %v4302 = vunpack.c.l.b16 %v4230
    %v4303 = vunpack.c.l.b16 %v4231
    %v4304 = vunpack.c.l.b16 %v4232
    %v4305 = vunpack.c.l.b16 %v4233
    %v4306 = vunpack.c.l.b16 %v4234
    %v4307 = vunpack.c.l.b16 %v4235
    %v4308 = vunpack.c.l.b16 %v4236
    %v4309 = vunpack.c.l.b16 %v4237
    %v4310 = vunpack.c.l.b16 %v4238
    %v4311 = vunpack.c.l.b16 %v4239
    %v4312 = vunpack.c.l.b16 %v4240
    %v4313 = vunpack.c.l.b16 %v4241
    %v4314 = vunpack.c.l.b16 %v4242
    %v4315 = vunpack.c.l.b16 %v4243
    %v4316 = vunpack.c.l.b16 %v4244
    %v4317 = vunpack.c.l.b16 %v4245
    %v4318 = vunpack.c.l.b16 %v4246
    %v4319 = vpack.c.b16 %v4288, %v4287
    %v4320 = vpack.c.b16 %v4290, %v4289
    %v4321 = vpack.c.b16 %v4292, %v4291
    %v4322 = vpack.c.b16 %v4294, %v4293
    %v4323 = vpack.c.b16 %v4296, %v4295
    %v4324 = vpack.c.b16 %v4298, %v4297
    %v4325 = vpack.c.b16 %v4300, %v4299
    %v4326 = vpack.c.b16 %v4302, %v4301
    %v4327 = vpack.c.b16 %v4304, %v4303
    %v4328 = vpack.c.b16 %v4306, %v4305
    %v4329 = vpack.c.b16 %v4308, %v4307
    %v4330 = vpack.c.b16 %v4310, %v4309
    %v4331 = vpack.c.b16 %v4312, %v4311
    %v4332 = vpack.c.b16 %v4314, %v4313
    %v4333 = vpack.c.b16 %v4316, %v4315
    %v4334 = vpack.c.b16 %v4318, %v4317
    %4351 = vmatprep.subr.bf16.mxu0 0
    %4352 = vmatpush1.bf16.msra.mxu0 %v4326
    %4353 = vmatprep.subr.bf16.mxu0 0
    %4354 = vmatpush1.bf16.msra.mxu0 %v4325
    %4355 = vmatprep.subr.bf16.mxu0 0
    %4356 = vmatpush1.bf16.msra.mxu0 %v4324
    %4357 = vmatprep.subr.bf16.mxu0 0
    %4358 = vmatpush1.bf16.msra.mxu0 %v4323
    %4359 = vmatprep.subr.bf16.mxu0 0
    %4360 = vmatpush1.bf16.msra.mxu0 %v4322
    %4361 = vmatprep.subr.bf16.mxu0 0
    %4362 = vmatpush1.bf16.msra.mxu0 %v4321
    %4363 = vmatprep.subr.bf16.mxu0 0
    %4364 = vmatpush1.bf16.msra.mxu0 %v4320
    %4365 = vmatprep.subr.bf16.mxu0 0
    %4366 = vmatpush1.bf16.msra.mxu0 %v4319
    %4367 = vmatprep.subr.bf16.mxu0 0
    %4368 = vmatpush2.bf16.msra.mxu0 %v4334
    %4369 = vmatprep.subr.bf16.mxu0 0
    %4370 = vmatpush2.bf16.msra.mxu0 %v4333
    %4371 = vmatprep.subr.bf16.mxu0 0
    %4372 = vmatpush2.bf16.msra.mxu0 %v4332
    %4373 = vmatprep.subr.bf16.mxu0 0
    %4374 = vmatpush2.bf16.msra.mxu0 %v4331
    %4375 = vmatprep.subr.bf16.mxu0 0
    %4376 = vmatpush2.bf16.msra.mxu0 %v4330
    %4377 = vmatprep.subr.bf16.mxu0 0
    %4378 = vmatpush2.bf16.msra.mxu0 %v4329
    %4379 = vmatprep.subr.bf16.mxu0 0
    %4380 = vmatpush2.bf16.msra.mxu0 %v4328
    %4381 = vmatprep.subr.bf16.mxu0 0
    %4382 = vmatpush2.bf16.msra.mxu0 %v4327
    %4383 = vmatprep.mubr.bf16.mxu0 %v4211
    %4384 = vmatmul.mubr.bf16.gmra.mxu0 %v4210
    %v4385 = vpop.f32.mrf.mxu0
    %v4386 = vadd.f32 %v4253, %v4385
    %v4387 = vpop.f32.mrf.mxu0
    %v4388 = vpop.f32.mrf.mxu0
    %v4389 = vadd.f32 %v4253, %v4388
    %v4390 = vpop.f32.mrf.mxu0
    %4391 = vmatprep.mubr.bf16.mxu0 %v4213
    %4392 = vmatmul.mubr.bf16.gmra.mxu0 %v4212
    %v4393 = vpop.f32.mrf.mxu0
    %v4394 = vadd.f32 %v4253, %v4393
    %v4395 = vpop.f32.mrf.mxu0
    %v4396 = vpop.f32.mrf.mxu0
    %v4397 = vadd.f32 %v4253, %v4396
    %v4398 = vpop.f32.mrf.mxu0
    %4399 = vdwg.mxu0
    %v4400 = vadd.f32 %v3969, %v4386
    %v4401 = vadd.f32 %v3970, %v4389
    %v4402 = vadd.f32 %v3971, %v4394
    %v4403 = vadd.f32 %v3972, %v4397
    %s4404 = scalar_lea.vmem %s14, 1
    %v4405 = vld [vmem:[%s4404] sm:$0x1]
    %s4406 = scalar_lea.vmem %s15, 1
    %v4407 = vld [vmem:[%s4406] sm:$0x1]
    %4408 = vadd.xlane.f32.xlu0 %v4400
    %v4409 = vpop.xlane.xlu0 %4408
    %4410 = vadd.xlane.f32.xlu0 %v4401
    %v4411 = vpop.xlane.xlu0 %4410
    %4412 = vadd.xlane.f32.xlu0 %v4402
    %v4413 = vpop.xlane.xlu0 %4412
    %4414 = vadd.xlane.f32.xlu0 %v4403
    %v4415 = vpop.xlane.xlu0 %4414
    %v4416 = vmul.f32 %v4409, %v115
    %v4417 = vmul.f32 %v4411, %v115
    %v4418 = vmul.f32 %v4413, %v115
    %v4419 = vmul.f32 %v4415, %v115
    %v4420 = vsub.f32 %v4400, %v4416
    %v4421 = vsub.f32 %v4401, %v4417
    %v4422 = vsub.f32 %v4402, %v4418
    %v4423 = vsub.f32 %v4403, %v4419
    %v4424 = vmul.f32 %v4420, %v4420
    %v4425 = vmul.f32 %v4421, %v4421
    %v4426 = vmul.f32 %v4422, %v4422
    %v4427 = vmul.f32 %v4423, %v4423
    %4428 = vadd.xlane.f32.xlu0 %v4424
    %v4429 = vpop.xlane.xlu0 %4428
    %4430 = vadd.xlane.f32.xlu0 %v4425
    %v4431 = vpop.xlane.xlu0 %4430
    %4432 = vadd.xlane.f32.xlu0 %v4426
    %v4433 = vpop.xlane.xlu0 %4432
    %4434 = vadd.xlane.f32.xlu0 %v4427
    %v4435 = vpop.xlane.xlu0 %4434
    %v4436 = vmul.f32 %v4429, %v115
    %v4437 = vmul.f32 %v4431, %v115
    %v4438 = vmul.f32 %v4433, %v115
    %v4439 = vmul.f32 %v4435, %v115
    %v4440 = vadd.f32 %v4436, 1e-12
    %v4441 = vadd.f32 %v4437, 1e-12
    %v4442 = vadd.f32 %v4438, 1e-12
    %v4443 = vadd.f32 %v4439, 1e-12
    %v4444 = vrsqrt.pop %v4440
    %v4445 = vrsqrt.pop %v4441
    %v4446 = vrsqrt.pop %v4442
    %v4447 = vrsqrt.pop %v4443
    %v4448 = vmul.f32 %v4420, %v4444
    %v4449 = vmul.f32 %v4421, %v4445
    %v4450 = vmul.f32 %v4422, %v4446
    %v4451 = vmul.f32 %v4423, %v4447
    %v4453 = vlaneseq
    %v4454 = vshrl.u32 %v4453, 7
    %v4455 = vsub.s32 0, %v4454
    %v4456 = vrot.slane %v4405, %v4455
    %v4458 = vmul.f32 %v4448, %v4456
    %v4459 = vmul.f32 %v4449, %v4456
    %v4460 = vmul.f32 %v4450, %v4456
    %v4461 = vmul.f32 %v4451, %v4456
    %v4463 = vlaneseq
    %v4464 = vshrl.u32 %v4463, 7
    %v4465 = vsub.s32 0, %v4464
    %v4466 = vrot.slane %v4407, %v4465
    %v4468 = vadd.f32 %v4458, %v4466
    %v4469 = vadd.f32 %v4459, %v4466
    %v4470 = vadd.f32 %v4460, %v4466
    %v4471 = vadd.f32 %v4461, %v4466
    %v4472 = vpack.c.bf16 %v4469, %v4468
    %v4473 = vpack.c.bf16 %v4471, %v4470
    %v4474 = vld [vmem:[%s16] sm:$0xf]
    %v4475 = vld [vmem:[%s16 + $0x4] sm:$0xf]
    %v4476 = vld [vmem:[%s16 + $0x8] sm:$0xf]
    %v4477 = vld [vmem:[%s16 + $0xc] sm:$0xf]
    %v4478 = vld [vmem:[%s16 + $0x10] sm:$0xf]
    %v4479 = vld [vmem:[%s16 + $0x14] sm:$0xf]
    %v4480 = vld [vmem:[%s16 + $0x18] sm:$0xf]
    %v4481 = vld [vmem:[%s16 + $0x1c] sm:$0xf]
    %v4482 = vld [vmem:[%s16 + $0x20] sm:$0xf]
    %v4483 = vld [vmem:[%s16 + $0x24] sm:$0xf]
    %v4484 = vld [vmem:[%s16 + $0x28] sm:$0xf]
    %v4485 = vld [vmem:[%s16 + $0x2c] sm:$0xf]
    %v4486 = vld [vmem:[%s16 + $0x30] sm:$0xf]
    %v4487 = vld [vmem:[%s16 + $0x34] sm:$0xf]
    %v4488 = vld [vmem:[%s16 + $0x38] sm:$0xf]
    %v4489 = vld [vmem:[%s16 + $0x3c] sm:$0xf]
    %v4490 = vld [vmem:[%s17] sm:$0x1]
    %v4492 = vlaneseq
    %v4493 = vshrl.u32 %v4492, 7
    %v4494 = vsub.s32 0, %v4493
    %v4495 = vrot.slane %v4490, %v4494
    %v4513 = vunpack.c.l.b16 %v4474
    %v4514 = vunpack.c.l.b16 %v4475
    %v4515 = vunpack.c.l.b16 %v4476
    %v4516 = vunpack.c.l.b16 %v4477
    %v4517 = vunpack.c.l.b16 %v4478
    %v4518 = vunpack.c.l.b16 %v4479
    %v4519 = vunpack.c.l.b16 %v4480
    %v4520 = vunpack.c.l.b16 %v4481
    %v4521 = vunpack.c.l.b16 %v4482
    %v4522 = vunpack.c.l.b16 %v4483
    %v4523 = vunpack.c.l.b16 %v4484
    %v4524 = vunpack.c.l.b16 %v4485
    %v4525 = vunpack.c.l.b16 %v4486
    %v4526 = vunpack.c.l.b16 %v4487
    %v4527 = vunpack.c.l.b16 %v4488
    %v4528 = vunpack.c.l.b16 %v4489
    %v4529 = vpack.c.b16 %v4514, %v4513
    %v4530 = vpack.c.b16 %v4516, %v4515
    %v4531 = vpack.c.b16 %v4518, %v4517
    %v4532 = vpack.c.b16 %v4520, %v4519
    %v4533 = vpack.c.b16 %v4522, %v4521
    %v4534 = vpack.c.b16 %v4524, %v4523
    %v4535 = vpack.c.b16 %v4526, %v4525
    %v4536 = vpack.c.b16 %v4528, %v4527
    %4545 = vmatprep.subr.bf16.mxu0 0
    %4546 = vmatpush1.bf16.msra.mxu0 %v4536
    %4547 = vmatprep.subr.bf16.mxu0 0
    %4548 = vmatpush1.bf16.msra.mxu0 %v4535
    %4549 = vmatprep.subr.bf16.mxu0 0
    %4550 = vmatpush1.bf16.msra.mxu0 %v4534
    %4551 = vmatprep.subr.bf16.mxu0 0
    %4552 = vmatpush1.bf16.msra.mxu0 %v4533
    %4553 = vmatprep.subr.bf16.mxu0 0
    %4554 = vmatpush1.bf16.msra.mxu0 %v4532
    %4555 = vmatprep.subr.bf16.mxu0 0
    %4556 = vmatpush1.bf16.msra.mxu0 %v4531
    %4557 = vmatprep.subr.bf16.mxu0 0
    %4558 = vmatpush1.bf16.msra.mxu0 %v4530
    %4559 = vmatprep.subr.bf16.mxu0 0
    %4560 = vmatpush1.bf16.msra.mxu0 %v4529
    %4561 = vmatprep.subr.bf16.mxu0 0
    %4562 = vmatpush2.bf16.msra.mxu0 0
    %4563 = vmatprep.subr.bf16.mxu0 0
    %4564 = vmatpush2.bf16.msra.mxu0 0
    %4565 = vmatprep.subr.bf16.mxu0 0
    %4566 = vmatpush2.bf16.msra.mxu0 0
    %4567 = vmatprep.subr.bf16.mxu0 0
    %4568 = vmatpush2.bf16.msra.mxu0 0
    %4569 = vmatprep.subr.bf16.mxu0 0
    %4570 = vmatpush2.bf16.msra.mxu0 0
    %4571 = vmatprep.subr.bf16.mxu0 0
    %4572 = vmatpush2.bf16.msra.mxu0 0
    %4573 = vmatprep.subr.bf16.mxu0 0
    %4574 = vmatpush2.bf16.msra.mxu0 0
    %4575 = vmatprep.subr.bf16.mxu0 0
    %4576 = vmatpush2.bf16.msra.mxu0 0
    %4577 = vmatprep.mubr.bf16.mxu0 0
    %4578 = vmatmul.mubr.bf16.gmra.mxu0 %v4472
    %v4579 = vpop.f32.mrf.mxu0
    %v4580 = vadd.f32 %v4495, %v4579
    %v4581 = vpop.f32.mrf.mxu0
    %v4582 = vpop.f32.mrf.mxu0
    %v4583 = vadd.f32 %v4495, %v4582
    %v4584 = vpop.f32.mrf.mxu0
    %4585 = vmatprep.mubr.bf16.mxu0 0
    %4586 = vmatmul.mubr.bf16.gmra.mxu0 %v4473
    %v4587 = vpop.f32.mrf.mxu0
    %v4588 = vadd.f32 %v4495, %v4587
    %v4589 = vpop.f32.mrf.mxu0
    %v4590 = vpop.f32.mrf.mxu0
    %v4591 = vadd.f32 %v4495, %v4590
    %v4592 = vpop.f32.mrf.mxu0
    %4593 = vdwg.mxu0
    %4594 = vst [vmem:[%s18] sm:$0xff] %v4580
    %4595 = vst [vmem:[%s18 + $0x8] sm:$0xff] %v4583
    %4596 = vst [vmem:[%s18 + $0x10] sm:$0xff] %v4588
    %4597 = vst [vmem:[%s18 + $0x18] sm:$0xff] %v4591
    // Predicated region
    $region86: #{bert_labeler_forward.1} parent=1 // pred_check
      _
    $region87: #{bert_labeler_forward.1} parent=1 // pred_check_branch
      %4599 = sbr.rel (0) target = $region89
    $region88: #{bert_labeler_forward.1} parent=1 // pred_region
      _
    $region89: #{bert_labeler_forward.1} parent=1 // pred_fallthru
      _
    // Predicated region
    $region90: #{bert_labeler_forward.1} parent=1 // pred_check
      _
    $region91: #{bert_labeler_forward.1} parent=1 // pred_check_branch
      %4601 = sbr.rel (0) target = $region93
    $region92: #{bert_labeler_forward.1} parent=1 // pred_region
      _
    $region93: #{bert_labeler_forward.1} parent=1 // pred_fallthru
      _
    %4602 = vsyncpa [#allocation3], 1
    %4603 = vsyncpa [#allocation5], 1

</llo_original>
